<compile_context>
chip_gen: v6e
topology: v6e:2x2x1
jax: 0.10.0
libtpu: 0.0.40
codegen_flags: <defaults>
</compile_context>

<pallas_src>
import functools

import jax
import jax.numpy as jnp
from jax.experimental import pallas as pl
from jax.experimental.pallas import tpu as pltpu

_LANE = 128
_SUBLANE = 8
# <= ~48 MiB/TC is safe on v7x (64 MiB physical); v5e/v6e have 128 MiB and can
# go higher via larger row_tile / bn_row_tile if desired.
_VMEM_LIMIT = 48 * 1024 * 1024


def _round_up(x, m):
    return (x + m - 1) // m * m


def _conv_stats_kernel(x0_ref, x1_ref, x2_ref, w_ref, mask_ref,
                       conv_ref, stats_ref, *, Wp, S, TR):
    """One (n, d, row-tile) step:
       - 27 static Ref slices of the three d-shifted halo bands, concatenated
         along K into a (TR, 27*Cin) LHS value (no scratch round-trip, no
         masked narrow stores, no K-padding zero fill),
       - one MXU matmul with fp32 accumulation,
       - per-tile partial BatchNorm statistics (interior voxels only), so the
         grid stays fully 'parallel'."""
    bands = (x0_ref, x1_ref, x2_ref)
    taps = []
    for kd in range(3):
        band = bands[kd]                                 # Ref, (TR + 2*S, Cin)
        for kh in range(3):
            for kw in range(3):
                start = S + (kh - 1) * Wp + (kw - 1)     # static per tap
                taps.append(band[start:start + TR, :])   # Ref slice -> (TR, Cin)
    lhs = jnp.concatenate(taps, axis=-1)                 # (TR, 27*Cin)

    acc = jnp.dot(lhs, w_ref[...],
                  preferred_element_type=jnp.float32)    # (TR, Coutp) fp32
    conv_ref[...] = acc.astype(conv_ref.dtype)           # bf16 (or fp32) store

    am = acc * mask_ref[...]                             # mask applied once
    stats_ref[0:1, :] = jnp.sum(am, axis=0, keepdims=True)
    stats_ref[1:2, :] = jnp.sum(am * acc, axis=0, keepdims=True)


def _bn_relu_kernel(x_ref, scale_ref, shift_ref, o_ref):
    # all elementwise math in fp32 (v5e has no bf16 VPU path).
    x = x_ref[...].astype(jnp.float32)
    o_ref[...] = jnp.maximum(x * scale_ref[...] + shift_ref[...], 0.0)


def basic_convolution_block(x_ncdhw, weight, gamma, beta, *, eps=1e-5,
                            mxu_dtype=jnp.bfloat16, row_tile=512,
                            bn_row_tile=2048, channels_last=False):
    N, Cin, D, H, W = x_ncdhw.shape
    KS = weight.shape[0]
    Cout = weight.shape[-1]
    assert KS == 3 and weight.shape == (3, 3, 3, Cin, Cout), \
        "kernel written for ks=3, stride=1, dilation=1"

    Dp, Hp, Wp = D + 2, H + 2, W + 2
    HpWp = Hp * Wp
    S = Wp + 1                                   # max |tap shift| on the flat axis
    Coutp = _round_up(max(Cout, _LANE), _LANE)   # lane-dense output channels
    K = 27 * Cin                                 # un-padded contraction dim

    # ---- row tiling of the flattened padded (Hp, Wp) plane ----
    num_tiles = pl.cdiv(HpWp, row_tile)
    TR = _round_up(pl.cdiv(HpWp, num_tiles), _SUBLANE)   # rows per tile, 8-aligned
    rows = num_tiles * TR                                # padded rows per plane
    band = TR + 2 * S                                    # tile rows + halo

    # ---- layout glue: NDHWC, 1-voxel spatial halo, flatten (Hp, Wp) -> rows,
    #      +-S row halo, then materialize the overlapping per-tile bands
    #      contiguously so the conv BlockSpecs stay plain Blocked.  This is a
    #      single cheap XLA pass over the (small, Cin-channel) input. ----
    x = jnp.transpose(x_ncdhw, (0, 2, 3, 4, 1)).astype(mxu_dtype)        # NDHWC
    xp = jnp.pad(x, ((0, 0), (1, 1), (1, 1), (1, 1), (0, 0)))            # (N,Dp,Hp,Wp,Cin)
    xflat = jnp.pad(xp.reshape(N, Dp, HpWp, Cin),
                    ((0, 0), (0, 0), (S, rows - HpWp + S), (0, 0)))      # (N,Dp,rows+2S,Cin)
    xband = jnp.stack([xflat[:, :, j * TR:j * TR + band, :]
                       for j in range(num_tiles)], axis=2)               # (N,Dp,T,band,Cin)

    # weights: (3,3,3,Cin,Cout) -> (27*Cin, Coutp); only Cout is zero-padded.
    wmat = jnp.pad(weight.astype(jnp.float32),
                   ((0, 0), (0, 0), (0, 0), (0, 0), (0, Coutp - Cout)))
    wmat = wmat.reshape(K, Coutp).astype(mxu_dtype)

    # interior-voxel mask on the flattened padded (Hp, Wp) grid (static).
    r_idx = jnp.arange(rows)
    hp_i = r_idx // Wp
    wp_i = r_idx % Wp
    interior = ((r_idx < HpWp) & (hp_i >= 1) & (hp_i <= H)
                & (wp_i >= 1) & (wp_i <= W))
    mask = interior.astype(jnp.float32).reshape(rows, 1)

    kernel1 = functools.partial(_conv_stats_kernel, Wp=Wp, S=S, TR=TR)
    conv_out, stats = pl.pallas_call(
        kernel1,
        out_shape=(jax.ShapeDtypeStruct((N, D, rows, Coutp), mxu_dtype),
                   jax.ShapeDtypeStruct((N, D, num_tiles, 2, Coutp), jnp.float32)),
        grid_spec=pltpu.PrefetchScalarGridSpec(
            num_scalar_prefetch=0,
            grid=(N, D, num_tiles),
            in_specs=[
                # D-halo: same banded array under three d-shifted index maps.
                # (Input re-read is ~3x Cin lanes vs Coutp=128 output lanes —
                #  small; a rotating d-slab buffer was judged not worth it here.)
                pl.BlockSpec((None, None, None, band, Cin),
                             lambda n, d, j: (n, d, j, 0, 0)),
                pl.BlockSpec((None, None, None, band, Cin),
                             lambda n, d, j: (n, d + 1, j, 0, 0)),
                pl.BlockSpec((None, None, None, band, Cin),
                             lambda n, d, j: (n, d + 2, j, 0, 0)),
                pl.BlockSpec((K, Coutp), lambda n, d, j: (0, 0)),        # resident
                pl.BlockSpec((TR, 1), lambda n, d, j: (j, 0)),
            ],
            out_specs=(
                pl.BlockSpec((None, None, TR, Coutp),
                             lambda n, d, j: (n, d, j, 0)),
                pl.BlockSpec((None, None, None, 2, Coutp),
                             lambda n, d, j: (n, d, j, 0, 0)),
            ),
        ),
        compiler_params=pltpu.CompilerParams(
            dimension_semantics=("parallel", "parallel", "parallel"),
            vmem_limit_bytes=_VMEM_LIMIT),
    )(xband, xband, xband, wmat, mask)

    # ---- fold batch statistics into one affine (training-mode BatchNorm,
    #      biased variance over the M = N*D*H*W interior voxels).
    # TODO(synk): E[x^2]-E[x]^2 in fp32 can cancel for very large M; switch to
    #             per-tile (count, mean, M2) Welford partials for huge workloads.
    M = N * D * H * W
    tot = jnp.sum(stats, axis=(0, 1, 2))                  # (2, Coutp) fp32
    mean = tot[0] / M
    var = tot[1] / M - mean * mean
    gamma_p = jnp.pad(gamma.astype(jnp.float32), (0, Coutp - Cout))
    beta_p = jnp.pad(beta.astype(jnp.float32), (0, Coutp - Cout))
    scale_v = gamma_p * jax.lax.rsqrt(var + eps)
    shift_v = beta_p - mean * scale_v
    scale = scale_v.reshape(1, Coutp)
    shift = shift_v.reshape(1, Coutp)

    # ---- fused BN affine + ReLU over the bf16 conv buffer: large lane-dense
    #      row tiles that divide the buffer exactly. ----
    M2 = N * D * rows
    blocks = N * D * num_tiles                            # M2 == blocks * TR
    g = max(dd for dd in range(1, blocks + 1)
            if blocks % dd == 0 and dd * TR <= max(bn_row_tile, TR))
    TM = g * TR
    conv_flat = conv_out.reshape(M2, Coutp)
    out_flat = pl.pallas_call(
        _bn_relu_kernel,
        out_shape=jax.ShapeDtypeStruct((M2, Coutp), jnp.float32),
        grid_spec=pltpu.PrefetchScalarGridSpec(
            num_scalar_prefetch=0,
            grid=(M2 // TM,),
            in_specs=[pl.BlockSpec((TM, Coutp), lambda i: (i, 0)),
                      pl.BlockSpec((1, Coutp), lambda i: (0, 0)),
                      pl.BlockSpec((1, Coutp), lambda i: (0, 0))],
            out_specs=pl.BlockSpec((TM, Coutp), lambda i: (i, 0)),
        ),
        compiler_params=pltpu.CompilerParams(
            dimension_semantics=("parallel",),
            vmem_limit_bytes=_VMEM_LIMIT),
    )(conv_flat, scale, shift)

    # crop padding / channel padding; optionally skip the NCDHW transpose
    # (the review notes the final transpose is an extra HBM pass — callers
    # that accept channels-last can set channels_last=True).
    out = out_flat.reshape(N, D, rows, Coutp)[:, :, :HpWp, :Cout]
    out = out.reshape(N, D, Hp, Wp, Cout)[:, :, 1:H + 1, 1:W + 1, :]
    if channels_last:
        return out                                        # (N, D, H, W, Cout)
    return jnp.transpose(out, (0, 4, 1, 2, 3))            # (N, Cout, D, H, W)


def _reference(x_ncdhw, weight, gamma, beta, eps=1e-5):
    """Pure-JAX fp32 reference (same math, no Pallas) for a correctness check."""
    N, Cin, D, H, W = x_ncdhw.shape
    KS = weight.shape[0]
    Cout = weight.shape[-1]
    x = jnp.transpose(x_ncdhw, (0, 2, 3, 4, 1))
    xp = jnp.pad(x, ((0, 0), (1, 1), (1, 1), (1, 1), (0, 0)))
    cols = []
    for kd in range(KS):
        for kh in range(KS):
            for kw in range(KS):
                cols.append(xp[:, kd:kd + D, kh:kh + H, kw:kw + W, :])
    patches = jnp.concatenate(cols, axis=-1).reshape(N * D * H * W, KS ** 3 * Cin)
    conv = patches @ weight.reshape(KS ** 3 * Cin, Cout)
    mean = conv.mean(axis=0)
    var = conv.var(axis=0)
    y = (conv - mean) / jnp.sqrt(var + eps) * gamma + beta
    y = jnp.maximum(y, 0.0)
    return y.reshape(N, D, H, W, Cout).transpose(0, 4, 1, 2, 3)


if __name__ == "__main__":
    # small shapes consistent with the module: batch=2, inc=4, outc=8, spatial=8
    N, Cin, Cout, D, H, W = 2, 4, 8, 8, 8, 8
    KS = 3

    key = jax.random.PRNGKey(0)
    kx, kw = jax.random.split(key)
    x = jax.random.normal(kx, (N, Cin, D, H, W), dtype=jnp.float32)
    weight = 0.1 * jax.random.normal(kw, (KS, KS, KS, Cin, Cout), dtype=jnp.float32)
    gamma = jnp.ones((Cout,), dtype=jnp.float32)   # nn.BatchNorm default init
    beta = jnp.zeros((Cout,), dtype=jnp.float32)

    ref = _reference(x, weight, gamma, beta)

    # fp32 MXU operands + fp32 intermediate: exactness check of the algorithm.
    fwd_f32 = jax.jit(functools.partial(basic_convolution_block,
                                        mxu_dtype=jnp.float32))
    out_f32 = jax.block_until_ready(fwd_f32(x, weight, gamma, beta))
    assert out_f32.shape == (N, Cout, D, H, W)
    assert bool(jnp.allclose(out_f32, ref, atol=1e-4, rtol=1e-4))

    # bf16 storage / MXU operands (fp32 accumulate) — recommended on v6e/v7x.
    # bf16 rounding of the conv intermediate slightly perturbs values vs the
    # fp32 PyTorch-parity reference; tolerance is loosened accordingly.
    fwd_bf16 = jax.jit(functools.partial(basic_convolution_block,
                                         mxu_dtype=jnp.bfloat16))
    out_bf16 = jax.block_until_ready(fwd_bf16(x, weight, gamma, beta))
    assert out_bf16.shape == (N, Cout, D, H, W)
    assert bool(jnp.allclose(out_bf16, ref, atol=5e-2, rtol=5e-2))

    print("KERNEL_OK")
</pallas_src>

<mosaic_0001>
module attributes {stable_mosaic.version = 11 : i64} {
  func.func @_conv_stats_kernel(%arg0: i32, %arg1: i32, %arg2: i32, %arg3: memref<1x1x1x126x4xf32, #tpu.memory_space<vmem>>, %arg4: memref<1x1x1x126x4xf32, #tpu.memory_space<vmem>>, %arg5: memref<1x1x1x126x4xf32, #tpu.memory_space<vmem>>, %arg6: memref<108x128xf32, #tpu.memory_space<vmem>>, %arg7: memref<104x1xf32, #tpu.memory_space<vmem>>, %arg8: memref<1x1x104x128xf32, #tpu.memory_space<vmem>>, %arg9: memref<1x1x1x2x128xf32, #tpu.memory_space<vmem>>) attributes {dimension_semantics = [#tpu.dimension_semantics<parallel>, #tpu.dimension_semantics<parallel>, #tpu.dimension_semantics<parallel>], iteration_bounds = array<i64: 2, 8, 1>, scalar_prefetch = 0 : i64, scratch_operands = 0 : i64, tpu.core_type = #tpu.core_type<tc>, window_params = [{transform_indices = @transform_0, window_bounds = array<i64: 1, 1, 1, 126, 4>}, {transform_indices = @transform_1, window_bounds = array<i64: 1, 1, 1, 126, 4>}, {transform_indices = @transform_2, window_bounds = array<i64: 1, 1, 1, 126, 4>}, {pipeline_mode = #tpu.pipeline_mode<synchronous>, transform_indices = @transform_3, window_bounds = array<i64: 108, 128>}, {transform_indices = @transform_4, window_bounds = array<i64: 104, 1>}, {transform_indices = @transform_5, window_bounds = array<i64: 1, 1, 104, 128>}, {transform_indices = @transform_6, window_bounds = array<i64: 1, 1, 1, 2, 128>}]} {
    %c0 = arith.constant 0 : index
    %c0_0 = arith.constant 0 : index
    %c0_1 = arith.constant 0 : index
    %c0_2 = arith.constant 0 : index
    %c0_3 = arith.constant 0 : index
    %0 = vector.load %arg3[%c0, %c0_0, %c0_1, %c0_2, %c0_3] : memref<1x1x1x126x4xf32, #tpu.memory_space<vmem>>, vector<1x1x1x104x4xf32>
    %1 = vector.shape_cast %0 : vector<1x1x1x104x4xf32> to vector<104x4xf32>
    %c0_4 = arith.constant 0 : index
    %c0_5 = arith.constant 0 : index
    %c0_6 = arith.constant 0 : index
    %c1 = arith.constant 1 : index
    %c0_7 = arith.constant 0 : index
    %2 = vector.load %arg3[%c0_4, %c0_5, %c0_6, %c1, %c0_7] : memref<1x1x1x126x4xf32, #tpu.memory_space<vmem>>, vector<1x1x1x104x4xf32>
    %3 = vector.shape_cast %2 : vector<1x1x1x104x4xf32> to vector<104x4xf32>
    %c0_8 = arith.constant 0 : index
    %c0_9 = arith.constant 0 : index
    %c0_10 = arith.constant 0 : index
    %c2 = arith.constant 2 : index
    %c0_11 = arith.constant 0 : index
    %4 = vector.load %arg3[%c0_8, %c0_9, %c0_10, %c2, %c0_11] : memref<1x1x1x126x4xf32, #tpu.memory_space<vmem>>, vector<1x1x1x104x4xf32>
    %5 = vector.shape_cast %4 : vector<1x1x1x104x4xf32> to vector<104x4xf32>
    %c0_12 = arith.constant 0 : index
    %c0_13 = arith.constant 0 : index
    %c0_14 = arith.constant 0 : index
    %c10 = arith.constant 10 : index
    %c0_15 = arith.constant 0 : index
    %6 = vector.load %arg3[%c0_12, %c0_13, %c0_14, %c10, %c0_15] : memref<1x1x1x126x4xf32, #tpu.memory_space<vmem>>, vector<1x1x1x104x4xf32>
    %7 = vector.shape_cast %6 : vector<1x1x1x104x4xf32> to vector<104x4xf32>
    %c0_16 = arith.constant 0 : index
    %c0_17 = arith.constant 0 : index
    %c0_18 = arith.constant 0 : index
    %c11 = arith.constant 11 : index
    %c0_19 = arith.constant 0 : index
    %8 = vector.load %arg3[%c0_16, %c0_17, %c0_18, %c11, %c0_19] : memref<1x1x1x126x4xf32, #tpu.memory_space<vmem>>, vector<1x1x1x104x4xf32>
    %9 = vector.shape_cast %8 : vector<1x1x1x104x4xf32> to vector<104x4xf32>
    %c0_20 = arith.constant 0 : index
    %c0_21 = arith.constant 0 : index
    %c0_22 = arith.constant 0 : index
    %c12 = arith.constant 12 : index
    %c0_23 = arith.constant 0 : index
    %10 = vector.load %arg3[%c0_20, %c0_21, %c0_22, %c12, %c0_23] : memref<1x1x1x126x4xf32, #tpu.memory_space<vmem>>, vector<1x1x1x104x4xf32>
    %11 = vector.shape_cast %10 : vector<1x1x1x104x4xf32> to vector<104x4xf32>
    %c0_24 = arith.constant 0 : index
    %c0_25 = arith.constant 0 : index
    %c0_26 = arith.constant 0 : index
    %c20 = arith.constant 20 : index
    %c0_27 = arith.constant 0 : index
    %12 = vector.load %arg3[%c0_24, %c0_25, %c0_26, %c20, %c0_27] : memref<1x1x1x126x4xf32, #tpu.memory_space<vmem>>, vector<1x1x1x104x4xf32>
    %13 = vector.shape_cast %12 : vector<1x1x1x104x4xf32> to vector<104x4xf32>
    %c0_28 = arith.constant 0 : index
    %c0_29 = arith.constant 0 : index
    %c0_30 = arith.constant 0 : index
    %c21 = arith.constant 21 : index
    %c0_31 = arith.constant 0 : index
    %14 = vector.load %arg3[%c0_28, %c0_29, %c0_30, %c21, %c0_31] : memref<1x1x1x126x4xf32, #tpu.memory_space<vmem>>, vector<1x1x1x104x4xf32>
    %15 = vector.shape_cast %14 : vector<1x1x1x104x4xf32> to vector<104x4xf32>
    %c0_32 = arith.constant 0 : index
    %c0_33 = arith.constant 0 : index
    %c0_34 = arith.constant 0 : index
    %c22 = arith.constant 22 : index
    %c0_35 = arith.constant 0 : index
    %16 = vector.load %arg3[%c0_32, %c0_33, %c0_34, %c22, %c0_35] : memref<1x1x1x126x4xf32, #tpu.memory_space<vmem>>, vector<1x1x1x104x4xf32>
    %17 = vector.shape_cast %16 : vector<1x1x1x104x4xf32> to vector<104x4xf32>
    %c0_36 = arith.constant 0 : index
    %c0_37 = arith.constant 0 : index
    %c0_38 = arith.constant 0 : index
    %c0_39 = arith.constant 0 : index
    %c0_40 = arith.constant 0 : index
    %18 = vector.load %arg4[%c0_36, %c0_37, %c0_38, %c0_39, %c0_40] : memref<1x1x1x126x4xf32, #tpu.memory_space<vmem>>, vector<1x1x1x104x4xf32>
    %19 = vector.shape_cast %18 : vector<1x1x1x104x4xf32> to vector<104x4xf32>
    %c0_41 = arith.constant 0 : index
    %c0_42 = arith.constant 0 : index
    %c0_43 = arith.constant 0 : index
    %c1_44 = arith.constant 1 : index
    %c0_45 = arith.constant 0 : index
    %20 = vector.load %arg4[%c0_41, %c0_42, %c0_43, %c1_44, %c0_45] : memref<1x1x1x126x4xf32, #tpu.memory_space<vmem>>, vector<1x1x1x104x4xf32>
    %21 = vector.shape_cast %20 : vector<1x1x1x104x4xf32> to vector<104x4xf32>
    %c0_46 = arith.constant 0 : index
    %c0_47 = arith.constant 0 : index
    %c0_48 = arith.constant 0 : index
    %c2_49 = arith.constant 2 : index
    %c0_50 = arith.constant 0 : index
    %22 = vector.load %arg4[%c0_46, %c0_47, %c0_48, %c2_49, %c0_50] : memref<1x1x1x126x4xf32, #tpu.memory_space<vmem>>, vector<1x1x1x104x4xf32>
    %23 = vector.shape_cast %22 : vector<1x1x1x104x4xf32> to vector<104x4xf32>
    %c0_51 = arith.constant 0 : index
    %c0_52 = arith.constant 0 : index
    %c0_53 = arith.constant 0 : index
    %c10_54 = arith.constant 10 : index
    %c0_55 = arith.constant 0 : index
    %24 = vector.load %arg4[%c0_51, %c0_52, %c0_53, %c10_54, %c0_55] : memref<1x1x1x126x4xf32, #tpu.memory_space<vmem>>, vector<1x1x1x104x4xf32>
    %25 = vector.shape_cast %24 : vector<1x1x1x104x4xf32> to vector<104x4xf32>
    %c0_56 = arith.constant 0 : index
    %c0_57 = arith.constant 0 : index
    %c0_58 = arith.constant 0 : index
    %c11_59 = arith.constant 11 : index
    %c0_60 = arith.constant 0 : index
    %26 = vector.load %arg4[%c0_56, %c0_57, %c0_58, %c11_59, %c0_60] : memref<1x1x1x126x4xf32, #tpu.memory_space<vmem>>, vector<1x1x1x104x4xf32>
    %27 = vector.shape_cast %26 : vector<1x1x1x104x4xf32> to vector<104x4xf32>
    %c0_61 = arith.constant 0 : index
    %c0_62 = arith.constant 0 : index
    %c0_63 = arith.constant 0 : index
    %c12_64 = arith.constant 12 : index
    %c0_65 = arith.constant 0 : index
    %28 = vector.load %arg4[%c0_61, %c0_62, %c0_63, %c12_64, %c0_65] : memref<1x1x1x126x4xf32, #tpu.memory_space<vmem>>, vector<1x1x1x104x4xf32>
    %29 = vector.shape_cast %28 : vector<1x1x1x104x4xf32> to vector<104x4xf32>
    %c0_66 = arith.constant 0 : index
    %c0_67 = arith.constant 0 : index
    %c0_68 = arith.constant 0 : index
    %c20_69 = arith.constant 20 : index
    %c0_70 = arith.constant 0 : index
    %30 = vector.load %arg4[%c0_66, %c0_67, %c0_68, %c20_69, %c0_70] : memref<1x1x1x126x4xf32, #tpu.memory_space<vmem>>, vector<1x1x1x104x4xf32>
    %31 = vector.shape_cast %30 : vector<1x1x1x104x4xf32> to vector<104x4xf32>
    %c0_71 = arith.constant 0 : index
    %c0_72 = arith.constant 0 : index
    %c0_73 = arith.constant 0 : index
    %c21_74 = arith.constant 21 : index
    %c0_75 = arith.constant 0 : index
    %32 = vector.load %arg4[%c0_71, %c0_72, %c0_73, %c21_74, %c0_75] : memref<1x1x1x126x4xf32, #tpu.memory_space<vmem>>, vector<1x1x1x104x4xf32>
    %33 = vector.shape_cast %32 : vector<1x1x1x104x4xf32> to vector<104x4xf32>
    %c0_76 = arith.constant 0 : index
    %c0_77 = arith.constant 0 : index
    %c0_78 = arith.constant 0 : index
    %c22_79 = arith.constant 22 : index
    %c0_80 = arith.constant 0 : index
    %34 = vector.load %arg4[%c0_76, %c0_77, %c0_78, %c22_79, %c0_80] : memref<1x1x1x126x4xf32, #tpu.memory_space<vmem>>, vector<1x1x1x104x4xf32>
    %35 = vector.shape_cast %34 : vector<1x1x1x104x4xf32> to vector<104x4xf32>
    %c0_81 = arith.constant 0 : index
    %c0_82 = arith.constant 0 : index
    %c0_83 = arith.constant 0 : index
    %c0_84 = arith.constant 0 : index
    %c0_85 = arith.constant 0 : index
    %36 = vector.load %arg5[%c0_81, %c0_82, %c0_83, %c0_84, %c0_85] : memref<1x1x1x126x4xf32, #tpu.memory_space<vmem>>, vector<1x1x1x104x4xf32>
    %37 = vector.shape_cast %36 : vector<1x1x1x104x4xf32> to vector<104x4xf32>
    %c0_86 = arith.constant 0 : index
    %c0_87 = arith.constant 0 : index
    %c0_88 = arith.constant 0 : index
    %c1_89 = arith.constant 1 : index
    %c0_90 = arith.constant 0 : index
    %38 = vector.load %arg5[%c0_86, %c0_87, %c0_88, %c1_89, %c0_90] : memref<1x1x1x126x4xf32, #tpu.memory_space<vmem>>, vector<1x1x1x104x4xf32>
    %39 = vector.shape_cast %38 : vector<1x1x1x104x4xf32> to vector<104x4xf32>
    %c0_91 = arith.constant 0 : index
    %c0_92 = arith.constant 0 : index
    %c0_93 = arith.constant 0 : index
    %c2_94 = arith.constant 2 : index
    %c0_95 = arith.constant 0 : index
    %40 = vector.load %arg5[%c0_91, %c0_92, %c0_93, %c2_94, %c0_95] : memref<1x1x1x126x4xf32, #tpu.memory_space<vmem>>, vector<1x1x1x104x4xf32>
    %41 = vector.shape_cast %40 : vector<1x1x1x104x4xf32> to vector<104x4xf32>
    %c0_96 = arith.constant 0 : index
    %c0_97 = arith.constant 0 : index
    %c0_98 = arith.constant 0 : index
    %c10_99 = arith.constant 10 : index
    %c0_100 = arith.constant 0 : index
    %42 = vector.load %arg5[%c0_96, %c0_97, %c0_98, %c10_99, %c0_100] : memref<1x1x1x126x4xf32, #tpu.memory_space<vmem>>, vector<1x1x1x104x4xf32>
    %43 = vector.shape_cast %42 : vector<1x1x1x104x4xf32> to vector<104x4xf32>
    %c0_101 = arith.constant 0 : index
    %c0_102 = arith.constant 0 : index
    %c0_103 = arith.constant 0 : index
    %c11_104 = arith.constant 11 : index
    %c0_105 = arith.constant 0 : index
    %44 = vector.load %arg5[%c0_101, %c0_102, %c0_103, %c11_104, %c0_105] : memref<1x1x1x126x4xf32, #tpu.memory_space<vmem>>, vector<1x1x1x104x4xf32>
    %45 = vector.shape_cast %44 : vector<1x1x1x104x4xf32> to vector<104x4xf32>
    %c0_106 = arith.constant 0 : index
    %c0_107 = arith.constant 0 : index
    %c0_108 = arith.constant 0 : index
    %c12_109 = arith.constant 12 : index
    %c0_110 = arith.constant 0 : index
    %46 = vector.load %arg5[%c0_106, %c0_107, %c0_108, %c12_109, %c0_110] : memref<1x1x1x126x4xf32, #tpu.memory_space<vmem>>, vector<1x1x1x104x4xf32>
    %47 = vector.shape_cast %46 : vector<1x1x1x104x4xf32> to vector<104x4xf32>
    %c0_111 = arith.constant 0 : index
    %c0_112 = arith.constant 0 : index
    %c0_113 = arith.constant 0 : index
    %c20_114 = arith.constant 20 : index
    %c0_115 = arith.constant 0 : index
    %48 = vector.load %arg5[%c0_111, %c0_112, %c0_113, %c20_114, %c0_115] : memref<1x1x1x126x4xf32, #tpu.memory_space<vmem>>, vector<1x1x1x104x4xf32>
    %49 = vector.shape_cast %48 : vector<1x1x1x104x4xf32> to vector<104x4xf32>
    %c0_116 = arith.constant 0 : index
    %c0_117 = arith.constant 0 : index
    %c0_118 = arith.constant 0 : index
    %c21_119 = arith.constant 21 : index
    %c0_120 = arith.constant 0 : index
    %50 = vector.load %arg5[%c0_116, %c0_117, %c0_118, %c21_119, %c0_120] : memref<1x1x1x126x4xf32, #tpu.memory_space<vmem>>, vector<1x1x1x104x4xf32>
    %51 = vector.shape_cast %50 : vector<1x1x1x104x4xf32> to vector<104x4xf32>
    %c0_121 = arith.constant 0 : index
    %c0_122 = arith.constant 0 : index
    %c0_123 = arith.constant 0 : index
    %c22_124 = arith.constant 22 : index
    %c0_125 = arith.constant 0 : index
    %52 = vector.load %arg5[%c0_121, %c0_122, %c0_123, %c22_124, %c0_125] : memref<1x1x1x126x4xf32, #tpu.memory_space<vmem>>, vector<1x1x1x104x4xf32>
    %53 = vector.shape_cast %52 : vector<1x1x1x104x4xf32> to vector<104x4xf32>
    %54 = tpu.concatenate %1, %3, %5, %7, %9, %11, %13, %15, %17, %19, %21, %23, %25, %27, %29, %31 in 1 : vector<104x4xf32>, vector<104x4xf32>, vector<104x4xf32>, vector<104x4xf32>, vector<104x4xf32>, vector<104x4xf32>, vector<104x4xf32>, vector<104x4xf32>, vector<104x4xf32>, vector<104x4xf32>, vector<104x4xf32>, vector<104x4xf32>, vector<104x4xf32>, vector<104x4xf32>, vector<104x4xf32>, vector<104x4xf32> -> vector<104x64xf32>
    %55 = tpu.concatenate %33, %35, %37, %39, %41, %43, %45, %47, %49, %51, %53 in 1 : vector<104x4xf32>, vector<104x4xf32>, vector<104x4xf32>, vector<104x4xf32>, vector<104x4xf32>, vector<104x4xf32>, vector<104x4xf32>, vector<104x4xf32>, vector<104x4xf32>, vector<104x4xf32>, vector<104x4xf32> -> vector<104x44xf32>
    %56 = tpu.concatenate %54, %55 in 1 : vector<104x64xf32>, vector<104x44xf32> -> vector<104x108xf32>
    %c0_126 = arith.constant 0 : index
    %c0_127 = arith.constant 0 : index
    %57 = vector.load %arg6[%c0_126, %c0_127] : memref<108x128xf32, #tpu.memory_space<vmem>>, vector<108x128xf32>
    %cst = arith.constant dense<0.000000e+00> : vector<104x128xf32>
    %58 = tpu.matmul %56, %57, %cst {dimension_numbers = #tpu.dot_dimension_numbers<[1], [0], [0], [1], [0, 0, 1, 1], [], []>} : vector<104x108xf32>, vector<108x128xf32>, vector<104x128xf32> -> vector<104x128xf32>
    %c0_128 = arith.constant 0 : index
    %c0_129 = arith.constant 0 : index
    %c0_130 = arith.constant 0 : index
    %c0_131 = arith.constant 0 : index
    %59 = vector.load %arg8[%c0_128, %c0_129, %c0_130, %c0_131] : memref<1x1x104x128xf32, #tpu.memory_space<vmem>>, vector<1x1x104x128xf32>
    %60 = vector.shape_cast %59 : vector<1x1x104x128xf32> to vector<104x128xf32>
    %61 = vector.shape_cast %58 : vector<104x128xf32> to vector<1x1x104x128xf32>
    tpu.vector_store %arg8[%c0_128, %c0_129, %c0_130, %c0_131], %61 {strides = array<i32>} : memref<1x1x104x128xf32, #tpu.memory_space<vmem>>, vector<1x1x104x128xf32>,
    %c0_132 = arith.constant 0 : index
    %c0_133 = arith.constant 0 : index
    %62 = vector.load %arg7[%c0_132, %c0_133] : memref<104x1xf32, #tpu.memory_space<vmem>>, vector<104x1xf32>
    %63 = vector.broadcast %62 : vector<104x1xf32> to vector<104x128xf32>
    %64 = arith.mulf %58, %63 : vector<104x128xf32>
    %cst_134 = arith.constant dense<0.000000e+00> : vector<128xf32>
    %65 = vector.multi_reduction <add>, %64, %cst_134 [0] : vector<104x128xf32> to vector<128xf32>
    %66 = vector.shape_cast %65 : vector<128xf32> to vector<1x128xf32>
    %c0_135 = arith.constant 0 : index
    %c0_136 = arith.constant 0 : index
    %c0_137 = arith.constant 0 : index
    %c0_138 = arith.constant 0 : index
    %c0_139 = arith.constant 0 : index
    %67 = vector.load %arg9[%c0_135, %c0_136, %c0_137, %c0_138, %c0_139] : memref<1x1x1x2x128xf32, #tpu.memory_space<vmem>>, vector<1x1x1x1x128xf32>
    %68 = vector.shape_cast %67 : vector<1x1x1x1x128xf32> to vector<1x128xf32>
    %69 = vector.shape_cast %66 : vector<1x128xf32> to vector<1x1x1x1x128xf32>
    tpu.vector_store %arg9[%c0_135, %c0_136, %c0_137, %c0_138, %c0_139], %69 {strides = array<i32>} : memref<1x1x1x2x128xf32, #tpu.memory_space<vmem>>, vector<1x1x1x1x128xf32>,
    %70 = arith.mulf %64, %58 : vector<104x128xf32>
    %cst_140 = arith.constant dense<0.000000e+00> : vector<128xf32>
    %71 = vector.multi_reduction <add>, %70, %cst_140 [0] : vector<104x128xf32> to vector<128xf32>
    %72 = vector.shape_cast %71 : vector<128xf32> to vector<1x128xf32>
    %c0_141 = arith.constant 0 : index
    %c0_142 = arith.constant 0 : index
    %c0_143 = arith.constant 0 : index
    %c1_144 = arith.constant 1 : index
    %c0_145 = arith.constant 0 : index
    %73 = vector.load %arg9[%c0_141, %c0_142, %c0_143, %c1_144, %c0_145] : memref<1x1x1x2x128xf32, #tpu.memory_space<vmem>>, vector<1x1x1x1x128xf32>
    %74 = vector.shape_cast %73 : vector<1x1x1x1x128xf32> to vector<1x128xf32>
    %75 = vector.shape_cast %72 : vector<1x128xf32> to vector<1x1x1x1x128xf32>
    tpu.vector_store %arg9[%c0_141, %c0_142, %c0_143, %c1_144, %c0_145], %75 {strides = array<i32>} : memref<1x1x1x2x128xf32, #tpu.memory_space<vmem>>, vector<1x1x1x1x128xf32>,
    return
  }
  func.func @transform_0(%arg0: i32, %arg1: i32, %arg2: i32) -> (i32, i32, i32, i32, i32) {
    %c0_i32 = arith.constant 0 : i32
    %c0_i32_0 = arith.constant 0 : i32
    %c0_i32_1 = arith.constant 0 : i32
    return %arg0, %arg1, %arg2, %c0_i32, %c0_i32_0 : i32, i32, i32, i32, i32
  }
  func.func @transform_1(%arg0: i32, %arg1: i32, %arg2: i32) -> (i32, i32, i32, i32, i32) {
    %c1_i32 = arith.constant 1 : i32
    %0 = arith.addi %arg1, %c1_i32 : i32
    %c0_i32 = arith.constant 0 : i32
    %c0_i32_0 = arith.constant 0 : i32
    %c0_i32_1 = arith.constant 0 : i32
    return %arg0, %0, %arg2, %c0_i32, %c0_i32_0 : i32, i32, i32, i32, i32
  }
  func.func @transform_2(%arg0: i32, %arg1: i32, %arg2: i32) -> (i32, i32, i32, i32, i32) {
    %c2_i32 = arith.constant 2 : i32
    %0 = arith.addi %arg1, %c2_i32 : i32
    %c0_i32 = arith.constant 0 : i32
    %c0_i32_0 = arith.constant 0 : i32
    %c0_i32_1 = arith.constant 0 : i32
    return %arg0, %0, %arg2, %c0_i32, %c0_i32_0 : i32, i32, i32, i32, i32
  }
  func.func @transform_3(%arg0: i32, %arg1: i32, %arg2: i32) -> (i32, i32) {
    %c0_i32 = arith.constant 0 : i32
    %c0_i32_0 = arith.constant 0 : i32
    %c0_i32_1 = arith.constant 0 : i32
    return %c0_i32, %c0_i32_0 : i32, i32
  }
  func.func @transform_4(%arg0: i32, %arg1: i32, %arg2: i32) -> (i32, i32) {
    %c0_i32 = arith.constant 0 : i32
    %c0_i32_0 = arith.constant 0 : i32
    return %arg2, %c0_i32 : i32, i32
  }
  func.func @transform_5(%arg0: i32, %arg1: i32, %arg2: i32) -> (i32, i32, i32, i32) {
    %c0_i32 = arith.constant 0 : i32
    %c0_i32_0 = arith.constant 0 : i32
    return %arg0, %arg1, %arg2, %c0_i32 : i32, i32, i32, i32
  }
  func.func @transform_6(%arg0: i32, %arg1: i32, %arg2: i32) -> (i32, i32, i32, i32, i32) {
    %c0_i32 = arith.constant 0 : i32
    %c0_i32_0 = arith.constant 0 : i32
    %c0_i32_1 = arith.constant 0 : i32
    return %arg0, %arg1, %arg2, %c0_i32, %c0_i32_0 : i32, i32, i32, i32, i32
  }
}

module attributes {stable_mosaic.version = 11 : i64} {
  func.func @_bn_relu_kernel(%arg0: i32, %arg1: memref<1664x128xf32, #tpu.memory_space<vmem>>, %arg2: memref<1x128xf32, #tpu.memory_space<vmem>>, %arg3: memref<1x128xf32, #tpu.memory_space<vmem>>, %arg4: memref<1664x128xf32, #tpu.memory_space<vmem>>) attributes {dimension_semantics = [#tpu.dimension_semantics<parallel>], iteration_bounds = array<i64: 1>, scalar_prefetch = 0 : i64, scratch_operands = 0 : i64, tpu.core_type = #tpu.core_type<tc>, window_params = [{transform_indices = @transform_0, window_bounds = array<i64: 1664, 128>}, {pipeline_mode = #tpu.pipeline_mode<synchronous>, transform_indices = @transform_1, window_bounds = array<i64: 1, 128>}, {pipeline_mode = #tpu.pipeline_mode<synchronous>, transform_indices = @transform_2, window_bounds = array<i64: 1, 128>}, {transform_indices = @transform_3, window_bounds = array<i64: 1664, 128>}]} {
    %c0 = arith.constant 0 : index
    %c0_0 = arith.constant 0 : index
    %0 = vector.load %arg1[%c0, %c0_0] : memref<1664x128xf32, #tpu.memory_space<vmem>>, vector<1664x128xf32>
    %c0_1 = arith.constant 0 : index
    %c0_2 = arith.constant 0 : index
    %1 = vector.load %arg2[%c0_1, %c0_2] : memref<1x128xf32, #tpu.memory_space<vmem>>, vector<1x128xf32>
    %2 = vector.broadcast %1 : vector<1x128xf32> to vector<1664x128xf32>
    %3 = arith.mulf %0, %2 : vector<1664x128xf32>
    %c0_3 = arith.constant 0 : index
    %c0_4 = arith.constant 0 : index
    %4 = vector.load %arg3[%c0_3, %c0_4] : memref<1x128xf32, #tpu.memory_space<vmem>>, vector<1x128xf32>
    %5 = vector.broadcast %4 : vector<1x128xf32> to vector<1664x128xf32>
    %6 = arith.addf %3, %5 : vector<1664x128xf32>
    %cst = arith.constant 0.000000e+00 : f32
    %7 = vector.broadcast %cst : f32 to vector<1664x128xf32>
    %8 = arith.maximumf %6, %7 : vector<1664x128xf32>
    %c0_5 = arith.constant 0 : index
    %c0_6 = arith.constant 0 : index
    %9 = vector.load %arg4[%c0_5, %c0_6] : memref<1664x128xf32, #tpu.memory_space<vmem>>, vector<1664x128xf32>
    tpu.vector_store %arg4[%c0_5, %c0_6], %8 {strides = array<i32>} : memref<1664x128xf32, #tpu.memory_space<vmem>>, vector<1664x128xf32>,
    return
  }
  func.func @transform_0(%arg0: i32) -> (i32, i32) {
    %c0_i32 = arith.constant 0 : i32
    %c0_i32_0 = arith.constant 0 : i32
    return %arg0, %c0_i32 : i32, i32
  }
  func.func @transform_1(%arg0: i32) -> (i32, i32) {
    %c0_i32 = arith.constant 0 : i32
    %c0_i32_0 = arith.constant 0 : i32
    %c0_i32_1 = arith.constant 0 : i32
    return %c0_i32, %c0_i32_0 : i32, i32
  }
  func.func @transform_2(%arg0: i32) -> (i32, i32) {
    %c0_i32 = arith.constant 0 : i32
    %c0_i32_0 = arith.constant 0 : i32
    %c0_i32_1 = arith.constant 0 : i32
    return %c0_i32, %c0_i32_0 : i32, i32
  }
  func.func @transform_3(%arg0: i32) -> (i32, i32) {
    %c0_i32 = arith.constant 0 : i32
    %c0_i32_0 = arith.constant 0 : i32
    return %arg0, %c0_i32 : i32, i32
  }
}

</mosaic_0001>

<llo_original>
// kernel: basic_convolution_block.3
$region0: #{basic_convolution_block.3}
  #allocation0 [shape = 'u32[]', space=smem, size = 0x4, offset = 0x4, fixed_abs, tag = 'smem constant byte address 0x4 - core index']
  #allocation1 [shape = 'u32[144,128]{1,0:T(1,128)}', space=vmem, size = 0x12000, scoped, tag = 'internal scratch']
  %s0 = inlined_call_operand.vmem [shape: f32[1664,128], index: 0, kind: input, shape index: {}]
  %s1 = inlined_call_operand.vmem [shape: f32[1,128], index: 1, kind: input, shape index: {}]
  %s2 = inlined_call_operand.vmem [shape: f32[1,128], index: 2, kind: input, shape index: {}]
  %s3 = inlined_call_operand.vmem [shape: f32[1664,128], index: 3, kind: output, shape index: {}]
  %s4 = sld [smem:[#allocation0]]
  $region22: #{basic_convolution_block.3} parent=0
    _
  %s6 = ssub.s32 1, %s4
  %s7 = scalar_select 0, %s6, %s4
  // Predicated region
  $region2: #{basic_convolution_block.3} parent=0 // pred_check
    _
  $region3: #{basic_convolution_block.3} parent=0 // pred_check_branch
    %9 = sbr.rel (0) target = $region5
  $region4: #{basic_convolution_block.3} parent=0 // pred_region
    _
  $region5: #{basic_convolution_block.3} parent=0 // pred_fallthru
    _
  // Predicated region
  $region6: #{basic_convolution_block.3} parent=0 // pred_check
    _
  $region7: #{basic_convolution_block.3} parent=0 // pred_check_branch
    %11 = sbr.rel (0) target = $region9
  $region8: #{basic_convolution_block.3} parent=0 // pred_region
    _
  $region9: #{basic_convolution_block.3} parent=0 // pred_fallthru
    _
  // Predicated region
  $region10: #{basic_convolution_block.3} parent=0 // pred_check
    _
  $region11: #{basic_convolution_block.3} parent=0 // pred_check_branch
    %13 = sbr.rel (0) target = $region13
  $region12: #{basic_convolution_block.3} parent=0 // pred_region
    _
  $region13: #{basic_convolution_block.3} parent=0 // pred_fallthru
    _
  %v14 = vld [vmem:[%s0] sm:$0xff]
  %v15 = vld [vmem:[%s0 + $0x8] sm:$0xff]
  %v16 = vld [vmem:[%s0 + $0x10] sm:$0xff]
  %v17 = vld [vmem:[%s0 + $0x18] sm:$0xff]
  %v18 = vld [vmem:[%s0 + $0x20] sm:$0xff]
  %v19 = vld [vmem:[%s0 + $0x28] sm:$0xff]
  %v20 = vld [vmem:[%s0 + $0x30] sm:$0xff]
  %v21 = vld [vmem:[%s0 + $0x38] sm:$0xff]
  %v22 = vld [vmem:[%s0 + $0x40] sm:$0xff]
  %v23 = vld [vmem:[%s0 + $0x48] sm:$0xff]
  %v24 = vld [vmem:[%s0 + $0x50] sm:$0xff]
  %v25 = vld [vmem:[%s0 + $0x58] sm:$0xff]
  %v26 = vld [vmem:[%s0 + $0x60] sm:$0xff]
  %v27 = vld [vmem:[%s0 + $0x68] sm:$0xff]
  %v28 = vld [vmem:[%s0 + $0x70] sm:$0xff]
  %v29 = vld [vmem:[%s0 + $0x78] sm:$0xff]
  %v30 = vld [vmem:[%s0 + $0x80] sm:$0xff]
  %v31 = vld [vmem:[%s0 + $0x88] sm:$0xff]
  %v32 = vld [vmem:[%s0 + $0x90] sm:$0xff]
  %v33 = vld [vmem:[%s0 + $0x98] sm:$0xff]
  %v34 = vld [vmem:[%s0 + $0xa0] sm:$0xff]
  %v35 = vld [vmem:[%s0 + $0xa8] sm:$0xff]
  %v36 = vld [vmem:[%s0 + $0xb0] sm:$0xff]
  %v37 = vld [vmem:[%s0 + $0xb8] sm:$0xff]
  %v38 = vld [vmem:[%s0 + $0xc0] sm:$0xff]
  %v39 = vld [vmem:[%s0 + $0xc8] sm:$0xff]
  %v40 = vld [vmem:[%s0 + $0xd0] sm:$0xff]
  %v41 = vld [vmem:[%s0 + $0xd8] sm:$0xff]
  %v42 = vld [vmem:[%s0 + $0xe0] sm:$0xff]
  %v43 = vld [vmem:[%s0 + $0xe8] sm:$0xff]
  %v44 = vld [vmem:[%s0 + $0xf0] sm:$0xff]
  %v45 = vld [vmem:[%s0 + $0xf8] sm:$0xff]
  %v46 = vld [vmem:[%s0 + $0x100] sm:$0xff]
  %v47 = vld [vmem:[%s0 + $0x108] sm:$0xff]
  %v48 = vld [vmem:[%s0 + $0x110] sm:$0xff]
  %v49 = vld [vmem:[%s0 + $0x118] sm:$0xff]
  %v50 = vld [vmem:[%s0 + $0x120] sm:$0xff]
  %v51 = vld [vmem:[%s0 + $0x128] sm:$0xff]
  %v52 = vld [vmem:[%s0 + $0x130] sm:$0xff]
  %v53 = vld [vmem:[%s0 + $0x138] sm:$0xff]
  %v54 = vld [vmem:[%s0 + $0x140] sm:$0xff]
  %v55 = vld [vmem:[%s0 + $0x148] sm:$0xff]
  %v56 = vld [vmem:[%s0 + $0x150] sm:$0xff]
  %v57 = vld [vmem:[%s0 + $0x158] sm:$0xff]
  %v58 = vld [vmem:[%s0 + $0x160] sm:$0xff]
  %v59 = vld [vmem:[%s0 + $0x168] sm:$0xff]
  %v60 = vld [vmem:[%s0 + $0x170] sm:$0xff]
  %v61 = vld [vmem:[%s0 + $0x178] sm:$0xff]
  %v62 = vld [vmem:[%s0 + $0x180] sm:$0xff]
  %v63 = vld [vmem:[%s0 + $0x188] sm:$0xff]
  %v64 = vld [vmem:[%s0 + $0x190] sm:$0xff]
  %v65 = vld [vmem:[%s0 + $0x198] sm:$0xff]
  %v66 = vld [vmem:[%s0 + $0x1a0] sm:$0xff]
  %v67 = vld [vmem:[%s0 + $0x1a8] sm:$0xff]
  %v68 = vld [vmem:[%s0 + $0x1b0] sm:$0xff]
  %v69 = vld [vmem:[%s0 + $0x1b8] sm:$0xff]
  %v70 = vld [vmem:[%s0 + $0x1c0] sm:$0xff]
  %v71 = vld [vmem:[%s0 + $0x1c8] sm:$0xff]
  %v72 = vld [vmem:[%s0 + $0x1d0] sm:$0xff]
  %v73 = vld [vmem:[%s0 + $0x1d8] sm:$0xff]
  %v74 = vld [vmem:[%s0 + $0x1e0] sm:$0xff]
  %v75 = vld [vmem:[%s0 + $0x1e8] sm:$0xff]
  %v76 = vld [vmem:[%s0 + $0x1f0] sm:$0xff]
  %v77 = vld [vmem:[%s0 + $0x1f8] sm:$0xff]
  %v78 = vld [vmem:[%s0 + $0x200] sm:$0xff]
  %v79 = vld [vmem:[%s0 + $0x208] sm:$0xff]
  %v80 = vld [vmem:[%s0 + $0x210] sm:$0xff]
  %v81 = vld [vmem:[%s0 + $0x218] sm:$0xff]
  %v82 = vld [vmem:[%s0 + $0x220] sm:$0xff]
  %v83 = vld [vmem:[%s0 + $0x228] sm:$0xff]
  %v84 = vld [vmem:[%s0 + $0x230] sm:$0xff]
  %v85 = vld [vmem:[%s0 + $0x238] sm:$0xff]
  %v86 = vld [vmem:[%s0 + $0x240] sm:$0xff]
  %v87 = vld [vmem:[%s0 + $0x248] sm:$0xff]
  %v88 = vld [vmem:[%s0 + $0x250] sm:$0xff]
  %v89 = vld [vmem:[%s0 + $0x258] sm:$0xff]
  %v90 = vld [vmem:[%s0 + $0x260] sm:$0xff]
  %v91 = vld [vmem:[%s0 + $0x268] sm:$0xff]
  %v92 = vld [vmem:[%s0 + $0x270] sm:$0xff]
  %v93 = vld [vmem:[%s0 + $0x278] sm:$0xff]
  %v94 = vld [vmem:[%s0 + $0x280] sm:$0xff]
  %v95 = vld [vmem:[%s0 + $0x288] sm:$0xff]
  %v96 = vld [vmem:[%s0 + $0x290] sm:$0xff]
  %v97 = vld [vmem:[%s0 + $0x298] sm:$0xff]
  %v98 = vld [vmem:[%s0 + $0x2a0] sm:$0xff]
  %v99 = vld [vmem:[%s0 + $0x2a8] sm:$0xff]
  %v100 = vld [vmem:[%s0 + $0x2b0] sm:$0xff]
  %v101 = vld [vmem:[%s0 + $0x2b8] sm:$0xff]
  %v102 = vld [vmem:[%s0 + $0x2c0] sm:$0xff]
  %v103 = vld [vmem:[%s0 + $0x2c8] sm:$0xff]
  %v104 = vld [vmem:[%s0 + $0x2d0] sm:$0xff]
  %v105 = vld [vmem:[%s0 + $0x2d8] sm:$0xff]
  %v106 = vld [vmem:[%s0 + $0x2e0] sm:$0xff]
  %v107 = vld [vmem:[%s0 + $0x2e8] sm:$0xff]
  %v108 = vld [vmem:[%s0 + $0x2f0] sm:$0xff]
  %v109 = vld [vmem:[%s0 + $0x2f8] sm:$0xff]
  %v110 = vld [vmem:[%s0 + $0x300] sm:$0xff]
  %v111 = vld [vmem:[%s0 + $0x308] sm:$0xff]
  %v112 = vld [vmem:[%s0 + $0x310] sm:$0xff]
  %v113 = vld [vmem:[%s0 + $0x318] sm:$0xff]
  %v114 = vld [vmem:[%s0 + $0x320] sm:$0xff]
  %v115 = vld [vmem:[%s0 + $0x328] sm:$0xff]
  %v116 = vld [vmem:[%s0 + $0x330] sm:$0xff]
  %v117 = vld [vmem:[%s0 + $0x338] sm:$0xff]
  %v118 = vld [vmem:[%s0 + $0x340] sm:$0xff]
  %v119 = vld [vmem:[%s0 + $0x348] sm:$0xff]
  %v120 = vld [vmem:[%s0 + $0x350] sm:$0xff]
  %v121 = vld [vmem:[%s0 + $0x358] sm:$0xff]
  %v122 = vld [vmem:[%s0 + $0x360] sm:$0xff]
  %v123 = vld [vmem:[%s0 + $0x368] sm:$0xff]
  %v124 = vld [vmem:[%s0 + $0x370] sm:$0xff]
  %v125 = vld [vmem:[%s0 + $0x378] sm:$0xff]
  %v126 = vld [vmem:[%s0 + $0x380] sm:$0xff]
  %v127 = vld [vmem:[%s0 + $0x388] sm:$0xff]
  %v128 = vld [vmem:[%s0 + $0x390] sm:$0xff]
  %v129 = vld [vmem:[%s0 + $0x398] sm:$0xff]
  %v130 = vld [vmem:[%s0 + $0x3a0] sm:$0xff]
  %v131 = vld [vmem:[%s0 + $0x3a8] sm:$0xff]
  %v132 = vld [vmem:[%s0 + $0x3b0] sm:$0xff]
  %v133 = vld [vmem:[%s0 + $0x3b8] sm:$0xff]
  %v134 = vld [vmem:[%s0 + $0x3c0] sm:$0xff]
  %v135 = vld [vmem:[%s0 + $0x3c8] sm:$0xff]
  %v136 = vld [vmem:[%s0 + $0x3d0] sm:$0xff]
  %v137 = vld [vmem:[%s0 + $0x3d8] sm:$0xff]
  %v138 = vld [vmem:[%s0 + $0x3e0] sm:$0xff]
  %v139 = vld [vmem:[%s0 + $0x3e8] sm:$0xff]
  %v140 = vld [vmem:[%s0 + $0x3f0] sm:$0xff]
  %v141 = vld [vmem:[%s0 + $0x3f8] sm:$0xff]
  %v142 = vld [vmem:[%s0 + $0x400] sm:$0xff]
  %v143 = vld [vmem:[%s0 + $0x408] sm:$0xff]
  %v144 = vld [vmem:[%s0 + $0x410] sm:$0xff]
  %v145 = vld [vmem:[%s0 + $0x418] sm:$0xff]
  %v146 = vld [vmem:[%s0 + $0x420] sm:$0xff]
  %v147 = vld [vmem:[%s0 + $0x428] sm:$0xff]
  %v148 = vld [vmem:[%s0 + $0x430] sm:$0xff]
  %v149 = vld [vmem:[%s0 + $0x438] sm:$0xff]
  %v150 = vld [vmem:[%s0 + $0x440] sm:$0xff]
  %v151 = vld [vmem:[%s0 + $0x448] sm:$0xff]
  %v152 = vld [vmem:[%s0 + $0x450] sm:$0xff]
  %v153 = vld [vmem:[%s0 + $0x458] sm:$0xff]
  %v154 = vld [vmem:[%s0 + $0x460] sm:$0xff]
  %v155 = vld [vmem:[%s0 + $0x468] sm:$0xff]
  %v156 = vld [vmem:[%s0 + $0x470] sm:$0xff]
  %v157 = vld [vmem:[%s0 + $0x478] sm:$0xff]
  %v158 = vld [vmem:[%s0 + $0x480] sm:$0xff]
  %v159 = vld [vmem:[%s0 + $0x488] sm:$0xff]
  %v160 = vld [vmem:[%s0 + $0x490] sm:$0xff]
  %v161 = vld [vmem:[%s0 + $0x498] sm:$0xff]
  %v162 = vld [vmem:[%s0 + $0x4a0] sm:$0xff]
  %v163 = vld [vmem:[%s0 + $0x4a8] sm:$0xff]
  %v164 = vld [vmem:[%s0 + $0x4b0] sm:$0xff]
  %v165 = vld [vmem:[%s0 + $0x4b8] sm:$0xff]
  %v166 = vld [vmem:[%s0 + $0x4c0] sm:$0xff]
  %v167 = vld [vmem:[%s0 + $0x4c8] sm:$0xff]
  %v168 = vld [vmem:[%s0 + $0x4d0] sm:$0xff]
  %v169 = vld [vmem:[%s0 + $0x4d8] sm:$0xff]
  %v170 = vld [vmem:[%s0 + $0x4e0] sm:$0xff]
  %v171 = vld [vmem:[%s0 + $0x4e8] sm:$0xff]
  %v172 = vld [vmem:[%s0 + $0x4f0] sm:$0xff]
  %v173 = vld [vmem:[%s0 + $0x4f8] sm:$0xff]
  %v174 = vld [vmem:[%s0 + $0x500] sm:$0xff]
  %v175 = vld [vmem:[%s0 + $0x508] sm:$0xff]
  %v176 = vld [vmem:[%s0 + $0x510] sm:$0xff]
  %v177 = vld [vmem:[%s0 + $0x518] sm:$0xff]
  %v178 = vld [vmem:[%s0 + $0x520] sm:$0xff]
  %v179 = vld [vmem:[%s0 + $0x528] sm:$0xff]
  %v180 = vld [vmem:[%s0 + $0x530] sm:$0xff]
  %v181 = vld [vmem:[%s0 + $0x538] sm:$0xff]
  %v182 = vld [vmem:[%s0 + $0x540] sm:$0xff]
  %v183 = vld [vmem:[%s0 + $0x548] sm:$0xff]
  %v184 = vld [vmem:[%s0 + $0x550] sm:$0xff]
  %v185 = vld [vmem:[%s0 + $0x558] sm:$0xff]
  %v186 = vld [vmem:[%s0 + $0x560] sm:$0xff]
  %v187 = vld [vmem:[%s0 + $0x568] sm:$0xff]
  %v188 = vld [vmem:[%s0 + $0x570] sm:$0xff]
  %v189 = vld [vmem:[%s0 + $0x578] sm:$0xff]
  %v190 = vld [vmem:[%s0 + $0x580] sm:$0xff]
  %v191 = vld [vmem:[%s0 + $0x588] sm:$0xff]
  %v192 = vld [vmem:[%s0 + $0x590] sm:$0xff]
  %v193 = vld [vmem:[%s0 + $0x598] sm:$0xff]
  %v194 = vld [vmem:[%s0 + $0x5a0] sm:$0xff]
  %v195 = vld [vmem:[%s0 + $0x5a8] sm:$0xff]
  %v196 = vld [vmem:[%s0 + $0x5b0] sm:$0xff]
  %v197 = vld [vmem:[%s0 + $0x5b8] sm:$0xff]
  %v198 = vld [vmem:[%s0 + $0x5c0] sm:$0xff]
  %v199 = vld [vmem:[%s0 + $0x5c8] sm:$0xff]
  %v200 = vld [vmem:[%s0 + $0x5d0] sm:$0xff]
  %v201 = vld [vmem:[%s0 + $0x5d8] sm:$0xff]
  %v202 = vld [vmem:[%s0 + $0x5e0] sm:$0xff]
  %v203 = vld [vmem:[%s0 + $0x5e8] sm:$0xff]
  %v204 = vld [vmem:[%s0 + $0x5f0] sm:$0xff]
  %v205 = vld [vmem:[%s0 + $0x5f8] sm:$0xff]
  %v206 = vld [vmem:[%s0 + $0x600] sm:$0xff]
  %v207 = vld [vmem:[%s0 + $0x608] sm:$0xff]
  %v208 = vld [vmem:[%s0 + $0x610] sm:$0xff]
  %v209 = vld [vmem:[%s0 + $0x618] sm:$0xff]
  %v210 = vld [vmem:[%s0 + $0x620] sm:$0xff]
  %v211 = vld [vmem:[%s0 + $0x628] sm:$0xff]
  %v212 = vld [vmem:[%s0 + $0x630] sm:$0xff]
  %v213 = vld [vmem:[%s0 + $0x638] sm:$0xff]
  %v214 = vld [vmem:[%s0 + $0x640] sm:$0xff]
  %v215 = vld [vmem:[%s0 + $0x648] sm:$0xff]
  %v216 = vld [vmem:[%s0 + $0x650] sm:$0xff]
  %v217 = vld [vmem:[%s0 + $0x658] sm:$0xff]
  %v218 = vld [vmem:[%s0 + $0x660] sm:$0xff]
  %v219 = vld [vmem:[%s0 + $0x668] sm:$0xff]
  %v220 = vld [vmem:[%s0 + $0x670] sm:$0xff]
  %v221 = vld [vmem:[%s0 + $0x678] sm:$0xff]
  %v222 = vld [vmem:[%s1] sm:$0x1]
  %v224 = vlaneseq
  %v225 = vshrl.u32 %v224, 7
  %v226 = vsub.s32 0, %v225
  %v227 = vrot.slane %v222, %v226
  %v229 = vmul.f32 %v14, %v227
  %v230 = vmul.f32 %v15, %v227
  %v231 = vmul.f32 %v16, %v227
  %v232 = vmul.f32 %v17, %v227
  %v233 = vmul.f32 %v18, %v227
  %v234 = vmul.f32 %v19, %v227
  %v235 = vmul.f32 %v20, %v227
  %v236 = vmul.f32 %v21, %v227
  %v237 = vmul.f32 %v22, %v227
  %v238 = vmul.f32 %v23, %v227
  %v239 = vmul.f32 %v24, %v227
  %v240 = vmul.f32 %v25, %v227
  %v241 = vmul.f32 %v26, %v227
  %v242 = vmul.f32 %v27, %v227
  %v243 = vmul.f32 %v28, %v227
  %v244 = vmul.f32 %v29, %v227
  %v245 = vmul.f32 %v30, %v227
  %v246 = vmul.f32 %v31, %v227
  %v247 = vmul.f32 %v32, %v227
  %v248 = vmul.f32 %v33, %v227
  %v249 = vmul.f32 %v34, %v227
  %v250 = vmul.f32 %v35, %v227
  %v251 = vmul.f32 %v36, %v227
  %v252 = vmul.f32 %v37, %v227
  %v253 = vmul.f32 %v38, %v227
  %v254 = vmul.f32 %v39, %v227
  %v255 = vmul.f32 %v40, %v227
  %v256 = vmul.f32 %v41, %v227
  %v257 = vmul.f32 %v42, %v227
  %v258 = vmul.f32 %v43, %v227
  %v259 = vmul.f32 %v44, %v227
  %v260 = vmul.f32 %v45, %v227
  %v261 = vmul.f32 %v46, %v227
  %v262 = vmul.f32 %v47, %v227
  %v263 = vmul.f32 %v48, %v227
  %v264 = vmul.f32 %v49, %v227
  %v265 = vmul.f32 %v50, %v227
  %v266 = vmul.f32 %v51, %v227
  %v267 = vmul.f32 %v52, %v227
  %v268 = vmul.f32 %v53, %v227
  %v269 = vmul.f32 %v54, %v227
  %v270 = vmul.f32 %v55, %v227
  %v271 = vmul.f32 %v56, %v227
  %v272 = vmul.f32 %v57, %v227
  %v273 = vmul.f32 %v58, %v227
  %v274 = vmul.f32 %v59, %v227
  %v275 = vmul.f32 %v60, %v227
  %v276 = vmul.f32 %v61, %v227
  %v277 = vmul.f32 %v62, %v227
  %v278 = vmul.f32 %v63, %v227
  %v279 = vmul.f32 %v64, %v227
  %v280 = vmul.f32 %v65, %v227
  %v281 = vmul.f32 %v66, %v227
  %v282 = vmul.f32 %v67, %v227
  %v283 = vmul.f32 %v68, %v227
  %v284 = vmul.f32 %v69, %v227
  %v285 = vmul.f32 %v70, %v227
  %v286 = vmul.f32 %v71, %v227
  %v287 = vmul.f32 %v72, %v227
  %v288 = vmul.f32 %v73, %v227
  %v289 = vmul.f32 %v74, %v227
  %v290 = vmul.f32 %v75, %v227
  %v291 = vmul.f32 %v76, %v227
  %v292 = vmul.f32 %v77, %v227
  %v293 = vmul.f32 %v78, %v227
  %v294 = vmul.f32 %v79, %v227
  %v295 = vmul.f32 %v80, %v227
  %v296 = vmul.f32 %v81, %v227
  %v297 = vmul.f32 %v82, %v227
  %v298 = vmul.f32 %v83, %v227
  %v299 = vmul.f32 %v84, %v227
  %v300 = vmul.f32 %v85, %v227
  %v301 = vmul.f32 %v86, %v227
  %v302 = vmul.f32 %v87, %v227
  %v303 = vmul.f32 %v88, %v227
  %v304 = vmul.f32 %v89, %v227
  %v305 = vmul.f32 %v90, %v227
  %v306 = vmul.f32 %v91, %v227
  %v307 = vmul.f32 %v92, %v227
  %v308 = vmul.f32 %v93, %v227
  %v309 = vmul.f32 %v94, %v227
  %v310 = vmul.f32 %v95, %v227
  %v311 = vmul.f32 %v96, %v227
  %v312 = vmul.f32 %v97, %v227
  %v313 = vmul.f32 %v98, %v227
  %v314 = vmul.f32 %v99, %v227
  %v315 = vmul.f32 %v100, %v227
  %v316 = vmul.f32 %v101, %v227
  %v317 = vmul.f32 %v102, %v227
  %v318 = vmul.f32 %v103, %v227
  %v319 = vmul.f32 %v104, %v227
  %v320 = vmul.f32 %v105, %v227
  %v321 = vmul.f32 %v106, %v227
  %v322 = vmul.f32 %v107, %v227
  %v323 = vmul.f32 %v108, %v227
  %v324 = vmul.f32 %v109, %v227
  %v325 = vmul.f32 %v110, %v227
  %v326 = vmul.f32 %v111, %v227
  %v327 = vmul.f32 %v112, %v227
  %v328 = vmul.f32 %v113, %v227
  %v329 = vmul.f32 %v114, %v227
  %v330 = vmul.f32 %v115, %v227
  %v331 = vmul.f32 %v116, %v227
  %v332 = vmul.f32 %v117, %v227
  %v333 = vmul.f32 %v118, %v227
  %v334 = vmul.f32 %v119, %v227
  %v335 = vmul.f32 %v120, %v227
  %v336 = vmul.f32 %v121, %v227
  %v337 = vmul.f32 %v122, %v227
  %v338 = vmul.f32 %v123, %v227
  %v339 = vmul.f32 %v124, %v227
  %v340 = vmul.f32 %v125, %v227
  %v341 = vmul.f32 %v126, %v227
  %v342 = vmul.f32 %v127, %v227
  %v343 = vmul.f32 %v128, %v227
  %v344 = vmul.f32 %v129, %v227
  %v345 = vmul.f32 %v130, %v227
  %v346 = vmul.f32 %v131, %v227
  %v347 = vmul.f32 %v132, %v227
  %v348 = vmul.f32 %v133, %v227
  %v349 = vmul.f32 %v134, %v227
  %v350 = vmul.f32 %v135, %v227
  %v351 = vmul.f32 %v136, %v227
  %v352 = vmul.f32 %v137, %v227
  %v353 = vmul.f32 %v138, %v227
  %v354 = vmul.f32 %v139, %v227
  %v355 = vmul.f32 %v140, %v227
  %v356 = vmul.f32 %v141, %v227
  %v357 = vmul.f32 %v142, %v227
  %v358 = vmul.f32 %v143, %v227
  %v359 = vmul.f32 %v144, %v227
  %v360 = vmul.f32 %v145, %v227
  %v361 = vmul.f32 %v146, %v227
  %v362 = vmul.f32 %v147, %v227
  %v363 = vmul.f32 %v148, %v227
  %v364 = vmul.f32 %v149, %v227
  %v365 = vmul.f32 %v150, %v227
  %v366 = vmul.f32 %v151, %v227
  %v367 = vmul.f32 %v152, %v227
  %v368 = vmul.f32 %v153, %v227
  %v369 = vmul.f32 %v154, %v227
  %v370 = vmul.f32 %v155, %v227
  %v371 = vmul.f32 %v156, %v227
  %v372 = vmul.f32 %v157, %v227
  %v373 = vmul.f32 %v158, %v227
  %v374 = vmul.f32 %v159, %v227
  %v375 = vmul.f32 %v160, %v227
  %v376 = vmul.f32 %v161, %v227
  %v377 = vmul.f32 %v162, %v227
  %v378 = vmul.f32 %v163, %v227
  %v379 = vmul.f32 %v164, %v227
  %v380 = vmul.f32 %v165, %v227
  %v381 = vmul.f32 %v166, %v227
  %v382 = vmul.f32 %v167, %v227
  %v383 = vmul.f32 %v168, %v227
  %v384 = vmul.f32 %v169, %v227
  %v385 = vmul.f32 %v170, %v227
  %v386 = vmul.f32 %v171, %v227
  %v387 = vmul.f32 %v172, %v227
  %v388 = vmul.f32 %v173, %v227
  %v389 = vmul.f32 %v174, %v227
  %v390 = vmul.f32 %v175, %v227
  %v391 = vmul.f32 %v176, %v227
  %v392 = vmul.f32 %v177, %v227
  %v393 = vmul.f32 %v178, %v227
  %v394 = vmul.f32 %v179, %v227
  %v395 = vmul.f32 %v180, %v227
  %v396 = vmul.f32 %v181, %v227
  %v397 = vmul.f32 %v182, %v227
  %v398 = vmul.f32 %v183, %v227
  %v399 = vmul.f32 %v184, %v227
  %v400 = vmul.f32 %v185, %v227
  %v401 = vmul.f32 %v186, %v227
  %v402 = vmul.f32 %v187, %v227
  %v403 = vmul.f32 %v188, %v227
  %v404 = vmul.f32 %v189, %v227
  %v405 = vmul.f32 %v190, %v227
  %v406 = vmul.f32 %v191, %v227
  %v407 = vmul.f32 %v192, %v227
  %v408 = vmul.f32 %v193, %v227
  %v409 = vmul.f32 %v194, %v227
  %v410 = vmul.f32 %v195, %v227
  %v411 = vmul.f32 %v196, %v227
  %v412 = vmul.f32 %v197, %v227
  %v413 = vmul.f32 %v198, %v227
  %v414 = vmul.f32 %v199, %v227
  %v415 = vmul.f32 %v200, %v227
  %v416 = vmul.f32 %v201, %v227
  %v417 = vmul.f32 %v202, %v227
  %v418 = vmul.f32 %v203, %v227
  %v419 = vmul.f32 %v204, %v227
  %v420 = vmul.f32 %v205, %v227
  %v421 = vmul.f32 %v206, %v227
  %v422 = vmul.f32 %v207, %v227
  %v423 = vmul.f32 %v208, %v227
  %v424 = vmul.f32 %v209, %v227
  %v425 = vmul.f32 %v210, %v227
  %v426 = vmul.f32 %v211, %v227
  %v427 = vmul.f32 %v212, %v227
  %v428 = vmul.f32 %v213, %v227
  %v429 = vmul.f32 %v214, %v227
  %v430 = vmul.f32 %v215, %v227
  %v431 = vmul.f32 %v216, %v227
  %v432 = vmul.f32 %v217, %v227
  %v433 = vmul.f32 %v218, %v227
  %v434 = vmul.f32 %v219, %v227
  %v435 = vmul.f32 %v220, %v227
  %v436 = vmul.f32 %v221, %v227
  %v437 = vld [vmem:[%s2] sm:$0x1]
  %v439 = vlaneseq
  %v440 = vshrl.u32 %v439, 7
  %v441 = vsub.s32 0, %v440
  %v442 = vrot.slane %v437, %v441
  %v444 = vadd.f32 %v229, %v442
  %v445 = vadd.f32 %v230, %v442
  %v446 = vadd.f32 %v231, %v442
  %v447 = vadd.f32 %v232, %v442
  %v448 = vadd.f32 %v233, %v442
  %v449 = vadd.f32 %v234, %v442
  %v450 = vadd.f32 %v235, %v442
  %v451 = vadd.f32 %v236, %v442
  %v452 = vadd.f32 %v237, %v442
  %v453 = vadd.f32 %v238, %v442
  %v454 = vadd.f32 %v239, %v442
  %v455 = vadd.f32 %v240, %v442
  %v456 = vadd.f32 %v241, %v442
  %v457 = vadd.f32 %v242, %v442
  %v458 = vadd.f32 %v243, %v442
  %v459 = vadd.f32 %v244, %v442
  %v460 = vadd.f32 %v245, %v442
  %v461 = vadd.f32 %v246, %v442
  %v462 = vadd.f32 %v247, %v442
  %v463 = vadd.f32 %v248, %v442
  %v464 = vadd.f32 %v249, %v442
  %v465 = vadd.f32 %v250, %v442
  %v466 = vadd.f32 %v251, %v442
  %v467 = vadd.f32 %v252, %v442
  %v468 = vadd.f32 %v253, %v442
  %v469 = vadd.f32 %v254, %v442
  %v470 = vadd.f32 %v255, %v442
  %v471 = vadd.f32 %v256, %v442
  %v472 = vadd.f32 %v257, %v442
  %v473 = vadd.f32 %v258, %v442
  %v474 = vadd.f32 %v259, %v442
  %v475 = vadd.f32 %v260, %v442
  %v476 = vadd.f32 %v261, %v442
  %v477 = vadd.f32 %v262, %v442
  %v478 = vadd.f32 %v263, %v442
  %v479 = vadd.f32 %v264, %v442
  %v480 = vadd.f32 %v265, %v442
  %v481 = vadd.f32 %v266, %v442
  %v482 = vadd.f32 %v267, %v442
  %v483 = vadd.f32 %v268, %v442
  %v484 = vadd.f32 %v269, %v442
  %v485 = vadd.f32 %v270, %v442
  %v486 = vadd.f32 %v271, %v442
  %v487 = vadd.f32 %v272, %v442
  %v488 = vadd.f32 %v273, %v442
  %v489 = vadd.f32 %v274, %v442
  %v490 = vadd.f32 %v275, %v442
  %v491 = vadd.f32 %v276, %v442
  %v492 = vadd.f32 %v277, %v442
  %v493 = vadd.f32 %v278, %v442
  %v494 = vadd.f32 %v279, %v442
  %v495 = vadd.f32 %v280, %v442
  %v496 = vadd.f32 %v281, %v442
  %v497 = vadd.f32 %v282, %v442
  %v498 = vadd.f32 %v283, %v442
  %v499 = vadd.f32 %v284, %v442
  %v500 = vadd.f32 %v285, %v442
  %v501 = vadd.f32 %v286, %v442
  %v502 = vadd.f32 %v287, %v442
  %v503 = vadd.f32 %v288, %v442
  %v504 = vadd.f32 %v289, %v442
  %v505 = vadd.f32 %v290, %v442
  %v506 = vadd.f32 %v291, %v442
  %v507 = vadd.f32 %v292, %v442
  %v508 = vadd.f32 %v293, %v442
  %v509 = vadd.f32 %v294, %v442
  %v510 = vadd.f32 %v295, %v442
  %v511 = vadd.f32 %v296, %v442
  %v512 = vadd.f32 %v297, %v442
  %v513 = vadd.f32 %v298, %v442
  %v514 = vadd.f32 %v299, %v442
  %v515 = vadd.f32 %v300, %v442
  %v516 = vadd.f32 %v301, %v442
  %v517 = vadd.f32 %v302, %v442
  %v518 = vadd.f32 %v303, %v442
  %v519 = vadd.f32 %v304, %v442
  %v520 = vadd.f32 %v305, %v442
  %v521 = vadd.f32 %v306, %v442
  %v522 = vadd.f32 %v307, %v442
  %v523 = vadd.f32 %v308, %v442
  %v524 = vadd.f32 %v309, %v442
  %v525 = vadd.f32 %v310, %v442
  %v526 = vadd.f32 %v311, %v442
  %v527 = vadd.f32 %v312, %v442
  %v528 = vadd.f32 %v313, %v442
  %v529 = vadd.f32 %v314, %v442
  %v530 = vadd.f32 %v315, %v442
  %v531 = vadd.f32 %v316, %v442
  %v532 = vadd.f32 %v317, %v442
  %v533 = vadd.f32 %v318, %v442
  %v534 = vadd.f32 %v319, %v442
  %v535 = vadd.f32 %v320, %v442
  %v536 = vadd.f32 %v321, %v442
  %v537 = vadd.f32 %v322, %v442
  %v538 = vadd.f32 %v323, %v442
  %v539 = vadd.f32 %v324, %v442
  %v540 = vadd.f32 %v325, %v442
  %v541 = vadd.f32 %v326, %v442
  %v542 = vadd.f32 %v327, %v442
  %v543 = vadd.f32 %v328, %v442
  %v544 = vadd.f32 %v329, %v442
  %v545 = vadd.f32 %v330, %v442
  %v546 = vadd.f32 %v331, %v442
  %v547 = vadd.f32 %v332, %v442
  %v548 = vadd.f32 %v333, %v442
  %v549 = vadd.f32 %v334, %v442
  %v550 = vadd.f32 %v335, %v442
  %v551 = vadd.f32 %v336, %v442
  %v552 = vadd.f32 %v337, %v442
  %v553 = vadd.f32 %v338, %v442
  %v554 = vadd.f32 %v339, %v442
  %v555 = vadd.f32 %v340, %v442
  %v556 = vadd.f32 %v341, %v442
  %v557 = vadd.f32 %v342, %v442
  %v558 = vadd.f32 %v343, %v442
  %v559 = vadd.f32 %v344, %v442
  %v560 = vadd.f32 %v345, %v442
  %v561 = vadd.f32 %v346, %v442
  %v562 = vadd.f32 %v347, %v442
  %v563 = vadd.f32 %v348, %v442
  %v564 = vadd.f32 %v349, %v442
  %v565 = vadd.f32 %v350, %v442
  %v566 = vadd.f32 %v351, %v442
  %v567 = vadd.f32 %v352, %v442
  %v568 = vadd.f32 %v353, %v442
  %v569 = vadd.f32 %v354, %v442
  %v570 = vadd.f32 %v355, %v442
  %v571 = vadd.f32 %v356, %v442
  %v572 = vadd.f32 %v357, %v442
  %v573 = vadd.f32 %v358, %v442
  %v574 = vadd.f32 %v359, %v442
  %v575 = vadd.f32 %v360, %v442
  %v576 = vadd.f32 %v361, %v442
  %v577 = vadd.f32 %v362, %v442
  %v578 = vadd.f32 %v363, %v442
  %v579 = vadd.f32 %v364, %v442
  %v580 = vadd.f32 %v365, %v442
  %v581 = vadd.f32 %v366, %v442
  %v582 = vadd.f32 %v367, %v442
  %v583 = vadd.f32 %v368, %v442
  %v584 = vadd.f32 %v369, %v442
  %v585 = vadd.f32 %v370, %v442
  %v586 = vadd.f32 %v371, %v442
  %v587 = vadd.f32 %v372, %v442
  %v588 = vadd.f32 %v373, %v442
  %v589 = vadd.f32 %v374, %v442
  %v590 = vadd.f32 %v375, %v442
  %v591 = vadd.f32 %v376, %v442
  %v592 = vadd.f32 %v377, %v442
  %v593 = vadd.f32 %v378, %v442
  %v594 = vadd.f32 %v379, %v442
  %v595 = vadd.f32 %v380, %v442
  %v596 = vadd.f32 %v381, %v442
  %v597 = vadd.f32 %v382, %v442
  %v598 = vadd.f32 %v383, %v442
  %v599 = vadd.f32 %v384, %v442
  %v600 = vadd.f32 %v385, %v442
  %v601 = vadd.f32 %v386, %v442
  %v602 = vadd.f32 %v387, %v442
  %v603 = vadd.f32 %v388, %v442
  %v604 = vadd.f32 %v389, %v442
  %v605 = vadd.f32 %v390, %v442
  %v606 = vadd.f32 %v391, %v442
  %v607 = vadd.f32 %v392, %v442
  %v608 = vadd.f32 %v393, %v442
  %v609 = vadd.f32 %v394, %v442
  %v610 = vadd.f32 %v395, %v442
  %v611 = vadd.f32 %v396, %v442
  %v612 = vadd.f32 %v397, %v442
  %v613 = vadd.f32 %v398, %v442
  %v614 = vadd.f32 %v399, %v442
  %v615 = vadd.f32 %v400, %v442
  %v616 = vadd.f32 %v401, %v442
  %v617 = vadd.f32 %v402, %v442
  %v618 = vadd.f32 %v403, %v442
  %v619 = vadd.f32 %v404, %v442
  %v620 = vadd.f32 %v405, %v442
  %v621 = vadd.f32 %v406, %v442
  %v622 = vadd.f32 %v407, %v442
  %v623 = vadd.f32 %v408, %v442
  %v624 = vadd.f32 %v409, %v442
  %v625 = vadd.f32 %v410, %v442
  %v626 = vadd.f32 %v411, %v442
  %v627 = vadd.f32 %v412, %v442
  %v628 = vadd.f32 %v413, %v442
  %v629 = vadd.f32 %v414, %v442
  %v630 = vadd.f32 %v415, %v442
  %v631 = vadd.f32 %v416, %v442
  %v632 = vadd.f32 %v417, %v442
  %v633 = vadd.f32 %v418, %v442
  %v634 = vadd.f32 %v419, %v442
  %v635 = vadd.f32 %v420, %v442
  %v636 = vadd.f32 %v421, %v442
  %v637 = vadd.f32 %v422, %v442
  %v638 = vadd.f32 %v423, %v442
  %v639 = vadd.f32 %v424, %v442
  %v640 = vadd.f32 %v425, %v442
  %v641 = vadd.f32 %v426, %v442
  %v642 = vadd.f32 %v427, %v442
  %v643 = vadd.f32 %v428, %v442
  %v644 = vadd.f32 %v429, %v442
  %v645 = vadd.f32 %v430, %v442
  %v646 = vadd.f32 %v431, %v442
  %v647 = vadd.f32 %v432, %v442
  %v648 = vadd.f32 %v433, %v442
  %v649 = vadd.f32 %v434, %v442
  %v650 = vadd.f32 %v435, %v442
  %v651 = vadd.f32 %v436, %v442
  %v652 = vmax.f32 %v444, 0.0
  %v653 = vmax.f32 %v445, 0.0
  %v654 = vmax.f32 %v446, 0.0
  %v655 = vmax.f32 %v447, 0.0
  %v656 = vmax.f32 %v448, 0.0
  %v657 = vmax.f32 %v449, 0.0
  %v658 = vmax.f32 %v450, 0.0
  %v659 = vmax.f32 %v451, 0.0
  %v660 = vmax.f32 %v452, 0.0
  %v661 = vmax.f32 %v453, 0.0
  %v662 = vmax.f32 %v454, 0.0
  %v663 = vmax.f32 %v455, 0.0
  %v664 = vmax.f32 %v456, 0.0
  %v665 = vmax.f32 %v457, 0.0
  %v666 = vmax.f32 %v458, 0.0
  %v667 = vmax.f32 %v459, 0.0
  %v668 = vmax.f32 %v460, 0.0
  %v669 = vmax.f32 %v461, 0.0
  %v670 = vmax.f32 %v462, 0.0
  %v671 = vmax.f32 %v463, 0.0
  %v672 = vmax.f32 %v464, 0.0
  %v673 = vmax.f32 %v465, 0.0
  %v674 = vmax.f32 %v466, 0.0
  %v675 = vmax.f32 %v467, 0.0
  %v676 = vmax.f32 %v468, 0.0
  %v677 = vmax.f32 %v469, 0.0
  %v678 = vmax.f32 %v470, 0.0
  %v679 = vmax.f32 %v471, 0.0
  %v680 = vmax.f32 %v472, 0.0
  %v681 = vmax.f32 %v473, 0.0
  %v682 = vmax.f32 %v474, 0.0
  %v683 = vmax.f32 %v475, 0.0
  %v684 = vmax.f32 %v476, 0.0
  %v685 = vmax.f32 %v477, 0.0
  %v686 = vmax.f32 %v478, 0.0
  %v687 = vmax.f32 %v479, 0.0
  %v688 = vmax.f32 %v480, 0.0
  %v689 = vmax.f32 %v481, 0.0
  %v690 = vmax.f32 %v482, 0.0
  %v691 = vmax.f32 %v483, 0.0
  %v692 = vmax.f32 %v484, 0.0
  %v693 = vmax.f32 %v485, 0.0
  %v694 = vmax.f32 %v486, 0.0
  %v695 = vmax.f32 %v487, 0.0
  %v696 = vmax.f32 %v488, 0.0
  %v697 = vmax.f32 %v489, 0.0
  %v698 = vmax.f32 %v490, 0.0
  %v699 = vmax.f32 %v491, 0.0
  %v700 = vmax.f32 %v492, 0.0
  %v701 = vmax.f32 %v493, 0.0
  %v702 = vmax.f32 %v494, 0.0
  %v703 = vmax.f32 %v495, 0.0
  %v704 = vmax.f32 %v496, 0.0
  %v705 = vmax.f32 %v497, 0.0
  %v706 = vmax.f32 %v498, 0.0
  %v707 = vmax.f32 %v499, 0.0
  %v708 = vmax.f32 %v500, 0.0
  %v709 = vmax.f32 %v501, 0.0
  %v710 = vmax.f32 %v502, 0.0
  %v711 = vmax.f32 %v503, 0.0
  %v712 = vmax.f32 %v504, 0.0
  %v713 = vmax.f32 %v505, 0.0
  %v714 = vmax.f32 %v506, 0.0
  %v715 = vmax.f32 %v507, 0.0
  %v716 = vmax.f32 %v508, 0.0
  %v717 = vmax.f32 %v509, 0.0
  %v718 = vmax.f32 %v510, 0.0
  %v719 = vmax.f32 %v511, 0.0
  %v720 = vmax.f32 %v512, 0.0
  %v721 = vmax.f32 %v513, 0.0
  %v722 = vmax.f32 %v514, 0.0
  %v723 = vmax.f32 %v515, 0.0
  %v724 = vmax.f32 %v516, 0.0
  %v725 = vmax.f32 %v517, 0.0
  %v726 = vmax.f32 %v518, 0.0
  %v727 = vmax.f32 %v519, 0.0
  %v728 = vmax.f32 %v520, 0.0
  %v729 = vmax.f32 %v521, 0.0
  %v730 = vmax.f32 %v522, 0.0
  %v731 = vmax.f32 %v523, 0.0
  %v732 = vmax.f32 %v524, 0.0
  %v733 = vmax.f32 %v525, 0.0
  %v734 = vmax.f32 %v526, 0.0
  %v735 = vmax.f32 %v527, 0.0
  %v736 = vmax.f32 %v528, 0.0
  %v737 = vmax.f32 %v529, 0.0
  %v738 = vmax.f32 %v530, 0.0
  %v739 = vmax.f32 %v531, 0.0
  %v740 = vmax.f32 %v532, 0.0
  %v741 = vmax.f32 %v533, 0.0
  %v742 = vmax.f32 %v534, 0.0
  %v743 = vmax.f32 %v535, 0.0
  %v744 = vmax.f32 %v536, 0.0
  %v745 = vmax.f32 %v537, 0.0
  %v746 = vmax.f32 %v538, 0.0
  %v747 = vmax.f32 %v539, 0.0
  %v748 = vmax.f32 %v540, 0.0
  %v749 = vmax.f32 %v541, 0.0
  %v750 = vmax.f32 %v542, 0.0
  %v751 = vmax.f32 %v543, 0.0
  %v752 = vmax.f32 %v544, 0.0
  %v753 = vmax.f32 %v545, 0.0
  %v754 = vmax.f32 %v546, 0.0
  %v755 = vmax.f32 %v547, 0.0
  %v756 = vmax.f32 %v548, 0.0
  %v757 = vmax.f32 %v549, 0.0
  %v758 = vmax.f32 %v550, 0.0
  %v759 = vmax.f32 %v551, 0.0
  %v760 = vmax.f32 %v552, 0.0
  %v761 = vmax.f32 %v553, 0.0
  %v762 = vmax.f32 %v554, 0.0
  %v763 = vmax.f32 %v555, 0.0
  %v764 = vmax.f32 %v556, 0.0
  %v765 = vmax.f32 %v557, 0.0
  %v766 = vmax.f32 %v558, 0.0
  %v767 = vmax.f32 %v559, 0.0
  %v768 = vmax.f32 %v560, 0.0
  %v769 = vmax.f32 %v561, 0.0
  %v770 = vmax.f32 %v562, 0.0
  %v771 = vmax.f32 %v563, 0.0
  %v772 = vmax.f32 %v564, 0.0
  %v773 = vmax.f32 %v565, 0.0
  %v774 = vmax.f32 %v566, 0.0
  %v775 = vmax.f32 %v567, 0.0
  %v776 = vmax.f32 %v568, 0.0
  %v777 = vmax.f32 %v569, 0.0
  %v778 = vmax.f32 %v570, 0.0
  %v779 = vmax.f32 %v571, 0.0
  %v780 = vmax.f32 %v572, 0.0
  %v781 = vmax.f32 %v573, 0.0
  %v782 = vmax.f32 %v574, 0.0
  %v783 = vmax.f32 %v575, 0.0
  %v784 = vmax.f32 %v576, 0.0
  %v785 = vmax.f32 %v577, 0.0
  %v786 = vmax.f32 %v578, 0.0
  %v787 = vmax.f32 %v579, 0.0
  %v788 = vmax.f32 %v580, 0.0
  %v789 = vmax.f32 %v581, 0.0
  %v790 = vmax.f32 %v582, 0.0
  %v791 = vmax.f32 %v583, 0.0
  %v792 = vmax.f32 %v584, 0.0
  %v793 = vmax.f32 %v585, 0.0
  %v794 = vmax.f32 %v586, 0.0
  %v795 = vmax.f32 %v587, 0.0
  %v796 = vmax.f32 %v588, 0.0
  %v797 = vmax.f32 %v589, 0.0
  %v798 = vmax.f32 %v590, 0.0
  %v799 = vmax.f32 %v591, 0.0
  %v800 = vmax.f32 %v592, 0.0
  %v801 = vmax.f32 %v593, 0.0
  %v802 = vmax.f32 %v594, 0.0
  %v803 = vmax.f32 %v595, 0.0
  %v804 = vmax.f32 %v596, 0.0
  %v805 = vmax.f32 %v597, 0.0
  %v806 = vmax.f32 %v598, 0.0
  %v807 = vmax.f32 %v599, 0.0
  %v808 = vmax.f32 %v600, 0.0
  %v809 = vmax.f32 %v601, 0.0
  %v810 = vmax.f32 %v602, 0.0
  %v811 = vmax.f32 %v603, 0.0
  %v812 = vmax.f32 %v604, 0.0
  %v813 = vmax.f32 %v605, 0.0
  %v814 = vmax.f32 %v606, 0.0
  %v815 = vmax.f32 %v607, 0.0
  %v816 = vmax.f32 %v608, 0.0
  %v817 = vmax.f32 %v609, 0.0
  %v818 = vmax.f32 %v610, 0.0
  %v819 = vmax.f32 %v611, 0.0
  %v820 = vmax.f32 %v612, 0.0
  %v821 = vmax.f32 %v613, 0.0
  %v822 = vmax.f32 %v614, 0.0
  %v823 = vmax.f32 %v615, 0.0
  %v824 = vmax.f32 %v616, 0.0
  %v825 = vmax.f32 %v617, 0.0
  %v826 = vmax.f32 %v618, 0.0
  %v827 = vmax.f32 %v619, 0.0
  %v828 = vmax.f32 %v620, 0.0
  %v829 = vmax.f32 %v621, 0.0
  %v830 = vmax.f32 %v622, 0.0
  %v831 = vmax.f32 %v623, 0.0
  %v832 = vmax.f32 %v624, 0.0
  %v833 = vmax.f32 %v625, 0.0
  %v834 = vmax.f32 %v626, 0.0
  %v835 = vmax.f32 %v627, 0.0
  %v836 = vmax.f32 %v628, 0.0
  %v837 = vmax.f32 %v629, 0.0
  %v838 = vmax.f32 %v630, 0.0
  %v839 = vmax.f32 %v631, 0.0
  %v840 = vmax.f32 %v632, 0.0
  %v841 = vmax.f32 %v633, 0.0
  %v842 = vmax.f32 %v634, 0.0
  %v843 = vmax.f32 %v635, 0.0
  %v844 = vmax.f32 %v636, 0.0
  %v845 = vmax.f32 %v637, 0.0
  %v846 = vmax.f32 %v638, 0.0
  %v847 = vmax.f32 %v639, 0.0
  %v848 = vmax.f32 %v640, 0.0
  %v849 = vmax.f32 %v641, 0.0
  %v850 = vmax.f32 %v642, 0.0
  %v851 = vmax.f32 %v643, 0.0
  %v852 = vmax.f32 %v644, 0.0
  %v853 = vmax.f32 %v645, 0.0
  %v854 = vmax.f32 %v646, 0.0
  %v855 = vmax.f32 %v647, 0.0
  %v856 = vmax.f32 %v648, 0.0
  %v857 = vmax.f32 %v649, 0.0
  %v858 = vmax.f32 %v650, 0.0
  %v859 = vmax.f32 %v651, 0.0
  %860 = vst [vmem:[%s3] sm:$0xff] %v652
  %861 = vst [vmem:[%s3 + $0x8] sm:$0xff] %v653
  %862 = vst [vmem:[%s3 + $0x10] sm:$0xff] %v654
  %863 = vst [vmem:[%s3 + $0x18] sm:$0xff] %v655
  %864 = vst [vmem:[%s3 + $0x20] sm:$0xff] %v656
  %865 = vst [vmem:[%s3 + $0x28] sm:$0xff] %v657
  %866 = vst [vmem:[%s3 + $0x30] sm:$0xff] %v658
  %867 = vst [vmem:[%s3 + $0x38] sm:$0xff] %v659
  %868 = vst [vmem:[%s3 + $0x40] sm:$0xff] %v660
  %869 = vst [vmem:[%s3 + $0x48] sm:$0xff] %v661
  %870 = vst [vmem:[%s3 + $0x50] sm:$0xff] %v662
  %871 = vst [vmem:[%s3 + $0x58] sm:$0xff] %v663
  %872 = vst [vmem:[%s3 + $0x60] sm:$0xff] %v664
  %873 = vst [vmem:[%s3 + $0x68] sm:$0xff] %v665
  %874 = vst [vmem:[%s3 + $0x70] sm:$0xff] %v666
  %875 = vst [vmem:[%s3 + $0x78] sm:$0xff] %v667
  %876 = vst [vmem:[%s3 + $0x80] sm:$0xff] %v668
  %877 = vst [vmem:[%s3 + $0x88] sm:$0xff] %v669
  %878 = vst [vmem:[%s3 + $0x90] sm:$0xff] %v670
  %879 = vst [vmem:[%s3 + $0x98] sm:$0xff] %v671
  %880 = vst [vmem:[%s3 + $0xa0] sm:$0xff] %v672
  %881 = vst [vmem:[%s3 + $0xa8] sm:$0xff] %v673
  %882 = vst [vmem:[%s3 + $0xb0] sm:$0xff] %v674
  %883 = vst [vmem:[%s3 + $0xb8] sm:$0xff] %v675
  %884 = vst [vmem:[%s3 + $0xc0] sm:$0xff] %v676
  %885 = vst [vmem:[%s3 + $0xc8] sm:$0xff] %v677
  %886 = vst [vmem:[%s3 + $0xd0] sm:$0xff] %v678
  %887 = vst [vmem:[%s3 + $0xd8] sm:$0xff] %v679
  %888 = vst [vmem:[%s3 + $0xe0] sm:$0xff] %v680
  %889 = vst [vmem:[%s3 + $0xe8] sm:$0xff] %v681
  %890 = vst [vmem:[%s3 + $0xf0] sm:$0xff] %v682
  %891 = vst [vmem:[%s3 + $0xf8] sm:$0xff] %v683
  %892 = vst [vmem:[%s3 + $0x100] sm:$0xff] %v684
  %893 = vst [vmem:[%s3 + $0x108] sm:$0xff] %v685
  %894 = vst [vmem:[%s3 + $0x110] sm:$0xff] %v686
  %895 = vst [vmem:[%s3 + $0x118] sm:$0xff] %v687
  %896 = vst [vmem:[%s3 + $0x120] sm:$0xff] %v688
  %897 = vst [vmem:[%s3 + $0x128] sm:$0xff] %v689
  %898 = vst [vmem:[%s3 + $0x130] sm:$0xff] %v690
  %899 = vst [vmem:[%s3 + $0x138] sm:$0xff] %v691
  %900 = vst [vmem:[%s3 + $0x140] sm:$0xff] %v692
  %901 = vst [vmem:[%s3 + $0x148] sm:$0xff] %v693
  %902 = vst [vmem:[%s3 + $0x150] sm:$0xff] %v694
  %903 = vst [vmem:[%s3 + $0x158] sm:$0xff] %v695
  %904 = vst [vmem:[%s3 + $0x160] sm:$0xff] %v696
  %905 = vst [vmem:[%s3 + $0x168] sm:$0xff] %v697
  %906 = vst [vmem:[%s3 + $0x170] sm:$0xff] %v698
  %907 = vst [vmem:[%s3 + $0x178] sm:$0xff] %v699
  %908 = vst [vmem:[%s3 + $0x180] sm:$0xff] %v700
  %909 = vst [vmem:[%s3 + $0x188] sm:$0xff] %v701
  %910 = vst [vmem:[%s3 + $0x190] sm:$0xff] %v702
  %911 = vst [vmem:[%s3 + $0x198] sm:$0xff] %v703
  %912 = vst [vmem:[%s3 + $0x1a0] sm:$0xff] %v704
  %913 = vst [vmem:[%s3 + $0x1a8] sm:$0xff] %v705
  %914 = vst [vmem:[%s3 + $0x1b0] sm:$0xff] %v706
  %915 = vst [vmem:[%s3 + $0x1b8] sm:$0xff] %v707
  %916 = vst [vmem:[%s3 + $0x1c0] sm:$0xff] %v708
  %917 = vst [vmem:[%s3 + $0x1c8] sm:$0xff] %v709
  %918 = vst [vmem:[%s3 + $0x1d0] sm:$0xff] %v710
  %919 = vst [vmem:[%s3 + $0x1d8] sm:$0xff] %v711
  %920 = vst [vmem:[%s3 + $0x1e0] sm:$0xff] %v712
  %921 = vst [vmem:[%s3 + $0x1e8] sm:$0xff] %v713
  %922 = vst [vmem:[%s3 + $0x1f0] sm:$0xff] %v714
  %923 = vst [vmem:[%s3 + $0x1f8] sm:$0xff] %v715
  %924 = vst [vmem:[%s3 + $0x200] sm:$0xff] %v716
  %925 = vst [vmem:[%s3 + $0x208] sm:$0xff] %v717
  %926 = vst [vmem:[%s3 + $0x210] sm:$0xff] %v718
  %927 = vst [vmem:[%s3 + $0x218] sm:$0xff] %v719
  %928 = vst [vmem:[%s3 + $0x220] sm:$0xff] %v720
  %929 = vst [vmem:[%s3 + $0x228] sm:$0xff] %v721
  %930 = vst [vmem:[%s3 + $0x230] sm:$0xff] %v722
  %931 = vst [vmem:[%s3 + $0x238] sm:$0xff] %v723
  %932 = vst [vmem:[%s3 + $0x240] sm:$0xff] %v724
  %933 = vst [vmem:[%s3 + $0x248] sm:$0xff] %v725
  %934 = vst [vmem:[%s3 + $0x250] sm:$0xff] %v726
  %935 = vst [vmem:[%s3 + $0x258] sm:$0xff] %v727
  %936 = vst [vmem:[%s3 + $0x260] sm:$0xff] %v728
  %937 = vst [vmem:[%s3 + $0x268] sm:$0xff] %v729
  %938 = vst [vmem:[%s3 + $0x270] sm:$0xff] %v730
  %939 = vst [vmem:[%s3 + $0x278] sm:$0xff] %v731
  %940 = vst [vmem:[%s3 + $0x280] sm:$0xff] %v732
  %941 = vst [vmem:[%s3 + $0x288] sm:$0xff] %v733
  %942 = vst [vmem:[%s3 + $0x290] sm:$0xff] %v734
  %943 = vst [vmem:[%s3 + $0x298] sm:$0xff] %v735
  %944 = vst [vmem:[%s3 + $0x2a0] sm:$0xff] %v736
  %945 = vst [vmem:[%s3 + $0x2a8] sm:$0xff] %v737
  %946 = vst [vmem:[%s3 + $0x2b0] sm:$0xff] %v738
  %947 = vst [vmem:[%s3 + $0x2b8] sm:$0xff] %v739
  %948 = vst [vmem:[%s3 + $0x2c0] sm:$0xff] %v740
  %949 = vst [vmem:[%s3 + $0x2c8] sm:$0xff] %v741
  %950 = vst [vmem:[%s3 + $0x2d0] sm:$0xff] %v742
  %951 = vst [vmem:[%s3 + $0x2d8] sm:$0xff] %v743
  %952 = vst [vmem:[%s3 + $0x2e0] sm:$0xff] %v744
  %953 = vst [vmem:[%s3 + $0x2e8] sm:$0xff] %v745
  %954 = vst [vmem:[%s3 + $0x2f0] sm:$0xff] %v746
  %955 = vst [vmem:[%s3 + $0x2f8] sm:$0xff] %v747
  %956 = vst [vmem:[%s3 + $0x300] sm:$0xff] %v748
  %957 = vst [vmem:[%s3 + $0x308] sm:$0xff] %v749
  %958 = vst [vmem:[%s3 + $0x310] sm:$0xff] %v750
  %959 = vst [vmem:[%s3 + $0x318] sm:$0xff] %v751
  %960 = vst [vmem:[%s3 + $0x320] sm:$0xff] %v752
  %961 = vst [vmem:[%s3 + $0x328] sm:$0xff] %v753
  %962 = vst [vmem:[%s3 + $0x330] sm:$0xff] %v754
  %963 = vst [vmem:[%s3 + $0x338] sm:$0xff] %v755
  %964 = vst [vmem:[%s3 + $0x340] sm:$0xff] %v756
  %965 = vst [vmem:[%s3 + $0x348] sm:$0xff] %v757
  %966 = vst [vmem:[%s3 + $0x350] sm:$0xff] %v758
  %967 = vst [vmem:[%s3 + $0x358] sm:$0xff] %v759
  %968 = vst [vmem:[%s3 + $0x360] sm:$0xff] %v760
  %969 = vst [vmem:[%s3 + $0x368] sm:$0xff] %v761
  %970 = vst [vmem:[%s3 + $0x370] sm:$0xff] %v762
  %971 = vst [vmem:[%s3 + $0x378] sm:$0xff] %v763
  %972 = vst [vmem:[%s3 + $0x380] sm:$0xff] %v764
  %973 = vst [vmem:[%s3 + $0x388] sm:$0xff] %v765
  %974 = vst [vmem:[%s3 + $0x390] sm:$0xff] %v766
  %975 = vst [vmem:[%s3 + $0x398] sm:$0xff] %v767
  %976 = vst [vmem:[%s3 + $0x3a0] sm:$0xff] %v768
  %977 = vst [vmem:[%s3 + $0x3a8] sm:$0xff] %v769
  %978 = vst [vmem:[%s3 + $0x3b0] sm:$0xff] %v770
  %979 = vst [vmem:[%s3 + $0x3b8] sm:$0xff] %v771
  %980 = vst [vmem:[%s3 + $0x3c0] sm:$0xff] %v772
  %981 = vst [vmem:[%s3 + $0x3c8] sm:$0xff] %v773
  %982 = vst [vmem:[%s3 + $0x3d0] sm:$0xff] %v774
  %983 = vst [vmem:[%s3 + $0x3d8] sm:$0xff] %v775
  %984 = vst [vmem:[%s3 + $0x3e0] sm:$0xff] %v776
  %985 = vst [vmem:[%s3 + $0x3e8] sm:$0xff] %v777
  %986 = vst [vmem:[%s3 + $0x3f0] sm:$0xff] %v778
  %987 = vst [vmem:[%s3 + $0x3f8] sm:$0xff] %v779
  %988 = vst [vmem:[%s3 + $0x400] sm:$0xff] %v780
  %989 = vst [vmem:[%s3 + $0x408] sm:$0xff] %v781
  %990 = vst [vmem:[%s3 + $0x410] sm:$0xff] %v782
  %991 = vst [vmem:[%s3 + $0x418] sm:$0xff] %v783
  %992 = vst [vmem:[%s3 + $0x420] sm:$0xff] %v784
  %993 = vst [vmem:[%s3 + $0x428] sm:$0xff] %v785
  %994 = vst [vmem:[%s3 + $0x430] sm:$0xff] %v786
  %995 = vst [vmem:[%s3 + $0x438] sm:$0xff] %v787
  %996 = vst [vmem:[%s3 + $0x440] sm:$0xff] %v788
  %997 = vst [vmem:[%s3 + $0x448] sm:$0xff] %v789
  %998 = vst [vmem:[%s3 + $0x450] sm:$0xff] %v790
  %999 = vst [vmem:[%s3 + $0x458] sm:$0xff] %v791
  %1000 = vst [vmem:[%s3 + $0x460] sm:$0xff] %v792
  %1001 = vst [vmem:[%s3 + $0x468] sm:$0xff] %v793
  %1002 = vst [vmem:[%s3 + $0x470] sm:$0xff] %v794
  %1003 = vst [vmem:[%s3 + $0x478] sm:$0xff] %v795
  %1004 = vst [vmem:[%s3 + $0x480] sm:$0xff] %v796
  %1005 = vst [vmem:[%s3 + $0x488] sm:$0xff] %v797
  %1006 = vst [vmem:[%s3 + $0x490] sm:$0xff] %v798
  %1007 = vst [vmem:[%s3 + $0x498] sm:$0xff] %v799
  %1008 = vst [vmem:[%s3 + $0x4a0] sm:$0xff] %v800
  %1009 = vst [vmem:[%s3 + $0x4a8] sm:$0xff] %v801
  %1010 = vst [vmem:[%s3 + $0x4b0] sm:$0xff] %v802
  %1011 = vst [vmem:[%s3 + $0x4b8] sm:$0xff] %v803
  %1012 = vst [vmem:[%s3 + $0x4c0] sm:$0xff] %v804
  %1013 = vst [vmem:[%s3 + $0x4c8] sm:$0xff] %v805
  %1014 = vst [vmem:[%s3 + $0x4d0] sm:$0xff] %v806
  %1015 = vst [vmem:[%s3 + $0x4d8] sm:$0xff] %v807
  %1016 = vst [vmem:[%s3 + $0x4e0] sm:$0xff] %v808
  %1017 = vst [vmem:[%s3 + $0x4e8] sm:$0xff] %v809
  %1018 = vst [vmem:[%s3 + $0x4f0] sm:$0xff] %v810
  %1019 = vst [vmem:[%s3 + $0x4f8] sm:$0xff] %v811
  %1020 = vst [vmem:[%s3 + $0x500] sm:$0xff] %v812
  %1021 = vst [vmem:[%s3 + $0x508] sm:$0xff] %v813
  %1022 = vst [vmem:[%s3 + $0x510] sm:$0xff] %v814
  %1023 = vst [vmem:[%s3 + $0x518] sm:$0xff] %v815
  %1024 = vst [vmem:[%s3 + $0x520] sm:$0xff] %v816
  %1025 = vst [vmem:[%s3 + $0x528] sm:$0xff] %v817
  %1026 = vst [vmem:[%s3 + $0x530] sm:$0xff] %v818
  %1027 = vst [vmem:[%s3 + $0x538] sm:$0xff] %v819
  %1028 = vst [vmem:[%s3 + $0x540] sm:$0xff] %v820
  %1029 = vst [vmem:[%s3 + $0x548] sm:$0xff] %v821
  %1030 = vst [vmem:[%s3 + $0x550] sm:$0xff] %v822
  %1031 = vst [vmem:[%s3 + $0x558] sm:$0xff] %v823
  %1032 = vst [vmem:[%s3 + $0x560] sm:$0xff] %v824
  %1033 = vst [vmem:[%s3 + $0x568] sm:$0xff] %v825
  %1034 = vst [vmem:[%s3 + $0x570] sm:$0xff] %v826
  %1035 = vst [vmem:[%s3 + $0x578] sm:$0xff] %v827
  %1036 = vst [vmem:[%s3 + $0x580] sm:$0xff] %v828
  %1037 = vst [vmem:[%s3 + $0x588] sm:$0xff] %v829
  %1038 = vst [vmem:[%s3 + $0x590] sm:$0xff] %v830
  %1039 = vst [vmem:[%s3 + $0x598] sm:$0xff] %v831
  %1040 = vst [vmem:[%s3 + $0x5a0] sm:$0xff] %v832
  %1041 = vst [vmem:[%s3 + $0x5a8] sm:$0xff] %v833
  %1042 = vst [vmem:[%s3 + $0x5b0] sm:$0xff] %v834
  %1043 = vst [vmem:[%s3 + $0x5b8] sm:$0xff] %v835
  %1044 = vst [vmem:[%s3 + $0x5c0] sm:$0xff] %v836
  %1045 = vst [vmem:[%s3 + $0x5c8] sm:$0xff] %v837
  %1046 = vst [vmem:[%s3 + $0x5d0] sm:$0xff] %v838
  %1047 = vst [vmem:[%s3 + $0x5d8] sm:$0xff] %v839
  %1048 = vst [vmem:[%s3 + $0x5e0] sm:$0xff] %v840
  %1049 = vst [vmem:[%s3 + $0x5e8] sm:$0xff] %v841
  %1050 = vst [vmem:[%s3 + $0x5f0] sm:$0xff] %v842
  %1051 = vst [vmem:[%s3 + $0x5f8] sm:$0xff] %v843
  %1052 = vst [vmem:[%s3 + $0x600] sm:$0xff] %v844
  %1053 = vst [vmem:[%s3 + $0x608] sm:$0xff] %v845
  %1054 = vst [vmem:[%s3 + $0x610] sm:$0xff] %v846
  %1055 = vst [vmem:[%s3 + $0x618] sm:$0xff] %v847
  %1056 = vst [vmem:[%s3 + $0x620] sm:$0xff] %v848
  %1057 = vst [vmem:[%s3 + $0x628] sm:$0xff] %v849
  %1058 = vst [vmem:[%s3 + $0x630] sm:$0xff] %v850
  %1059 = vst [vmem:[%s3 + $0x638] sm:$0xff] %v851
  %1060 = vst [vmem:[%s3 + $0x640] sm:$0xff] %v852
  %1061 = vst [vmem:[%s3 + $0x648] sm:$0xff] %v853
  %1062 = vst [vmem:[%s3 + $0x650] sm:$0xff] %v854
  %1063 = vst [vmem:[%s3 + $0x658] sm:$0xff] %v855
  %1064 = vst [vmem:[%s3 + $0x660] sm:$0xff] %v856
  %1065 = vst [vmem:[%s3 + $0x668] sm:$0xff] %v857
  %1066 = vst [vmem:[%s3 + $0x670] sm:$0xff] %v858
  %1067 = vst [vmem:[%s3 + $0x678] sm:$0xff] %v859
  // Predicated region
  $region14: #{basic_convolution_block.3} parent=0 // pred_check
    _
  $region15: #{basic_convolution_block.3} parent=0 // pred_check_branch
    %1069 = sbr.rel (0) target = $region17
  $region16: #{basic_convolution_block.3} parent=0 // pred_region
    _
  $region17: #{basic_convolution_block.3} parent=0 // pred_fallthru
    _
  // Predicated region
  $region18: #{basic_convolution_block.3} parent=0 // pred_check
    _
  $region19: #{basic_convolution_block.3} parent=0 // pred_check_branch
    %1071 = sbr.rel (0) target = $region21
  $region20: #{basic_convolution_block.3} parent=0 // pred_region
    _
  $region21: #{basic_convolution_block.3} parent=0 // pred_fallthru
    _

// kernel: basic_convolution_block.2
$region0: #{basic_convolution_block.2}
  #allocation0 [shape = 'u32[]', space=smem, size = 0x4, offset = 0x4, fixed_abs, tag = 'smem constant byte address 0x4 - core index']
  #allocation1 [shape = 'u32[144,128]{1,0:T(1,128)}', space=vmem, size = 0x12000, scoped, tag = 'internal scratch']
  %s0 = inlined_call_operand.vmem [shape: f32[2,10,1,126,4], index: 0, kind: input, shape index: {}, may-alias: {0,1,2}]
  %s1 = inlined_call_operand.vmem [shape: f32[2,10,1,126,4], index: 1, kind: input, shape index: {}, may-alias: {0,1,2}]
  %s2 = inlined_call_operand.vmem [shape: f32[2,10,1,126,4], index: 2, kind: input, shape index: {}, may-alias: {0,1,2}]
  %s3 = inlined_call_operand.vmem [shape: f32[108,128], index: 3, kind: input, shape index: {}]
  %s4 = inlined_call_operand.vmem [shape: f32[104,1], index: 4, kind: input, shape index: {}]
  %s5 = inlined_call_operand.vmem [shape: f32[2,8,104,128], index: 5, kind: output, shape index: {0}]
  %s6 = inlined_call_operand.vmem [shape: f32[2,8,1,2,128], index: 6, kind: output, shape index: {1}]
  %7 = xla_tuple %s5, %s6
  %s8 = sld [smem:[#allocation0]]
  $region61: #{basic_convolution_block.2} parent=0
    _
  %s10 = ssub.s32 1, %s8
  %s11 = scalar_select 0, %s10, %s8
  loop: start=0, step=1, limit=18
  $region2: #{basic_convolution_block.2} parent=0 // loop_pre_header
    _
  $region3: #{basic_convolution_block.2} parent=0 // loop_header
    %s13 = sphi 0, %s17
    %p14 = scmp.ge.s32.totalorder %s13, 18
    %s20 = sphi 0, %s39
    %s21 = sphi 0, %s35
    %s22 = sphi 0, %s31
    %s23 = sphi 0, %s20
    %s24 = sphi 0, %s21
    %s25 = sphi 0, %s22
    %s26 = sphi 0, %s23
    %s27 = sphi 0, %s24
    %s28 = sphi 0, %s25
    %s46 = sphi 0, %s48
    %s49 = sphi 0, %s46
    %s50 = sphi 0, %s49
    %s66 = sphi 0, %s50
    %s78 = sphi 0, %s80
    %s81 = sphi 0, %s78
    %s82 = sphi 0, %s81
    %s98 = sphi 0, %s82
    %s110 = sphi 0, %s112
    %s113 = sphi 0, %s110
    %s114 = sphi 0, %s113
    %s130 = sphi 0, %s114
    %s134 = sphi 0, %s134
    %s136 = sphi 0, %s134
    %s137 = sphi 0, %s136
    %s151 = sphi 0, %s137
    %s157 = sphi 0, %s159
    %s160 = sphi 0, %s157
    %s161 = sphi 0, %s160
    %s177 = sphi 0, %s161
    %s187 = sphi 0, %s189
    %s190 = sphi 0, %s187
    %s191 = sphi 0, %s190
    %s207 = sphi 0, %s191
    %s217 = sphi 0, %s219
    %s220 = sphi 0, %s217
    %s221 = sphi 0, %s220
    %s237 = sphi 0, %s221
  $region4: #{basic_convolution_block.2} parent=0 // loop_header_branch
    %16 = sbr.rel (%p14) target = $region8
  $region5: #{basic_convolution_block.2} parent=0 // loop_body
    %s18 = ssub.s32 %s13, 1
    %s19 = ssub.s32 %s13, 2
    %s29 = sadd.s32 1, %s22
    %p30 = scmp.ge.s32.totalorder %s29, 1
    %s31 = scalar_select %p30, 0, %s29
    %s32 = sadd.s32 1, %s21
    %s33 = scalar_select %p30, %s32, %s21
    %p34 = scmp.ge.s32.totalorder %s33, 8
    %s35 = scalar_select %p34, 0, %s33
    %s36 = sadd.s32 1, %s20
    %s37 = scalar_select %p34, %s36, %s20
    %p38 = scmp.ge.s32.totalorder %s37, 2
    %s39 = scalar_select %p38, 0, %s37
    %s40 = ssub.s32 %s20, %s39
    %s41 = ssub.s32 %s21, %s35
    %s42 = sor.u32 %s40, %s41
    %s43 = ssub.s32 %s22, %s31
    %s44 = sor.u32 %s42, %s43
    %p45 = scmp.eq.s32.totalorder %s44, 0
    %s47 = sadd.s32 %s46, 1
    %s48 = scalar_select %p45, %s46, %s47
    %p51 = pneg %p45
    %p52 = scmp.eq.s32.totalorder %s13, 15
    %p53 = por %p51, %p52
    %p54 = scmp.ne.s32.totalorder %s46, %s49
    %p55 = scmp.eq.s32.totalorder %s13, 0
    %p56 = por %p54, %p55
    %p57 = scmp.ne.s32.totalorder %s46, %s49
    %p58 = scmp.eq.s32.totalorder %s18, 15
    %p59 = por %p57, %p58
    %p60 = scmp.ne.s32.totalorder %s49, %s50
    %p61 = scmp.eq.s32.totalorder %s18, 0
    %p62 = por %p60, %p61
    %p63 = scmp.ne.s32.totalorder %s49, %s50
    %p64 = scmp.eq.s32.totalorder %s19, 15
    %p65 = por %p63, %p64
    %p67 = scmp.ne.s32.totalorder %s50, %s66
    %p68 = scmp.eq.s32.totalorder %s19, 0
    %p69 = por %p67, %p68
    %s70 = sadd.s32 %s21, 1
    %s71 = sadd.s32 %s35, 1
    %s72 = ssub.s32 %s20, %s39
    %s73 = ssub.s32 %s70, %s71
    %s74 = sor.u32 %s72, %s73
    %s75 = ssub.s32 %s22, %s31
    %s76 = sor.u32 %s74, %s75
    %p77 = scmp.eq.s32.totalorder %s76, 0
    %s79 = sadd.s32 %s78, 1
    %s80 = scalar_select %p77, %s78, %s79
    %p83 = pneg %p77
    %p84 = scmp.eq.s32.totalorder %s13, 15
    %p85 = por %p83, %p84
    %p86 = scmp.ne.s32.totalorder %s78, %s81
    %p87 = scmp.eq.s32.totalorder %s13, 0
    %p88 = por %p86, %p87
    %p89 = scmp.ne.s32.totalorder %s78, %s81
    %p90 = scmp.eq.s32.totalorder %s18, 15
    %p91 = por %p89, %p90
    %p92 = scmp.ne.s32.totalorder %s81, %s82
    %p93 = scmp.eq.s32.totalorder %s18, 0
    %p94 = por %p92, %p93
    %p95 = scmp.ne.s32.totalorder %s81, %s82
    %p96 = scmp.eq.s32.totalorder %s19, 15
    %p97 = por %p95, %p96
    %p99 = scmp.ne.s32.totalorder %s82, %s98
    %p100 = scmp.eq.s32.totalorder %s19, 0
    %p101 = por %p99, %p100
    %s102 = sadd.s32 %s21, 2
    %s103 = sadd.s32 %s35, 2
    %s104 = ssub.s32 %s20, %s39
    %s105 = ssub.s32 %s102, %s103
    %s106 = sor.u32 %s104, %s105
    %s107 = ssub.s32 %s22, %s31
    %s108 = sor.u32 %s106, %s107
    %p109 = scmp.eq.s32.totalorder %s108, 0
    %s111 = sadd.s32 %s110, 1
    %s112 = scalar_select %p109, %s110, %s111
    %p115 = pneg %p109
    %p116 = scmp.eq.s32.totalorder %s13, 15
    %p117 = por %p115, %p116
    %p118 = scmp.ne.s32.totalorder %s110, %s113
    %p119 = scmp.eq.s32.totalorder %s13, 0
    %p120 = por %p118, %p119
    %p121 = scmp.ne.s32.totalorder %s110, %s113
    %p122 = scmp.eq.s32.totalorder %s18, 15
    %p123 = por %p121, %p122
    %p124 = scmp.ne.s32.totalorder %s113, %s114
    %p125 = scmp.eq.s32.totalorder %s18, 0
    %p126 = por %p124, %p125
    %p127 = scmp.ne.s32.totalorder %s113, %s114
    %p128 = scmp.eq.s32.totalorder %s19, 15
    %p129 = por %p127, %p128
    %p131 = scmp.ne.s32.totalorder %s114, %s130
    %p132 = scmp.eq.s32.totalorder %s19, 0
    %p133 = por %p131, %p132
    %s135 = sadd.s32 %s134, 1
    %p138 = scmp.eq.s32.totalorder %s13, 15
    %p139 = scmp.ne.s32.totalorder %s134, %s136
    %p140 = scmp.eq.s32.totalorder %s13, 0
    %p141 = por %p139, %p140
    %p142 = scmp.ne.s32.totalorder %s134, %s136
    %p143 = scmp.eq.s32.totalorder %s18, 15
    %p144 = por %p142, %p143
    %p145 = scmp.ne.s32.totalorder %s136, %s137
    %p146 = scmp.eq.s32.totalorder %s18, 0
    %p147 = por %p145, %p146
    %p148 = scmp.ne.s32.totalorder %s136, %s137
    %p149 = scmp.eq.s32.totalorder %s19, 15
    %p150 = por %p148, %p149
    %p152 = scmp.ne.s32.totalorder %s137, %s151
    %p153 = scmp.eq.s32.totalorder %s19, 0
    %p154 = por %p152, %p153
    %s155 = ssub.s32 %s22, %s31
    %p156 = scmp.eq.s32.totalorder %s155, 0
    %s158 = sadd.s32 %s157, 1
    %s159 = scalar_select %p156, %s157, %s158
    %p162 = pneg %p156
    %p163 = scmp.eq.s32.totalorder %s13, 15
    %p164 = por %p162, %p163
    %p165 = scmp.ne.s32.totalorder %s157, %s160
    %p166 = scmp.eq.s32.totalorder %s13, 0
    %p167 = por %p165, %p166
    %p168 = scmp.ne.s32.totalorder %s157, %s160
    %p169 = scmp.eq.s32.totalorder %s18, 15
    %p170 = por %p168, %p169
    %p171 = scmp.ne.s32.totalorder %s160, %s161
    %p172 = scmp.eq.s32.totalorder %s18, 0
    %p173 = por %p171, %p172
    %p174 = scmp.ne.s32.totalorder %s160, %s161
    %p175 = scmp.eq.s32.totalorder %s19, 15
    %p176 = por %p174, %p175
    %p178 = scmp.ne.s32.totalorder %s161, %s177
    %p179 = scmp.eq.s32.totalorder %s19, 0
    %p180 = por %p178, %p179
    %s181 = ssub.s32 %s20, %s39
    %s182 = ssub.s32 %s21, %s35
    %s183 = sor.u32 %s181, %s182
    %s184 = ssub.s32 %s22, %s31
    %s185 = sor.u32 %s183, %s184
    %p186 = scmp.eq.s32.totalorder %s185, 0
    %s188 = sadd.s32 %s187, 1
    %s189 = scalar_select %p186, %s187, %s188
    %p192 = pneg %p186
    %p193 = scmp.eq.s32.totalorder %s13, 15
    %p194 = por %p192, %p193
    %p195 = scmp.ne.s32.totalorder %s187, %s190
    %p196 = scmp.eq.s32.totalorder %s13, 0
    %p197 = por %p195, %p196
    %p198 = scmp.ne.s32.totalorder %s187, %s190
    %p199 = scmp.eq.s32.totalorder %s18, 15
    %p200 = por %p198, %p199
    %p201 = scmp.ne.s32.totalorder %s190, %s191
    %p202 = scmp.eq.s32.totalorder %s18, 0
    %p203 = por %p201, %p202
    %p204 = scmp.ne.s32.totalorder %s190, %s191
    %p205 = scmp.eq.s32.totalorder %s19, 15
    %p206 = por %p204, %p205
    %p208 = scmp.ne.s32.totalorder %s191, %s207
    %p209 = scmp.eq.s32.totalorder %s19, 0
    %p210 = por %p208, %p209
    %s211 = ssub.s32 %s20, %s39
    %s212 = ssub.s32 %s21, %s35
    %s213 = sor.u32 %s211, %s212
    %s214 = ssub.s32 %s22, %s31
    %s215 = sor.u32 %s213, %s214
    %p216 = scmp.eq.s32.totalorder %s215, 0
    %s218 = sadd.s32 %s217, 1
    %s219 = scalar_select %p216, %s217, %s218
    %p222 = pneg %p216
    %p223 = scmp.eq.s32.totalorder %s13, 15
    %p224 = por %p222, %p223
    %p225 = scmp.ne.s32.totalorder %s217, %s220
    %p226 = scmp.eq.s32.totalorder %s13, 0
    %p227 = por %p225, %p226
    %p228 = scmp.ne.s32.totalorder %s217, %s220
    %p229 = scmp.eq.s32.totalorder %s18, 15
    %p230 = por %p228, %p229
    %p231 = scmp.ne.s32.totalorder %s220, %s221
    %p232 = scmp.eq.s32.totalorder %s18, 0
    %p233 = por %p231, %p232
    %p234 = scmp.ne.s32.totalorder %s220, %s221
    %p235 = scmp.eq.s32.totalorder %s19, 15
    %p236 = por %p234, %p235
    %p238 = scmp.ne.s32.totalorder %s221, %s237
    %p239 = scmp.eq.s32.totalorder %s19, 0
    %p240 = por %p238, %p239
    %p241 = scmp.le.s32.totalorder 1, %s13
    %p242 = scmp.lt.s32.totalorder %s13, 17
    %p243 = pnand %p241, %p242
    %p244 = pneg %p243
    // Predicated region
    $region9: #{basic_convolution_block.2} parent=5 // pred_check
      _
    $region10: #{basic_convolution_block.2} parent=5 // pred_check_branch
      %246 = sbr.rel (%p243) target = $region12
    $region11: #{basic_convolution_block.2} parent=5 // pred_region
      %s247 = ssub.s32 %s13, 1
      // Predicated region
      $region13: #{basic_convolution_block.2} parent=11 // pred_check
        %p248 = pneg %p147
      $region14: #{basic_convolution_block.2} parent=11 // pred_check_branch
        %250 = sbr.rel (%p248) target = $region16
      $region15: #{basic_convolution_block.2} parent=11 // pred_region
        _
      $region16: #{basic_convolution_block.2} parent=11 // pred_fallthru
        _
      // Predicated region
      $region17: #{basic_convolution_block.2} parent=11 // pred_check
        %p251 = pneg %p173
      $region18: #{basic_convolution_block.2} parent=11 // pred_check_branch
        %253 = sbr.rel (%p251) target = $region20
      $region19: #{basic_convolution_block.2} parent=11 // pred_region
        %s254 = smul.u32 13, %s25
        %p255 = scmp.lt.s32.totalorder %s254, 12
        %s256 = scalar_select %p255, %s254, 12
        %s257 = smul.addr %s256, 8
        %s258 = scalar_lea.vmem %s4, %s257
        %s259 = smul.u32 13, %s25
      $region20: #{basic_convolution_block.2} parent=11 // pred_fallthru
        _
    $region12: #{basic_convolution_block.2} parent=5 // pred_fallthru
      _
    %p260 = scmp.lt.s32.totalorder %s13, 16
    // Predicated region
    $region21: #{basic_convolution_block.2} parent=5 // pred_check
      %p261 = pneg %p260
    $region22: #{basic_convolution_block.2} parent=5 // pred_check_branch
      %263 = sbr.rel (%p261) target = $region24
    $region23: #{basic_convolution_block.2} parent=5 // pred_region
      // Predicated region
      $region25: #{basic_convolution_block.2} parent=23 // pred_check
        %p264 = pneg %p56
      $region26: #{basic_convolution_block.2} parent=23 // pred_check_branch
        %266 = sbr.rel (%p264) target = $region28
      $region27: #{basic_convolution_block.2} parent=23 // pred_region
        %p267 = scmp.lt.s32.totalorder %s20, 1
        %s268 = scalar_select %p267, %s20, 1
        %p269 = scmp.lt.s32.totalorder %s21, 9
        %s270 = scalar_select %p269, %s21, 9
        %p271 = scmp.lt.s32.totalorder %s22, 0
        %s272 = scalar_select %p271, %s22, 0
        %s273 = smul.addr %s272, 16
        %s274 = smul.addr %s270, 16
        %s275 = sadd.s32 %s273, %s274
        %s276 = smul.addr %s268, 160
        %s277 = sadd.s32 %s275, %s276
        %s278 = smul.addr %s277, 8
        %s279 = scalar_lea.vmem %s0, %s278
      $region28: #{basic_convolution_block.2} parent=23 // pred_fallthru
        _
      // Predicated region
      $region29: #{basic_convolution_block.2} parent=23 // pred_check
        %p280 = pneg %p88
      $region30: #{basic_convolution_block.2} parent=23 // pred_check_branch
        %282 = sbr.rel (%p280) target = $region32
      $region31: #{basic_convolution_block.2} parent=23 // pred_region
        %s283 = sadd.s32 %s21, 1
        %p284 = scmp.lt.s32.totalorder %s20, 1
        %s285 = scalar_select %p284, %s20, 1
        %p286 = scmp.lt.s32.totalorder %s283, 9
        %s287 = scalar_select %p286, %s283, 9
        %p288 = scmp.lt.s32.totalorder %s22, 0
        %s289 = scalar_select %p288, %s22, 0
        %s290 = smul.addr %s289, 16
        %s291 = smul.addr %s287, 16
        %s292 = sadd.s32 %s290, %s291
        %s293 = smul.addr %s285, 160
        %s294 = sadd.s32 %s292, %s293
        %s295 = smul.addr %s294, 8
        %s296 = scalar_lea.vmem %s1, %s295
        %s297 = sadd.s32 %s21, 1
      $region32: #{basic_convolution_block.2} parent=23 // pred_fallthru
        _
      // Predicated region
      $region33: #{basic_convolution_block.2} parent=23 // pred_check
        %p298 = pneg %p120
      $region34: #{basic_convolution_block.2} parent=23 // pred_check_branch
        %300 = sbr.rel (%p298) target = $region36
      $region35: #{basic_convolution_block.2} parent=23 // pred_region
        %s301 = sadd.s32 %s21, 2
        %p302 = scmp.lt.s32.totalorder %s20, 1
        %s303 = scalar_select %p302, %s20, 1
        %p304 = scmp.lt.s32.totalorder %s301, 9
        %s305 = scalar_select %p304, %s301, 9
        %p306 = scmp.lt.s32.totalorder %s22, 0
        %s307 = scalar_select %p306, %s22, 0
        %s308 = smul.addr %s307, 16
        %s309 = smul.addr %s305, 16
        %s310 = sadd.s32 %s308, %s309
        %s311 = smul.addr %s303, 160
        %s312 = sadd.s32 %s310, %s311
        %s313 = smul.addr %s312, 8
        %s314 = scalar_lea.vmem %s2, %s313
        %s315 = sadd.s32 %s21, 2
      $region36: #{basic_convolution_block.2} parent=23 // pred_fallthru
        _
    $region24: #{basic_convolution_block.2} parent=5 // pred_fallthru
      _
    %p316 = scmp.le.s32.totalorder 1, %s13
    %p317 = scmp.lt.s32.totalorder %s13, 17
    %p318 = pnand %p316, %p317
    %p319 = pneg %p318
    // Predicated region
    $region37: #{basic_convolution_block.2} parent=5 // pred_check
      _
    $region38: #{basic_convolution_block.2} parent=5 // pred_check_branch
      %321 = sbr.rel (%p318) target = $region40
    $region39: #{basic_convolution_block.2} parent=5 // pred_region
      %s322 = ssub.s32 %s13, 1
      %p323 = scmp.lt.s32.totalorder %s23, 1
      %s324 = scalar_select %p323, %s23, 1
      %p325 = scmp.lt.s32.totalorder %s24, 9
      %s326 = scalar_select %p325, %s24, 9
      %p327 = scmp.lt.s32.totalorder %s25, 0
      %s328 = scalar_select %p327, %s25, 0
      %s329 = smul.addr %s328, 16
      %s330 = smul.addr %s326, 16
      %s331 = sadd.s32 %s329, %s330
      %s332 = smul.addr %s324, 160
      %s333 = sadd.s32 %s331, %s332
      %s334 = smul.addr %s333, 8
      %s335 = scalar_lea.vmem %s0, %s334
      %p336 = pneg %p62
      %p337 = pneg %p59
      %s338 = sadd.s32 %s24, 1
      %p339 = scmp.lt.s32.totalorder %s23, 1
      %s340 = scalar_select %p339, %s23, 1
      %p341 = scmp.lt.s32.totalorder %s338, 9
      %s342 = scalar_select %p341, %s338, 9
      %p343 = scmp.lt.s32.totalorder %s25, 0
      %s344 = scalar_select %p343, %s25, 0
      %s345 = smul.addr %s344, 16
      %s346 = smul.addr %s342, 16
      %s347 = sadd.s32 %s345, %s346
      %s348 = smul.addr %s340, 160
      %s349 = sadd.s32 %s347, %s348
      %s350 = smul.addr %s349, 8
      %s351 = scalar_lea.vmem %s1, %s350
      %p352 = pneg %p94
      %p353 = pneg %p91
      %s354 = sadd.s32 %s24, 2
      %p355 = scmp.lt.s32.totalorder %s23, 1
      %s356 = scalar_select %p355, %s23, 1
      %p357 = scmp.lt.s32.totalorder %s354, 9
      %s358 = scalar_select %p357, %s354, 9
      %p359 = scmp.lt.s32.totalorder %s25, 0
      %s360 = scalar_select %p359, %s25, 0
      %s361 = smul.addr %s360, 16
      %s362 = smul.addr %s358, 16
      %s363 = sadd.s32 %s361, %s362
      %s364 = smul.addr %s356, 160
      %s365 = sadd.s32 %s363, %s364
      %s366 = smul.addr %s365, 8
      %s367 = scalar_lea.vmem %s2, %s366
      %p368 = pneg %p126
      %p369 = pneg %p123
      %p370 = pneg %p147
      %p371 = pneg %p144
      %s372 = smul.u32 13, %s25
      %p373 = scmp.lt.s32.totalorder %s372, 12
      %s374 = scalar_select %p373, %s372, 12
      %s375 = smul.addr %s374, 8
      %s376 = scalar_lea.vmem %s4, %s375
      %p377 = pneg %p173
      %p378 = pneg %p170
      %p379 = pneg %p203
      %p380 = pneg %p200
      %s381 = smul.u32 13, %s25
      %p382 = scmp.lt.s32.totalorder %s23, 1
      %s383 = scalar_select %p382, %s23, 1
      %p384 = scmp.lt.s32.totalorder %s24, 7
      %s385 = scalar_select %p384, %s24, 7
      %p386 = scmp.lt.s32.totalorder %s381, 12
      %s387 = scalar_select %p386, %s381, 12
      %s388 = smul.addr %s385, 13
      %s389 = sadd.s32 %s387, %s388
      %s390 = smul.addr %s383, 104
      %s391 = sadd.s32 %s389, %s390
      %s392 = smul.addr %s391, 8
      %s393 = scalar_lea.vmem %s5, %s392
      %p394 = pneg %p233
      %p395 = pneg %p230
      %p396 = scmp.lt.s32.totalorder %s23, 1
      %s397 = scalar_select %p396, %s23, 1
      %p398 = scmp.lt.s32.totalorder %s24, 7
      %s399 = scalar_select %p398, %s24, 7
      %p400 = scmp.lt.s32.totalorder %s25, 0
      %s401 = scalar_select %p400, %s25, 0
      %s402 = sadd.s32 %s401, %s399
      %s403 = smul.addr %s397, 8
      %s404 = sadd.s32 %s402, %s403
      %s405 = smul.addr %s404, 2
      %s406 = scalar_lea.vmem %s6, %s405
      %p407 = scmp.lt.s32.totalorder %s23, 1
      %s408 = scalar_select %p407, %s23, 1
      %p409 = scmp.lt.s32.totalorder %s24, 9
      %s410 = scalar_select %p409, %s24, 9
      %p411 = scmp.lt.s32.totalorder %s25, 0
      %s412 = scalar_select %p411, %s25, 0
      %s413 = smul.addr %s412, 16
      %s414 = smul.addr %s410, 16
      %s415 = sadd.s32 %s413, %s414
      %s416 = smul.addr %s408, 160
      %s417 = sadd.s32 %s415, %s416
      %s418 = smul.addr %s417, 8
      %s419 = scalar_lea.vmem %s0, %s418
      %s420 = sadd.s32 %s24, 1
      %p421 = scmp.lt.s32.totalorder %s23, 1
      %s422 = scalar_select %p421, %s23, 1
      %p423 = scmp.lt.s32.totalorder %s420, 9
      %s424 = scalar_select %p423, %s420, 9
      %p425 = scmp.lt.s32.totalorder %s25, 0
      %s426 = scalar_select %p425, %s25, 0
      %s427 = smul.addr %s426, 16
      %s428 = smul.addr %s424, 16
      %s429 = sadd.s32 %s427, %s428
      %s430 = smul.addr %s422, 160
      %s431 = sadd.s32 %s429, %s430
      %s432 = smul.addr %s431, 8
      %s433 = scalar_lea.vmem %s1, %s432
      %s434 = sadd.s32 %s24, 1
      %s435 = sadd.s32 %s24, 2
      %p436 = scmp.lt.s32.totalorder %s23, 1
      %s437 = scalar_select %p436, %s23, 1
      %p438 = scmp.lt.s32.totalorder %s435, 9
      %s439 = scalar_select %p438, %s435, 9
      %p440 = scmp.lt.s32.totalorder %s25, 0
      %s441 = scalar_select %p440, %s25, 0
      %s442 = smul.addr %s441, 16
      %s443 = smul.addr %s439, 16
      %s444 = sadd.s32 %s442, %s443
      %s445 = smul.addr %s437, 160
      %s446 = sadd.s32 %s444, %s445
      %s447 = smul.addr %s446, 8
      %s448 = scalar_lea.vmem %s2, %s447
      %s449 = sadd.s32 %s24, 2
      %s450 = smul.u32 13, %s25
      %p451 = scmp.lt.s32.totalorder %s450, 12
      %s452 = scalar_select %p451, %s450, 12
      %s453 = smul.addr %s452, 8
      %s454 = scalar_lea.vmem %s4, %s453
      %s455 = smul.u32 13, %s25
      %s456 = smul.u32 13, %s25
      %p457 = scmp.lt.s32.totalorder %s23, 1
      %s458 = scalar_select %p457, %s23, 1
      %p459 = scmp.lt.s32.totalorder %s24, 7
      %s460 = scalar_select %p459, %s24, 7
      %p461 = scmp.lt.s32.totalorder %s456, 12
      %s462 = scalar_select %p461, %s456, 12
      %s463 = smul.addr %s460, 13
      %s464 = sadd.s32 %s462, %s463
      %s465 = smul.addr %s458, 104
      %s466 = sadd.s32 %s464, %s465
      %s467 = smul.addr %s466, 8
      %s468 = scalar_lea.vmem %s5, %s467
      %s469 = smul.u32 13, %s25
      %p470 = scmp.lt.s32.totalorder %s23, 1
      %s471 = scalar_select %p470, %s23, 1
      %p472 = scmp.lt.s32.totalorder %s24, 7
      %s473 = scalar_select %p472, %s24, 7
      %p474 = scmp.lt.s32.totalorder %s25, 0
      %s475 = scalar_select %p474, %s25, 0
      %s476 = sadd.s32 %s475, %s473
      %s477 = smul.addr %s471, 8
      %s478 = sadd.s32 %s476, %s477
      %s479 = smul.addr %s478, 2
      %s480 = scalar_lea.vmem %s6, %s479
      %v481 = vld [vmem:[%s419] sm:$0xff]
      %v482 = vld [vmem:[%s419 + $0x8] sm:$0xff]
      %v483 = vld [vmem:[%s419 + $0x10] sm:$0xff]
      %v484 = vld [vmem:[%s419 + $0x18] sm:$0xff]
      %v485 = vld [vmem:[%s419 + $0x20] sm:$0xff]
      %v486 = vld [vmem:[%s419 + $0x28] sm:$0xff]
      %v487 = vld [vmem:[%s419 + $0x30] sm:$0xff]
      %v488 = vld [vmem:[%s419 + $0x38] sm:$0xff]
      %v489 = vld [vmem:[%s419 + $0x40] sm:$0xff]
      %v490 = vld [vmem:[%s419 + $0x48] sm:$0xff]
      %v491 = vld [vmem:[%s419 + $0x50] sm:$0xff]
      %v492 = vld [vmem:[%s419 + $0x58] sm:$0xff]
      %v493 = vld [vmem:[%s419 + $0x60] sm:$0xff]
      %v494 = vld [vmem:[%s419 + $0x1] sm:$0xff]
      %v495 = vld [vmem:[%s419 + $0x9] sm:$0xff]
      %v496 = vld [vmem:[%s419 + $0x11] sm:$0xff]
      %v497 = vld [vmem:[%s419 + $0x19] sm:$0xff]
      %v498 = vld [vmem:[%s419 + $0x21] sm:$0xff]
      %v499 = vld [vmem:[%s419 + $0x29] sm:$0xff]
      %v500 = vld [vmem:[%s419 + $0x31] sm:$0xff]
      %v501 = vld [vmem:[%s419 + $0x39] sm:$0xff]
      %v502 = vld [vmem:[%s419 + $0x41] sm:$0xff]
      %v503 = vld [vmem:[%s419 + $0x49] sm:$0xff]
      %v504 = vld [vmem:[%s419 + $0x51] sm:$0xff]
      %v505 = vld [vmem:[%s419 + $0x59] sm:$0xff]
      %v506 = vld [vmem:[%s419 + $0x61] sm:$0xff]
      %v507 = vld [vmem:[%s419 + $0x2] sm:$0xff]
      %v508 = vld [vmem:[%s419 + $0xa] sm:$0xff]
      %v509 = vld [vmem:[%s419 + $0x12] sm:$0xff]
      %v510 = vld [vmem:[%s419 + $0x1a] sm:$0xff]
      %v511 = vld [vmem:[%s419 + $0x22] sm:$0xff]
      %v512 = vld [vmem:[%s419 + $0x2a] sm:$0xff]
      %v513 = vld [vmem:[%s419 + $0x32] sm:$0xff]
      %v514 = vld [vmem:[%s419 + $0x3a] sm:$0xff]
      %v515 = vld [vmem:[%s419 + $0x42] sm:$0xff]
      %v516 = vld [vmem:[%s419 + $0x4a] sm:$0xff]
      %v517 = vld [vmem:[%s419 + $0x52] sm:$0xff]
      %v518 = vld [vmem:[%s419 + $0x5a] sm:$0xff]
      %v519 = vld [vmem:[%s419 + $0x62] sm:$0xff]
      %v520 = vld [vmem:[%s419 + $0x6a] sm:$0xff]
      %v521 = vld [vmem:[%s419 + $0xb] sm:$0xff]
      %v522 = vld [vmem:[%s419 + $0x13] sm:$0xff]
      %v523 = vld [vmem:[%s419 + $0x1b] sm:$0xff]
      %v524 = vld [vmem:[%s419 + $0x23] sm:$0xff]
      %v525 = vld [vmem:[%s419 + $0x2b] sm:$0xff]
      %v526 = vld [vmem:[%s419 + $0x33] sm:$0xff]
      %v527 = vld [vmem:[%s419 + $0x3b] sm:$0xff]
      %v528 = vld [vmem:[%s419 + $0x43] sm:$0xff]
      %v529 = vld [vmem:[%s419 + $0x4b] sm:$0xff]
      %v530 = vld [vmem:[%s419 + $0x53] sm:$0xff]
      %v531 = vld [vmem:[%s419 + $0x5b] sm:$0xff]
      %v532 = vld [vmem:[%s419 + $0x63] sm:$0xff]
      %v533 = vld [vmem:[%s419 + $0x6b] sm:$0xff]
      %v534 = vld [vmem:[%s419 + $0xc] sm:$0xff]
      %v535 = vld [vmem:[%s419 + $0x14] sm:$0xff]
      %v536 = vld [vmem:[%s419 + $0x1c] sm:$0xff]
      %v537 = vld [vmem:[%s419 + $0x24] sm:$0xff]
      %v538 = vld [vmem:[%s419 + $0x2c] sm:$0xff]
      %v539 = vld [vmem:[%s419 + $0x34] sm:$0xff]
      %v540 = vld [vmem:[%s419 + $0x3c] sm:$0xff]
      %v541 = vld [vmem:[%s419 + $0x44] sm:$0xff]
      %v542 = vld [vmem:[%s419 + $0x4c] sm:$0xff]
      %v543 = vld [vmem:[%s419 + $0x54] sm:$0xff]
      %v544 = vld [vmem:[%s419 + $0x5c] sm:$0xff]
      %v545 = vld [vmem:[%s419 + $0x64] sm:$0xff]
      %v546 = vld [vmem:[%s419 + $0x6c] sm:$0xff]
      %v547 = vld [vmem:[%s419 + $0x74] sm:$0xff]
      %v548 = vld [vmem:[%s419 + $0x15] sm:$0xff]
      %v549 = vld [vmem:[%s419 + $0x1d] sm:$0xff]
      %v550 = vld [vmem:[%s419 + $0x25] sm:$0xff]
      %v551 = vld [vmem:[%s419 + $0x2d] sm:$0xff]
      %v552 = vld [vmem:[%s419 + $0x35] sm:$0xff]
      %v553 = vld [vmem:[%s419 + $0x3d] sm:$0xff]
      %v554 = vld [vmem:[%s419 + $0x45] sm:$0xff]
      %v555 = vld [vmem:[%s419 + $0x4d] sm:$0xff]
      %v556 = vld [vmem:[%s419 + $0x55] sm:$0xff]
      %v557 = vld [vmem:[%s419 + $0x5d] sm:$0xff]
      %v558 = vld [vmem:[%s419 + $0x65] sm:$0xff]
      %v559 = vld [vmem:[%s419 + $0x6d] sm:$0xff]
      %v560 = vld [vmem:[%s419 + $0x75] sm:$0xff]
      %v561 = vld [vmem:[%s419 + $0x16] sm:$0xff]
      %v562 = vld [vmem:[%s419 + $0x1e] sm:$0xff]
      %v563 = vld [vmem:[%s419 + $0x26] sm:$0xff]
      %v564 = vld [vmem:[%s419 + $0x2e] sm:$0xff]
      %v565 = vld [vmem:[%s419 + $0x36] sm:$0xff]
      %v566 = vld [vmem:[%s419 + $0x3e] sm:$0xff]
      %v567 = vld [vmem:[%s419 + $0x46] sm:$0xff]
      %v568 = vld [vmem:[%s419 + $0x4e] sm:$0xff]
      %v569 = vld [vmem:[%s419 + $0x56] sm:$0xff]
      %v570 = vld [vmem:[%s419 + $0x5e] sm:$0xff]
      %v571 = vld [vmem:[%s419 + $0x66] sm:$0xff]
      %v572 = vld [vmem:[%s419 + $0x6e] sm:$0xff]
      %v573 = vld [vmem:[%s419 + $0x76] sm:$0xff]
      %v574 = vld [vmem:[%s433] sm:$0xff]
      %v575 = vld [vmem:[%s433 + $0x8] sm:$0xff]
      %v576 = vld [vmem:[%s433 + $0x10] sm:$0xff]
      %v577 = vld [vmem:[%s433 + $0x18] sm:$0xff]
      %v578 = vld [vmem:[%s433 + $0x20] sm:$0xff]
      %v579 = vld [vmem:[%s433 + $0x28] sm:$0xff]
      %v580 = vld [vmem:[%s433 + $0x30] sm:$0xff]
      %v581 = vld [vmem:[%s433 + $0x38] sm:$0xff]
      %v582 = vld [vmem:[%s433 + $0x40] sm:$0xff]
      %v583 = vld [vmem:[%s433 + $0x48] sm:$0xff]
      %v584 = vld [vmem:[%s433 + $0x50] sm:$0xff]
      %v585 = vld [vmem:[%s433 + $0x58] sm:$0xff]
      %v586 = vld [vmem:[%s433 + $0x60] sm:$0xff]
      %v587 = vld [vmem:[%s433 + $0x1] sm:$0xff]
      %v588 = vld [vmem:[%s433 + $0x9] sm:$0xff]
      %v589 = vld [vmem:[%s433 + $0x11] sm:$0xff]
      %v590 = vld [vmem:[%s433 + $0x19] sm:$0xff]
      %v591 = vld [vmem:[%s433 + $0x21] sm:$0xff]
      %v592 = vld [vmem:[%s433 + $0x29] sm:$0xff]
      %v593 = vld [vmem:[%s433 + $0x31] sm:$0xff]
      %v594 = vld [vmem:[%s433 + $0x39] sm:$0xff]
      %v595 = vld [vmem:[%s433 + $0x41] sm:$0xff]
      %v596 = vld [vmem:[%s433 + $0x49] sm:$0xff]
      %v597 = vld [vmem:[%s433 + $0x51] sm:$0xff]
      %v598 = vld [vmem:[%s433 + $0x59] sm:$0xff]
      %v599 = vld [vmem:[%s433 + $0x61] sm:$0xff]
      %v600 = vld [vmem:[%s433 + $0x2] sm:$0xff]
      %v601 = vld [vmem:[%s433 + $0xa] sm:$0xff]
      %v602 = vld [vmem:[%s433 + $0x12] sm:$0xff]
      %v603 = vld [vmem:[%s433 + $0x1a] sm:$0xff]
      %v604 = vld [vmem:[%s433 + $0x22] sm:$0xff]
      %v605 = vld [vmem:[%s433 + $0x2a] sm:$0xff]
      %v606 = vld [vmem:[%s433 + $0x32] sm:$0xff]
      %v607 = vld [vmem:[%s433 + $0x3a] sm:$0xff]
      %v608 = vld [vmem:[%s433 + $0x42] sm:$0xff]
      %v609 = vld [vmem:[%s433 + $0x4a] sm:$0xff]
      %v610 = vld [vmem:[%s433 + $0x52] sm:$0xff]
      %v611 = vld [vmem:[%s433 + $0x5a] sm:$0xff]
      %v612 = vld [vmem:[%s433 + $0x62] sm:$0xff]
      %v613 = vld [vmem:[%s433 + $0x6a] sm:$0xff]
      %v614 = vld [vmem:[%s433 + $0xb] sm:$0xff]
      %v615 = vld [vmem:[%s433 + $0x13] sm:$0xff]
      %v616 = vld [vmem:[%s433 + $0x1b] sm:$0xff]
      %v617 = vld [vmem:[%s433 + $0x23] sm:$0xff]
      %v618 = vld [vmem:[%s433 + $0x2b] sm:$0xff]
      %v619 = vld [vmem:[%s433 + $0x33] sm:$0xff]
      %v620 = vld [vmem:[%s433 + $0x3b] sm:$0xff]
      %v621 = vld [vmem:[%s433 + $0x43] sm:$0xff]
      %v622 = vld [vmem:[%s433 + $0x4b] sm:$0xff]
      %v623 = vld [vmem:[%s433 + $0x53] sm:$0xff]
      %v624 = vld [vmem:[%s433 + $0x5b] sm:$0xff]
      %v625 = vld [vmem:[%s433 + $0x63] sm:$0xff]
      %v626 = vld [vmem:[%s433 + $0x6b] sm:$0xff]
      %v627 = vld [vmem:[%s433 + $0xc] sm:$0xff]
      %v628 = vld [vmem:[%s433 + $0x14] sm:$0xff]
      %v629 = vld [vmem:[%s433 + $0x1c] sm:$0xff]
      %v630 = vld [vmem:[%s433 + $0x24] sm:$0xff]
      %v631 = vld [vmem:[%s433 + $0x2c] sm:$0xff]
      %v632 = vld [vmem:[%s433 + $0x34] sm:$0xff]
      %v633 = vld [vmem:[%s433 + $0x3c] sm:$0xff]
      %v634 = vld [vmem:[%s433 + $0x44] sm:$0xff]
      %v635 = vld [vmem:[%s433 + $0x4c] sm:$0xff]
      %v636 = vld [vmem:[%s433 + $0x54] sm:$0xff]
      %v637 = vld [vmem:[%s433 + $0x5c] sm:$0xff]
      %v638 = vld [vmem:[%s433 + $0x64] sm:$0xff]
      %v639 = vld [vmem:[%s433 + $0x6c] sm:$0xff]
      %v640 = vld [vmem:[%s433 + $0x74] sm:$0xff]
      %v641 = vld [vmem:[%s433 + $0x15] sm:$0xff]
      %v642 = vld [vmem:[%s433 + $0x1d] sm:$0xff]
      %v643 = vld [vmem:[%s433 + $0x25] sm:$0xff]
      %v644 = vld [vmem:[%s433 + $0x2d] sm:$0xff]
      %v645 = vld [vmem:[%s433 + $0x35] sm:$0xff]
      %v646 = vld [vmem:[%s433 + $0x3d] sm:$0xff]
      %v647 = vld [vmem:[%s433 + $0x45] sm:$0xff]
      %v648 = vld [vmem:[%s433 + $0x4d] sm:$0xff]
      %v649 = vld [vmem:[%s433 + $0x55] sm:$0xff]
      %v650 = vld [vmem:[%s433 + $0x5d] sm:$0xff]
      %v651 = vld [vmem:[%s433 + $0x65] sm:$0xff]
      %v652 = vld [vmem:[%s433 + $0x6d] sm:$0xff]
      %v653 = vld [vmem:[%s433 + $0x75] sm:$0xff]
      %v654 = vld [vmem:[%s433 + $0x16] sm:$0xff]
      %v655 = vld [vmem:[%s433 + $0x1e] sm:$0xff]
      %v656 = vld [vmem:[%s433 + $0x26] sm:$0xff]
      %v657 = vld [vmem:[%s433 + $0x2e] sm:$0xff]
      %v658 = vld [vmem:[%s433 + $0x36] sm:$0xff]
      %v659 = vld [vmem:[%s433 + $0x3e] sm:$0xff]
      %v660 = vld [vmem:[%s433 + $0x46] sm:$0xff]
      %v661 = vld [vmem:[%s433 + $0x4e] sm:$0xff]
      %v662 = vld [vmem:[%s433 + $0x56] sm:$0xff]
      %v663 = vld [vmem:[%s433 + $0x5e] sm:$0xff]
      %v664 = vld [vmem:[%s433 + $0x66] sm:$0xff]
      %v665 = vld [vmem:[%s433 + $0x6e] sm:$0xff]
      %v666 = vld [vmem:[%s433 + $0x76] sm:$0xff]
      %v667 = vld [vmem:[%s448] sm:$0xff]
      %v668 = vld [vmem:[%s448 + $0x8] sm:$0xff]
      %v669 = vld [vmem:[%s448 + $0x10] sm:$0xff]
      %v670 = vld [vmem:[%s448 + $0x18] sm:$0xff]
      %v671 = vld [vmem:[%s448 + $0x20] sm:$0xff]
      %v672 = vld [vmem:[%s448 + $0x28] sm:$0xff]
      %v673 = vld [vmem:[%s448 + $0x30] sm:$0xff]
      %v674 = vld [vmem:[%s448 + $0x38] sm:$0xff]
      %v675 = vld [vmem:[%s448 + $0x40] sm:$0xff]
      %v676 = vld [vmem:[%s448 + $0x48] sm:$0xff]
      %v677 = vld [vmem:[%s448 + $0x50] sm:$0xff]
      %v678 = vld [vmem:[%s448 + $0x58] sm:$0xff]
      %v679 = vld [vmem:[%s448 + $0x60] sm:$0xff]
      %v680 = vld [vmem:[%s448 + $0x1] sm:$0xff]
      %v681 = vld [vmem:[%s448 + $0x9] sm:$0xff]
      %v682 = vld [vmem:[%s448 + $0x11] sm:$0xff]
      %v683 = vld [vmem:[%s448 + $0x19] sm:$0xff]
      %v684 = vld [vmem:[%s448 + $0x21] sm:$0xff]
      %v685 = vld [vmem:[%s448 + $0x29] sm:$0xff]
      %v686 = vld [vmem:[%s448 + $0x31] sm:$0xff]
      %v687 = vld [vmem:[%s448 + $0x39] sm:$0xff]
      %v688 = vld [vmem:[%s448 + $0x41] sm:$0xff]
      %v689 = vld [vmem:[%s448 + $0x49] sm:$0xff]
      %v690 = vld [vmem:[%s448 + $0x51] sm:$0xff]
      %v691 = vld [vmem:[%s448 + $0x59] sm:$0xff]
      %v692 = vld [vmem:[%s448 + $0x61] sm:$0xff]
      %v693 = vld [vmem:[%s448 + $0x2] sm:$0xff]
      %v694 = vld [vmem:[%s448 + $0xa] sm:$0xff]
      %v695 = vld [vmem:[%s448 + $0x12] sm:$0xff]
      %v696 = vld [vmem:[%s448 + $0x1a] sm:$0xff]
      %v697 = vld [vmem:[%s448 + $0x22] sm:$0xff]
      %v698 = vld [vmem:[%s448 + $0x2a] sm:$0xff]
      %v699 = vld [vmem:[%s448 + $0x32] sm:$0xff]
      %v700 = vld [vmem:[%s448 + $0x3a] sm:$0xff]
      %v701 = vld [vmem:[%s448 + $0x42] sm:$0xff]
      %v702 = vld [vmem:[%s448 + $0x4a] sm:$0xff]
      %v703 = vld [vmem:[%s448 + $0x52] sm:$0xff]
      %v704 = vld [vmem:[%s448 + $0x5a] sm:$0xff]
      %v705 = vld [vmem:[%s448 + $0x62] sm:$0xff]
      %v706 = vld [vmem:[%s448 + $0x6a] sm:$0xff]
      %v707 = vld [vmem:[%s448 + $0xb] sm:$0xff]
      %v708 = vld [vmem:[%s448 + $0x13] sm:$0xff]
      %v709 = vld [vmem:[%s448 + $0x1b] sm:$0xff]
      %v710 = vld [vmem:[%s448 + $0x23] sm:$0xff]
      %v711 = vld [vmem:[%s448 + $0x2b] sm:$0xff]
      %v712 = vld [vmem:[%s448 + $0x33] sm:$0xff]
      %v713 = vld [vmem:[%s448 + $0x3b] sm:$0xff]
      %v714 = vld [vmem:[%s448 + $0x43] sm:$0xff]
      %v715 = vld [vmem:[%s448 + $0x4b] sm:$0xff]
      %v716 = vld [vmem:[%s448 + $0x53] sm:$0xff]
      %v717 = vld [vmem:[%s448 + $0x5b] sm:$0xff]
      %v718 = vld [vmem:[%s448 + $0x63] sm:$0xff]
      %v719 = vld [vmem:[%s448 + $0x6b] sm:$0xff]
      %v720 = vld [vmem:[%s448 + $0xc] sm:$0xff]
      %v721 = vld [vmem:[%s448 + $0x14] sm:$0xff]
      %v722 = vld [vmem:[%s448 + $0x1c] sm:$0xff]
      %v723 = vld [vmem:[%s448 + $0x24] sm:$0xff]
      %v724 = vld [vmem:[%s448 + $0x2c] sm:$0xff]
      %v725 = vld [vmem:[%s448 + $0x34] sm:$0xff]
      %v726 = vld [vmem:[%s448 + $0x3c] sm:$0xff]
      %v727 = vld [vmem:[%s448 + $0x44] sm:$0xff]
      %v728 = vld [vmem:[%s448 + $0x4c] sm:$0xff]
      %v729 = vld [vmem:[%s448 + $0x54] sm:$0xff]
      %v730 = vld [vmem:[%s448 + $0x5c] sm:$0xff]
      %v731 = vld [vmem:[%s448 + $0x64] sm:$0xff]
      %v732 = vld [vmem:[%s448 + $0x6c] sm:$0xff]
      %v733 = vld [vmem:[%s448 + $0x74] sm:$0xff]
      %v734 = vld [vmem:[%s448 + $0x15] sm:$0xff]
      %v735 = vld [vmem:[%s448 + $0x1d] sm:$0xff]
      %v736 = vld [vmem:[%s448 + $0x25] sm:$0xff]
      %v737 = vld [vmem:[%s448 + $0x2d] sm:$0xff]
      %v738 = vld [vmem:[%s448 + $0x35] sm:$0xff]
      %v739 = vld [vmem:[%s448 + $0x3d] sm:$0xff]
      %v740 = vld [vmem:[%s448 + $0x45] sm:$0xff]
      %v741 = vld [vmem:[%s448 + $0x4d] sm:$0xff]
      %v742 = vld [vmem:[%s448 + $0x55] sm:$0xff]
      %v743 = vld [vmem:[%s448 + $0x5d] sm:$0xff]
      %v744 = vld [vmem:[%s448 + $0x65] sm:$0xff]
      %v745 = vld [vmem:[%s448 + $0x6d] sm:$0xff]
      %v746 = vld [vmem:[%s448 + $0x75] sm:$0xff]
      %v747 = vld [vmem:[%s448 + $0x16] sm:$0xff]
      %v748 = vld [vmem:[%s448 + $0x1e] sm:$0xff]
      %v749 = vld [vmem:[%s448 + $0x26] sm:$0xff]
      %v750 = vld [vmem:[%s448 + $0x2e] sm:$0xff]
      %v751 = vld [vmem:[%s448 + $0x36] sm:$0xff]
      %v752 = vld [vmem:[%s448 + $0x3e] sm:$0xff]
      %v753 = vld [vmem:[%s448 + $0x46] sm:$0xff]
      %v754 = vld [vmem:[%s448 + $0x4e] sm:$0xff]
      %v755 = vld [vmem:[%s448 + $0x56] sm:$0xff]
      %v756 = vld [vmem:[%s448 + $0x5e] sm:$0xff]
      %v757 = vld [vmem:[%s448 + $0x66] sm:$0xff]
      %v758 = vld [vmem:[%s448 + $0x6e] sm:$0xff]
      %v759 = vld [vmem:[%s448 + $0x76] sm:$0xff]
      %773 = vrot.lane.b32.xlu0 %v494, 4
      %v774 = vpop.permute.xlu0 %773
      %775 = vrot.lane.b32.xlu0 %v495, 4
      %v776 = vpop.permute.xlu0 %775
      %777 = vrot.lane.b32.xlu0 %v496, 4
      %v778 = vpop.permute.xlu0 %777
      %779 = vrot.lane.b32.xlu0 %v497, 4
      %v780 = vpop.permute.xlu0 %779
      %781 = vrot.lane.b32.xlu0 %v498, 4
      %v782 = vpop.permute.xlu0 %781
      %783 = vrot.lane.b32.xlu0 %v499, 4
      %v784 = vpop.permute.xlu0 %783
      %785 = vrot.lane.b32.xlu0 %v500, 4
      %v786 = vpop.permute.xlu0 %785
      %787 = vrot.lane.b32.xlu0 %v501, 4
      %v788 = vpop.permute.xlu0 %787
      %789 = vrot.lane.b32.xlu0 %v502, 4
      %v790 = vpop.permute.xlu0 %789
      %791 = vrot.lane.b32.xlu0 %v503, 4
      %v792 = vpop.permute.xlu0 %791
      %793 = vrot.lane.b32.xlu0 %v504, 4
      %v794 = vpop.permute.xlu0 %793
      %795 = vrot.lane.b32.xlu0 %v505, 4
      %v796 = vpop.permute.xlu0 %795
      %797 = vrot.lane.b32.xlu0 %v506, 4
      %v798 = vpop.permute.xlu0 %797
      %825 = vrot.lane.b32.xlu0 %v507, 8
      %v826 = vpop.permute.xlu0 %825
      %827 = vrot.lane.b32.xlu0 %v508, 8
      %v828 = vpop.permute.xlu0 %827
      %829 = vrot.lane.b32.xlu0 %v509, 8
      %v830 = vpop.permute.xlu0 %829
      %831 = vrot.lane.b32.xlu0 %v510, 8
      %v832 = vpop.permute.xlu0 %831
      %833 = vrot.lane.b32.xlu0 %v511, 8
      %v834 = vpop.permute.xlu0 %833
      %835 = vrot.lane.b32.xlu0 %v512, 8
      %v836 = vpop.permute.xlu0 %835
      %837 = vrot.lane.b32.xlu0 %v513, 8
      %v838 = vpop.permute.xlu0 %837
      %839 = vrot.lane.b32.xlu0 %v514, 8
      %v840 = vpop.permute.xlu0 %839
      %841 = vrot.lane.b32.xlu0 %v515, 8
      %v842 = vpop.permute.xlu0 %841
      %843 = vrot.lane.b32.xlu0 %v516, 8
      %v844 = vpop.permute.xlu0 %843
      %845 = vrot.lane.b32.xlu0 %v517, 8
      %v846 = vpop.permute.xlu0 %845
      %847 = vrot.lane.b32.xlu0 %v518, 8
      %v848 = vpop.permute.xlu0 %847
      %849 = vrot.lane.b32.xlu0 %v519, 8
      %v850 = vpop.permute.xlu0 %849
      %865 = vrot.lane.b32.xlu0 %v508, 12
      %v866 = vpop.permute.xlu0 %865
      %867 = vrot.lane.b32.xlu0 %v509, 12
      %v868 = vpop.permute.xlu0 %867
      %869 = vrot.lane.b32.xlu0 %v510, 12
      %v870 = vpop.permute.xlu0 %869
      %871 = vrot.lane.b32.xlu0 %v511, 12
      %v872 = vpop.permute.xlu0 %871
      %873 = vrot.lane.b32.xlu0 %v512, 12
      %v874 = vpop.permute.xlu0 %873
      %875 = vrot.lane.b32.xlu0 %v513, 12
      %v876 = vpop.permute.xlu0 %875
      %877 = vrot.lane.b32.xlu0 %v514, 12
      %v878 = vpop.permute.xlu0 %877
      %879 = vrot.lane.b32.xlu0 %v515, 12
      %v880 = vpop.permute.xlu0 %879
      %881 = vrot.lane.b32.xlu0 %v516, 12
      %v882 = vpop.permute.xlu0 %881
      %883 = vrot.lane.b32.xlu0 %v517, 12
      %v884 = vpop.permute.xlu0 %883
      %885 = vrot.lane.b32.xlu0 %v518, 12
      %v886 = vpop.permute.xlu0 %885
      %887 = vrot.lane.b32.xlu0 %v519, 12
      %v888 = vpop.permute.xlu0 %887
      %889 = vrot.lane.b32.xlu0 %v520, 12
      %v890 = vpop.permute.xlu0 %889
      %917 = vrot.lane.b32.xlu0 %v521, 16
      %v918 = vpop.permute.xlu0 %917
      %919 = vrot.lane.b32.xlu0 %v522, 16
      %v920 = vpop.permute.xlu0 %919
      %921 = vrot.lane.b32.xlu0 %v523, 16
      %v922 = vpop.permute.xlu0 %921
      %923 = vrot.lane.b32.xlu0 %v524, 16
      %v924 = vpop.permute.xlu0 %923
      %925 = vrot.lane.b32.xlu0 %v525, 16
      %v926 = vpop.permute.xlu0 %925
      %927 = vrot.lane.b32.xlu0 %v526, 16
      %v928 = vpop.permute.xlu0 %927
      %929 = vrot.lane.b32.xlu0 %v527, 16
      %v930 = vpop.permute.xlu0 %929
      %931 = vrot.lane.b32.xlu0 %v528, 16
      %v932 = vpop.permute.xlu0 %931
      %933 = vrot.lane.b32.xlu0 %v529, 16
      %v934 = vpop.permute.xlu0 %933
      %935 = vrot.lane.b32.xlu0 %v530, 16
      %v936 = vpop.permute.xlu0 %935
      %937 = vrot.lane.b32.xlu0 %v531, 16
      %v938 = vpop.permute.xlu0 %937
      %939 = vrot.lane.b32.xlu0 %v532, 16
      %v940 = vpop.permute.xlu0 %939
      %941 = vrot.lane.b32.xlu0 %v533, 16
      %v942 = vpop.permute.xlu0 %941
      %969 = vrot.lane.b32.xlu0 %v534, 20
      %v970 = vpop.permute.xlu0 %969
      %971 = vrot.lane.b32.xlu0 %v535, 20
      %v972 = vpop.permute.xlu0 %971
      %973 = vrot.lane.b32.xlu0 %v536, 20
      %v974 = vpop.permute.xlu0 %973
      %975 = vrot.lane.b32.xlu0 %v537, 20
      %v976 = vpop.permute.xlu0 %975
      %977 = vrot.lane.b32.xlu0 %v538, 20
      %v978 = vpop.permute.xlu0 %977
      %979 = vrot.lane.b32.xlu0 %v539, 20
      %v980 = vpop.permute.xlu0 %979
      %981 = vrot.lane.b32.xlu0 %v540, 20
      %v982 = vpop.permute.xlu0 %981
      %983 = vrot.lane.b32.xlu0 %v541, 20
      %v984 = vpop.permute.xlu0 %983
      %985 = vrot.lane.b32.xlu0 %v542, 20
      %v986 = vpop.permute.xlu0 %985
      %987 = vrot.lane.b32.xlu0 %v543, 20
      %v988 = vpop.permute.xlu0 %987
      %989 = vrot.lane.b32.xlu0 %v544, 20
      %v990 = vpop.permute.xlu0 %989
      %991 = vrot.lane.b32.xlu0 %v545, 20
      %v992 = vpop.permute.xlu0 %991
      %993 = vrot.lane.b32.xlu0 %v546, 20
      %v994 = vpop.permute.xlu0 %993
      %1009 = vrot.lane.b32.xlu0 %v535, 24
      %v1010 = vpop.permute.xlu0 %1009
      %1011 = vrot.lane.b32.xlu0 %v536, 24
      %v1012 = vpop.permute.xlu0 %1011
      %1013 = vrot.lane.b32.xlu0 %v537, 24
      %v1014 = vpop.permute.xlu0 %1013
      %1015 = vrot.lane.b32.xlu0 %v538, 24
      %v1016 = vpop.permute.xlu0 %1015
      %1017 = vrot.lane.b32.xlu0 %v539, 24
      %v1018 = vpop.permute.xlu0 %1017
      %1019 = vrot.lane.b32.xlu0 %v540, 24
      %v1020 = vpop.permute.xlu0 %1019
      %1021 = vrot.lane.b32.xlu0 %v541, 24
      %v1022 = vpop.permute.xlu0 %1021
      %1023 = vrot.lane.b32.xlu0 %v542, 24
      %v1024 = vpop.permute.xlu0 %1023
      %1025 = vrot.lane.b32.xlu0 %v543, 24
      %v1026 = vpop.permute.xlu0 %1025
      %1027 = vrot.lane.b32.xlu0 %v544, 24
      %v1028 = vpop.permute.xlu0 %1027
      %1029 = vrot.lane.b32.xlu0 %v545, 24
      %v1030 = vpop.permute.xlu0 %1029
      %1031 = vrot.lane.b32.xlu0 %v546, 24
      %v1032 = vpop.permute.xlu0 %1031
      %1033 = vrot.lane.b32.xlu0 %v547, 24
      %v1034 = vpop.permute.xlu0 %1033
      %1061 = vrot.lane.b32.xlu0 %v548, 28
      %v1062 = vpop.permute.xlu0 %1061
      %1063 = vrot.lane.b32.xlu0 %v549, 28
      %v1064 = vpop.permute.xlu0 %1063
      %1065 = vrot.lane.b32.xlu0 %v550, 28
      %v1066 = vpop.permute.xlu0 %1065
      %1067 = vrot.lane.b32.xlu0 %v551, 28
      %v1068 = vpop.permute.xlu0 %1067
      %1069 = vrot.lane.b32.xlu0 %v552, 28
      %v1070 = vpop.permute.xlu0 %1069
      %1071 = vrot.lane.b32.xlu0 %v553, 28
      %v1072 = vpop.permute.xlu0 %1071
      %1073 = vrot.lane.b32.xlu0 %v554, 28
      %v1074 = vpop.permute.xlu0 %1073
      %1075 = vrot.lane.b32.xlu0 %v555, 28
      %v1076 = vpop.permute.xlu0 %1075
      %1077 = vrot.lane.b32.xlu0 %v556, 28
      %v1078 = vpop.permute.xlu0 %1077
      %1079 = vrot.lane.b32.xlu0 %v557, 28
      %v1080 = vpop.permute.xlu0 %1079
      %1081 = vrot.lane.b32.xlu0 %v558, 28
      %v1082 = vpop.permute.xlu0 %1081
      %1083 = vrot.lane.b32.xlu0 %v559, 28
      %v1084 = vpop.permute.xlu0 %1083
      %1085 = vrot.lane.b32.xlu0 %v560, 28
      %v1086 = vpop.permute.xlu0 %1085
      %1113 = vrot.lane.b32.xlu0 %v561, 32
      %v1114 = vpop.permute.xlu0 %1113
      %1115 = vrot.lane.b32.xlu0 %v562, 32
      %v1116 = vpop.permute.xlu0 %1115
      %1117 = vrot.lane.b32.xlu0 %v563, 32
      %v1118 = vpop.permute.xlu0 %1117
      %1119 = vrot.lane.b32.xlu0 %v564, 32
      %v1120 = vpop.permute.xlu0 %1119
      %1121 = vrot.lane.b32.xlu0 %v565, 32
      %v1122 = vpop.permute.xlu0 %1121
      %1123 = vrot.lane.b32.xlu0 %v566, 32
      %v1124 = vpop.permute.xlu0 %1123
      %1125 = vrot.lane.b32.xlu0 %v567, 32
      %v1126 = vpop.permute.xlu0 %1125
      %1127 = vrot.lane.b32.xlu0 %v568, 32
      %v1128 = vpop.permute.xlu0 %1127
      %1129 = vrot.lane.b32.xlu0 %v569, 32
      %v1130 = vpop.permute.xlu0 %1129
      %1131 = vrot.lane.b32.xlu0 %v570, 32
      %v1132 = vpop.permute.xlu0 %1131
      %1133 = vrot.lane.b32.xlu0 %v571, 32
      %v1134 = vpop.permute.xlu0 %1133
      %1135 = vrot.lane.b32.xlu0 %v572, 32
      %v1136 = vpop.permute.xlu0 %1135
      %1137 = vrot.lane.b32.xlu0 %v573, 32
      %v1138 = vpop.permute.xlu0 %1137
      %1165 = vrot.lane.b32.xlu0 %v574, 36
      %v1166 = vpop.permute.xlu0 %1165
      %1167 = vrot.lane.b32.xlu0 %v575, 36
      %v1168 = vpop.permute.xlu0 %1167
      %1169 = vrot.lane.b32.xlu0 %v576, 36
      %v1170 = vpop.permute.xlu0 %1169
      %1171 = vrot.lane.b32.xlu0 %v577, 36
      %v1172 = vpop.permute.xlu0 %1171
      %1173 = vrot.lane.b32.xlu0 %v578, 36
      %v1174 = vpop.permute.xlu0 %1173
      %1175 = vrot.lane.b32.xlu0 %v579, 36
      %v1176 = vpop.permute.xlu0 %1175
      %1177 = vrot.lane.b32.xlu0 %v580, 36
      %v1178 = vpop.permute.xlu0 %1177
      %1179 = vrot.lane.b32.xlu0 %v581, 36
      %v1180 = vpop.permute.xlu0 %1179
      %1181 = vrot.lane.b32.xlu0 %v582, 36
      %v1182 = vpop.permute.xlu0 %1181
      %1183 = vrot.lane.b32.xlu0 %v583, 36
      %v1184 = vpop.permute.xlu0 %1183
      %1185 = vrot.lane.b32.xlu0 %v584, 36
      %v1186 = vpop.permute.xlu0 %1185
      %1187 = vrot.lane.b32.xlu0 %v585, 36
      %v1188 = vpop.permute.xlu0 %1187
      %1189 = vrot.lane.b32.xlu0 %v586, 36
      %v1190 = vpop.permute.xlu0 %1189
      %1217 = vrot.lane.b32.xlu0 %v587, 40
      %v1218 = vpop.permute.xlu0 %1217
      %1219 = vrot.lane.b32.xlu0 %v588, 40
      %v1220 = vpop.permute.xlu0 %1219
      %1221 = vrot.lane.b32.xlu0 %v589, 40
      %v1222 = vpop.permute.xlu0 %1221
      %1223 = vrot.lane.b32.xlu0 %v590, 40
      %v1224 = vpop.permute.xlu0 %1223
      %1225 = vrot.lane.b32.xlu0 %v591, 40
      %v1226 = vpop.permute.xlu0 %1225
      %1227 = vrot.lane.b32.xlu0 %v592, 40
      %v1228 = vpop.permute.xlu0 %1227
      %1229 = vrot.lane.b32.xlu0 %v593, 40
      %v1230 = vpop.permute.xlu0 %1229
      %1231 = vrot.lane.b32.xlu0 %v594, 40
      %v1232 = vpop.permute.xlu0 %1231
      %1233 = vrot.lane.b32.xlu0 %v595, 40
      %v1234 = vpop.permute.xlu0 %1233
      %1235 = vrot.lane.b32.xlu0 %v596, 40
      %v1236 = vpop.permute.xlu0 %1235
      %1237 = vrot.lane.b32.xlu0 %v597, 40
      %v1238 = vpop.permute.xlu0 %1237
      %1239 = vrot.lane.b32.xlu0 %v598, 40
      %v1240 = vpop.permute.xlu0 %1239
      %1241 = vrot.lane.b32.xlu0 %v599, 40
      %v1242 = vpop.permute.xlu0 %1241
      %1269 = vrot.lane.b32.xlu0 %v600, 44
      %v1270 = vpop.permute.xlu0 %1269
      %1271 = vrot.lane.b32.xlu0 %v601, 44
      %v1272 = vpop.permute.xlu0 %1271
      %1273 = vrot.lane.b32.xlu0 %v602, 44
      %v1274 = vpop.permute.xlu0 %1273
      %1275 = vrot.lane.b32.xlu0 %v603, 44
      %v1276 = vpop.permute.xlu0 %1275
      %1277 = vrot.lane.b32.xlu0 %v604, 44
      %v1278 = vpop.permute.xlu0 %1277
      %1279 = vrot.lane.b32.xlu0 %v605, 44
      %v1280 = vpop.permute.xlu0 %1279
      %1281 = vrot.lane.b32.xlu0 %v606, 44
      %v1282 = vpop.permute.xlu0 %1281
      %1283 = vrot.lane.b32.xlu0 %v607, 44
      %v1284 = vpop.permute.xlu0 %1283
      %1285 = vrot.lane.b32.xlu0 %v608, 44
      %v1286 = vpop.permute.xlu0 %1285
      %1287 = vrot.lane.b32.xlu0 %v609, 44
      %v1288 = vpop.permute.xlu0 %1287
      %1289 = vrot.lane.b32.xlu0 %v610, 44
      %v1290 = vpop.permute.xlu0 %1289
      %1291 = vrot.lane.b32.xlu0 %v611, 44
      %v1292 = vpop.permute.xlu0 %1291
      %1293 = vrot.lane.b32.xlu0 %v612, 44
      %v1294 = vpop.permute.xlu0 %1293
      %1309 = vrot.lane.b32.xlu0 %v601, 48
      %v1310 = vpop.permute.xlu0 %1309
      %1311 = vrot.lane.b32.xlu0 %v602, 48
      %v1312 = vpop.permute.xlu0 %1311
      %1313 = vrot.lane.b32.xlu0 %v603, 48
      %v1314 = vpop.permute.xlu0 %1313
      %1315 = vrot.lane.b32.xlu0 %v604, 48
      %v1316 = vpop.permute.xlu0 %1315
      %1317 = vrot.lane.b32.xlu0 %v605, 48
      %v1318 = vpop.permute.xlu0 %1317
      %1319 = vrot.lane.b32.xlu0 %v606, 48
      %v1320 = vpop.permute.xlu0 %1319
      %1321 = vrot.lane.b32.xlu0 %v607, 48
      %v1322 = vpop.permute.xlu0 %1321
      %1323 = vrot.lane.b32.xlu0 %v608, 48
      %v1324 = vpop.permute.xlu0 %1323
      %1325 = vrot.lane.b32.xlu0 %v609, 48
      %v1326 = vpop.permute.xlu0 %1325
      %1327 = vrot.lane.b32.xlu0 %v610, 48
      %v1328 = vpop.permute.xlu0 %1327
      %1329 = vrot.lane.b32.xlu0 %v611, 48
      %v1330 = vpop.permute.xlu0 %1329
      %1331 = vrot.lane.b32.xlu0 %v612, 48
      %v1332 = vpop.permute.xlu0 %1331
      %1333 = vrot.lane.b32.xlu0 %v613, 48
      %v1334 = vpop.permute.xlu0 %1333
      %1361 = vrot.lane.b32.xlu0 %v614, 52
      %v1362 = vpop.permute.xlu0 %1361
      %1363 = vrot.lane.b32.xlu0 %v615, 52
      %v1364 = vpop.permute.xlu0 %1363
      %1365 = vrot.lane.b32.xlu0 %v616, 52
      %v1366 = vpop.permute.xlu0 %1365
      %1367 = vrot.lane.b32.xlu0 %v617, 52
      %v1368 = vpop.permute.xlu0 %1367
      %1369 = vrot.lane.b32.xlu0 %v618, 52
      %v1370 = vpop.permute.xlu0 %1369
      %1371 = vrot.lane.b32.xlu0 %v619, 52
      %v1372 = vpop.permute.xlu0 %1371
      %1373 = vrot.lane.b32.xlu0 %v620, 52
      %v1374 = vpop.permute.xlu0 %1373
      %1375 = vrot.lane.b32.xlu0 %v621, 52
      %v1376 = vpop.permute.xlu0 %1375
      %1377 = vrot.lane.b32.xlu0 %v622, 52
      %v1378 = vpop.permute.xlu0 %1377
      %1379 = vrot.lane.b32.xlu0 %v623, 52
      %v1380 = vpop.permute.xlu0 %1379
      %1381 = vrot.lane.b32.xlu0 %v624, 52
      %v1382 = vpop.permute.xlu0 %1381
      %1383 = vrot.lane.b32.xlu0 %v625, 52
      %v1384 = vpop.permute.xlu0 %1383
      %1385 = vrot.lane.b32.xlu0 %v626, 52
      %v1386 = vpop.permute.xlu0 %1385
      %1413 = vrot.lane.b32.xlu0 %v627, 56
      %v1414 = vpop.permute.xlu0 %1413
      %1415 = vrot.lane.b32.xlu0 %v628, 56
      %v1416 = vpop.permute.xlu0 %1415
      %1417 = vrot.lane.b32.xlu0 %v629, 56
      %v1418 = vpop.permute.xlu0 %1417
      %1419 = vrot.lane.b32.xlu0 %v630, 56
      %v1420 = vpop.permute.xlu0 %1419
      %1421 = vrot.lane.b32.xlu0 %v631, 56
      %v1422 = vpop.permute.xlu0 %1421
      %1423 = vrot.lane.b32.xlu0 %v632, 56
      %v1424 = vpop.permute.xlu0 %1423
      %1425 = vrot.lane.b32.xlu0 %v633, 56
      %v1426 = vpop.permute.xlu0 %1425
      %1427 = vrot.lane.b32.xlu0 %v634, 56
      %v1428 = vpop.permute.xlu0 %1427
      %1429 = vrot.lane.b32.xlu0 %v635, 56
      %v1430 = vpop.permute.xlu0 %1429
      %1431 = vrot.lane.b32.xlu0 %v636, 56
      %v1432 = vpop.permute.xlu0 %1431
      %1433 = vrot.lane.b32.xlu0 %v637, 56
      %v1434 = vpop.permute.xlu0 %1433
      %1435 = vrot.lane.b32.xlu0 %v638, 56
      %v1436 = vpop.permute.xlu0 %1435
      %1437 = vrot.lane.b32.xlu0 %v639, 56
      %v1438 = vpop.permute.xlu0 %1437
      %1453 = vrot.lane.b32.xlu0 %v628, 60
      %v1454 = vpop.permute.xlu0 %1453
      %1455 = vrot.lane.b32.xlu0 %v629, 60
      %v1456 = vpop.permute.xlu0 %1455
      %1457 = vrot.lane.b32.xlu0 %v630, 60
      %v1458 = vpop.permute.xlu0 %1457
      %1459 = vrot.lane.b32.xlu0 %v631, 60
      %v1460 = vpop.permute.xlu0 %1459
      %1461 = vrot.lane.b32.xlu0 %v632, 60
      %v1462 = vpop.permute.xlu0 %1461
      %1463 = vrot.lane.b32.xlu0 %v633, 60
      %v1464 = vpop.permute.xlu0 %1463
      %1465 = vrot.lane.b32.xlu0 %v634, 60
      %v1466 = vpop.permute.xlu0 %1465
      %1467 = vrot.lane.b32.xlu0 %v635, 60
      %v1468 = vpop.permute.xlu0 %1467
      %1469 = vrot.lane.b32.xlu0 %v636, 60
      %v1470 = vpop.permute.xlu0 %1469
      %1471 = vrot.lane.b32.xlu0 %v637, 60
      %v1472 = vpop.permute.xlu0 %1471
      %1473 = vrot.lane.b32.xlu0 %v638, 60
      %v1474 = vpop.permute.xlu0 %1473
      %1475 = vrot.lane.b32.xlu0 %v639, 60
      %v1476 = vpop.permute.xlu0 %1475
      %1477 = vrot.lane.b32.xlu0 %v640, 60
      %v1478 = vpop.permute.xlu0 %1477
      %vm1492 = vcmask 31744
      %v1493 = vsel %vm1492, %v481, %v774
      %v1494 = vsel %vm1492, %v482, %v776
      %v1495 = vsel %vm1492, %v483, %v778
      %v1496 = vsel %vm1492, %v484, %v780
      %v1497 = vsel %vm1492, %v485, %v782
      %v1498 = vsel %vm1492, %v486, %v784
      %v1499 = vsel %vm1492, %v487, %v786
      %v1500 = vsel %vm1492, %v488, %v788
      %v1501 = vsel %vm1492, %v489, %v790
      %v1502 = vsel %vm1492, %v490, %v792
      %v1503 = vsel %vm1492, %v491, %v794
      %v1504 = vsel %vm1492, %v492, %v796
      %v1505 = vsel %vm1492, %v493, %v798
      %vm1506 = vcmask 64512
      %v1507 = vsel %vm1506, %v1493, %v826
      %v1508 = vsel %vm1506, %v1494, %v828
      %v1509 = vsel %vm1506, %v1495, %v830
      %v1510 = vsel %vm1506, %v1496, %v832
      %v1511 = vsel %vm1506, %v1497, %v834
      %v1512 = vsel %vm1506, %v1498, %v836
      %v1513 = vsel %vm1506, %v1499, %v838
      %v1514 = vsel %vm1506, %v1500, %v840
      %v1515 = vsel %vm1506, %v1501, %v842
      %v1516 = vsel %vm1506, %v1502, %v844
      %v1517 = vsel %vm1506, %v1503, %v846
      %v1518 = vsel %vm1506, %v1504, %v848
      %v1519 = vsel %vm1506, %v1505, %v850
      %vm1520 = vcmask 97280
      %v1521 = vsel %vm1520, %v1507, %v866
      %v1522 = vsel %vm1520, %v1508, %v868
      %v1523 = vsel %vm1520, %v1509, %v870
      %v1524 = vsel %vm1520, %v1510, %v872
      %v1525 = vsel %vm1520, %v1511, %v874
      %v1526 = vsel %vm1520, %v1512, %v876
      %v1527 = vsel %vm1520, %v1513, %v878
      %v1528 = vsel %vm1520, %v1514, %v880
      %v1529 = vsel %vm1520, %v1515, %v882
      %v1530 = vsel %vm1520, %v1516, %v884
      %v1531 = vsel %vm1520, %v1517, %v886
      %v1532 = vsel %vm1520, %v1518, %v888
      %v1533 = vsel %vm1520, %v1519, %v890
      %vm1534 = vcmask 130048
      %v1535 = vsel %vm1534, %v1521, %v918
      %v1536 = vsel %vm1534, %v1522, %v920
      %v1537 = vsel %vm1534, %v1523, %v922
      %v1538 = vsel %vm1534, %v1524, %v924
      %v1539 = vsel %vm1534, %v1525, %v926
      %v1540 = vsel %vm1534, %v1526, %v928
      %v1541 = vsel %vm1534, %v1527, %v930
      %v1542 = vsel %vm1534, %v1528, %v932
      %v1543 = vsel %vm1534, %v1529, %v934
      %v1544 = vsel %vm1534, %v1530, %v936
      %v1545 = vsel %vm1534, %v1531, %v938
      %v1546 = vsel %vm1534, %v1532, %v940
      %v1547 = vsel %vm1534, %v1533, %v942
      %vm1548 = vcmask 162816
      %v1549 = vsel %vm1548, %v1535, %v970
      %v1550 = vsel %vm1548, %v1536, %v972
      %v1551 = vsel %vm1548, %v1537, %v974
      %v1552 = vsel %vm1548, %v1538, %v976
      %v1553 = vsel %vm1548, %v1539, %v978
      %v1554 = vsel %vm1548, %v1540, %v980
      %v1555 = vsel %vm1548, %v1541, %v982
      %v1556 = vsel %vm1548, %v1542, %v984
      %v1557 = vsel %vm1548, %v1543, %v986
      %v1558 = vsel %vm1548, %v1544, %v988
      %v1559 = vsel %vm1548, %v1545, %v990
      %v1560 = vsel %vm1548, %v1546, %v992
      %v1561 = vsel %vm1548, %v1547, %v994
      %vm1562 = vcmask 195584
      %v1563 = vsel %vm1562, %v1549, %v1010
      %v1564 = vsel %vm1562, %v1550, %v1012
      %v1565 = vsel %vm1562, %v1551, %v1014
      %v1566 = vsel %vm1562, %v1552, %v1016
      %v1567 = vsel %vm1562, %v1553, %v1018
      %v1568 = vsel %vm1562, %v1554, %v1020
      %v1569 = vsel %vm1562, %v1555, %v1022
      %v1570 = vsel %vm1562, %v1556, %v1024
      %v1571 = vsel %vm1562, %v1557, %v1026
      %v1572 = vsel %vm1562, %v1558, %v1028
      %v1573 = vsel %vm1562, %v1559, %v1030
      %v1574 = vsel %vm1562, %v1560, %v1032
      %v1575 = vsel %vm1562, %v1561, %v1034
      %vm1576 = vcmask 228352
      %v1577 = vsel %vm1576, %v1563, %v1062
      %v1578 = vsel %vm1576, %v1564, %v1064
      %v1579 = vsel %vm1576, %v1565, %v1066
      %v1580 = vsel %vm1576, %v1566, %v1068
      %v1581 = vsel %vm1576, %v1567, %v1070
      %v1582 = vsel %vm1576, %v1568, %v1072
      %v1583 = vsel %vm1576, %v1569, %v1074
      %v1584 = vsel %vm1576, %v1570, %v1076
      %v1585 = vsel %vm1576, %v1571, %v1078
      %v1586 = vsel %vm1576, %v1572, %v1080
      %v1587 = vsel %vm1576, %v1573, %v1082
      %v1588 = vsel %vm1576, %v1574, %v1084
      %v1589 = vsel %vm1576, %v1575, %v1086
      %vm1590 = vcmask 261120
      %v1591 = vsel %vm1590, %v1577, %v1114
      %v1592 = vsel %vm1590, %v1578, %v1116
      %v1593 = vsel %vm1590, %v1579, %v1118
      %v1594 = vsel %vm1590, %v1580, %v1120
      %v1595 = vsel %vm1590, %v1581, %v1122
      %v1596 = vsel %vm1590, %v1582, %v1124
      %v1597 = vsel %vm1590, %v1583, %v1126
      %v1598 = vsel %vm1590, %v1584, %v1128
      %v1599 = vsel %vm1590, %v1585, %v1130
      %v1600 = vsel %vm1590, %v1586, %v1132
      %v1601 = vsel %vm1590, %v1587, %v1134
      %v1602 = vsel %vm1590, %v1588, %v1136
      %v1603 = vsel %vm1590, %v1589, %v1138
      %vm1604 = vcmask 293888
      %v1605 = vsel %vm1604, %v1591, %v1166
      %v1606 = vsel %vm1604, %v1592, %v1168
      %v1607 = vsel %vm1604, %v1593, %v1170
      %v1608 = vsel %vm1604, %v1594, %v1172
      %v1609 = vsel %vm1604, %v1595, %v1174
      %v1610 = vsel %vm1604, %v1596, %v1176
      %v1611 = vsel %vm1604, %v1597, %v1178
      %v1612 = vsel %vm1604, %v1598, %v1180
      %v1613 = vsel %vm1604, %v1599, %v1182
      %v1614 = vsel %vm1604, %v1600, %v1184
      %v1615 = vsel %vm1604, %v1601, %v1186
      %v1616 = vsel %vm1604, %v1602, %v1188
      %v1617 = vsel %vm1604, %v1603, %v1190
      %vm1618 = vcmask 326656
      %v1619 = vsel %vm1618, %v1605, %v1218
      %v1620 = vsel %vm1618, %v1606, %v1220
      %v1621 = vsel %vm1618, %v1607, %v1222
      %v1622 = vsel %vm1618, %v1608, %v1224
      %v1623 = vsel %vm1618, %v1609, %v1226
      %v1624 = vsel %vm1618, %v1610, %v1228
      %v1625 = vsel %vm1618, %v1611, %v1230
      %v1626 = vsel %vm1618, %v1612, %v1232
      %v1627 = vsel %vm1618, %v1613, %v1234
      %v1628 = vsel %vm1618, %v1614, %v1236
      %v1629 = vsel %vm1618, %v1615, %v1238
      %v1630 = vsel %vm1618, %v1616, %v1240
      %v1631 = vsel %vm1618, %v1617, %v1242
      %vm1632 = vcmask 359424
      %v1633 = vsel %vm1632, %v1619, %v1270
      %v1634 = vsel %vm1632, %v1620, %v1272
      %v1635 = vsel %vm1632, %v1621, %v1274
      %v1636 = vsel %vm1632, %v1622, %v1276
      %v1637 = vsel %vm1632, %v1623, %v1278
      %v1638 = vsel %vm1632, %v1624, %v1280
      %v1639 = vsel %vm1632, %v1625, %v1282
      %v1640 = vsel %vm1632, %v1626, %v1284
      %v1641 = vsel %vm1632, %v1627, %v1286
      %v1642 = vsel %vm1632, %v1628, %v1288
      %v1643 = vsel %vm1632, %v1629, %v1290
      %v1644 = vsel %vm1632, %v1630, %v1292
      %v1645 = vsel %vm1632, %v1631, %v1294
      %vm1646 = vcmask 392192
      %v1647 = vsel %vm1646, %v1633, %v1310
      %v1648 = vsel %vm1646, %v1634, %v1312
      %v1649 = vsel %vm1646, %v1635, %v1314
      %v1650 = vsel %vm1646, %v1636, %v1316
      %v1651 = vsel %vm1646, %v1637, %v1318
      %v1652 = vsel %vm1646, %v1638, %v1320
      %v1653 = vsel %vm1646, %v1639, %v1322
      %v1654 = vsel %vm1646, %v1640, %v1324
      %v1655 = vsel %vm1646, %v1641, %v1326
      %v1656 = vsel %vm1646, %v1642, %v1328
      %v1657 = vsel %vm1646, %v1643, %v1330
      %v1658 = vsel %vm1646, %v1644, %v1332
      %v1659 = vsel %vm1646, %v1645, %v1334
      %vm1660 = vcmask 424960
      %v1661 = vsel %vm1660, %v1647, %v1362
      %v1662 = vsel %vm1660, %v1648, %v1364
      %v1663 = vsel %vm1660, %v1649, %v1366
      %v1664 = vsel %vm1660, %v1650, %v1368
      %v1665 = vsel %vm1660, %v1651, %v1370
      %v1666 = vsel %vm1660, %v1652, %v1372
      %v1667 = vsel %vm1660, %v1653, %v1374
      %v1668 = vsel %vm1660, %v1654, %v1376
      %v1669 = vsel %vm1660, %v1655, %v1378
      %v1670 = vsel %vm1660, %v1656, %v1380
      %v1671 = vsel %vm1660, %v1657, %v1382
      %v1672 = vsel %vm1660, %v1658, %v1384
      %v1673 = vsel %vm1660, %v1659, %v1386
      %vm1674 = vcmask 457728
      %v1675 = vsel %vm1674, %v1661, %v1414
      %v1676 = vsel %vm1674, %v1662, %v1416
      %v1677 = vsel %vm1674, %v1663, %v1418
      %v1678 = vsel %vm1674, %v1664, %v1420
      %v1679 = vsel %vm1674, %v1665, %v1422
      %v1680 = vsel %vm1674, %v1666, %v1424
      %v1681 = vsel %vm1674, %v1667, %v1426
      %v1682 = vsel %vm1674, %v1668, %v1428
      %v1683 = vsel %vm1674, %v1669, %v1430
      %v1684 = vsel %vm1674, %v1670, %v1432
      %v1685 = vsel %vm1674, %v1671, %v1434
      %v1686 = vsel %vm1674, %v1672, %v1436
      %v1687 = vsel %vm1674, %v1673, %v1438
      %vm1688 = vcmask 490496
      %v1689 = vsel %vm1688, %v1675, %v1454
      %v1690 = vsel %vm1688, %v1676, %v1456
      %v1691 = vsel %vm1688, %v1677, %v1458
      %v1692 = vsel %vm1688, %v1678, %v1460
      %v1693 = vsel %vm1688, %v1679, %v1462
      %v1694 = vsel %vm1688, %v1680, %v1464
      %v1695 = vsel %vm1688, %v1681, %v1466
      %v1696 = vsel %vm1688, %v1682, %v1468
      %v1697 = vsel %vm1688, %v1683, %v1470
      %v1698 = vsel %vm1688, %v1684, %v1472
      %v1699 = vsel %vm1688, %v1685, %v1474
      %v1700 = vsel %vm1688, %v1686, %v1476
      %v1701 = vsel %vm1688, %v1687, %v1478
      %1715 = vrot.lane.b32.xlu0 %v654, 4
      %v1716 = vpop.permute.xlu0 %1715
      %1717 = vrot.lane.b32.xlu0 %v655, 4
      %v1718 = vpop.permute.xlu0 %1717
      %1719 = vrot.lane.b32.xlu0 %v656, 4
      %v1720 = vpop.permute.xlu0 %1719
      %1721 = vrot.lane.b32.xlu0 %v657, 4
      %v1722 = vpop.permute.xlu0 %1721
      %1723 = vrot.lane.b32.xlu0 %v658, 4
      %v1724 = vpop.permute.xlu0 %1723
      %1725 = vrot.lane.b32.xlu0 %v659, 4
      %v1726 = vpop.permute.xlu0 %1725
      %1727 = vrot.lane.b32.xlu0 %v660, 4
      %v1728 = vpop.permute.xlu0 %1727
      %1729 = vrot.lane.b32.xlu0 %v661, 4
      %v1730 = vpop.permute.xlu0 %1729
      %1731 = vrot.lane.b32.xlu0 %v662, 4
      %v1732 = vpop.permute.xlu0 %1731
      %1733 = vrot.lane.b32.xlu0 %v663, 4
      %v1734 = vpop.permute.xlu0 %1733
      %1735 = vrot.lane.b32.xlu0 %v664, 4
      %v1736 = vpop.permute.xlu0 %1735
      %1737 = vrot.lane.b32.xlu0 %v665, 4
      %v1738 = vpop.permute.xlu0 %1737
      %1739 = vrot.lane.b32.xlu0 %v666, 4
      %v1740 = vpop.permute.xlu0 %1739
      %1767 = vrot.lane.b32.xlu0 %v667, 8
      %v1768 = vpop.permute.xlu0 %1767
      %1769 = vrot.lane.b32.xlu0 %v668, 8
      %v1770 = vpop.permute.xlu0 %1769
      %1771 = vrot.lane.b32.xlu0 %v669, 8
      %v1772 = vpop.permute.xlu0 %1771
      %1773 = vrot.lane.b32.xlu0 %v670, 8
      %v1774 = vpop.permute.xlu0 %1773
      %1775 = vrot.lane.b32.xlu0 %v671, 8
      %v1776 = vpop.permute.xlu0 %1775
      %1777 = vrot.lane.b32.xlu0 %v672, 8
      %v1778 = vpop.permute.xlu0 %1777
      %1779 = vrot.lane.b32.xlu0 %v673, 8
      %v1780 = vpop.permute.xlu0 %1779
      %1781 = vrot.lane.b32.xlu0 %v674, 8
      %v1782 = vpop.permute.xlu0 %1781
      %1783 = vrot.lane.b32.xlu0 %v675, 8
      %v1784 = vpop.permute.xlu0 %1783
      %1785 = vrot.lane.b32.xlu0 %v676, 8
      %v1786 = vpop.permute.xlu0 %1785
      %1787 = vrot.lane.b32.xlu0 %v677, 8
      %v1788 = vpop.permute.xlu0 %1787
      %1789 = vrot.lane.b32.xlu0 %v678, 8
      %v1790 = vpop.permute.xlu0 %1789
      %1791 = vrot.lane.b32.xlu0 %v679, 8
      %v1792 = vpop.permute.xlu0 %1791
      %1819 = vrot.lane.b32.xlu0 %v680, 12
      %v1820 = vpop.permute.xlu0 %1819
      %1821 = vrot.lane.b32.xlu0 %v681, 12
      %v1822 = vpop.permute.xlu0 %1821
      %1823 = vrot.lane.b32.xlu0 %v682, 12
      %v1824 = vpop.permute.xlu0 %1823
      %1825 = vrot.lane.b32.xlu0 %v683, 12
      %v1826 = vpop.permute.xlu0 %1825
      %1827 = vrot.lane.b32.xlu0 %v684, 12
      %v1828 = vpop.permute.xlu0 %1827
      %1829 = vrot.lane.b32.xlu0 %v685, 12
      %v1830 = vpop.permute.xlu0 %1829
      %1831 = vrot.lane.b32.xlu0 %v686, 12
      %v1832 = vpop.permute.xlu0 %1831
      %1833 = vrot.lane.b32.xlu0 %v687, 12
      %v1834 = vpop.permute.xlu0 %1833
      %1835 = vrot.lane.b32.xlu0 %v688, 12
      %v1836 = vpop.permute.xlu0 %1835
      %1837 = vrot.lane.b32.xlu0 %v689, 12
      %v1838 = vpop.permute.xlu0 %1837
      %1839 = vrot.lane.b32.xlu0 %v690, 12
      %v1840 = vpop.permute.xlu0 %1839
      %1841 = vrot.lane.b32.xlu0 %v691, 12
      %v1842 = vpop.permute.xlu0 %1841
      %1843 = vrot.lane.b32.xlu0 %v692, 12
      %v1844 = vpop.permute.xlu0 %1843
      %1871 = vrot.lane.b32.xlu0 %v693, 16
      %v1872 = vpop.permute.xlu0 %1871
      %1873 = vrot.lane.b32.xlu0 %v694, 16
      %v1874 = vpop.permute.xlu0 %1873
      %1875 = vrot.lane.b32.xlu0 %v695, 16
      %v1876 = vpop.permute.xlu0 %1875
      %1877 = vrot.lane.b32.xlu0 %v696, 16
      %v1878 = vpop.permute.xlu0 %1877
      %1879 = vrot.lane.b32.xlu0 %v697, 16
      %v1880 = vpop.permute.xlu0 %1879
      %1881 = vrot.lane.b32.xlu0 %v698, 16
      %v1882 = vpop.permute.xlu0 %1881
      %1883 = vrot.lane.b32.xlu0 %v699, 16
      %v1884 = vpop.permute.xlu0 %1883
      %1885 = vrot.lane.b32.xlu0 %v700, 16
      %v1886 = vpop.permute.xlu0 %1885
      %1887 = vrot.lane.b32.xlu0 %v701, 16
      %v1888 = vpop.permute.xlu0 %1887
      %1889 = vrot.lane.b32.xlu0 %v702, 16
      %v1890 = vpop.permute.xlu0 %1889
      %1891 = vrot.lane.b32.xlu0 %v703, 16
      %v1892 = vpop.permute.xlu0 %1891
      %1893 = vrot.lane.b32.xlu0 %v704, 16
      %v1894 = vpop.permute.xlu0 %1893
      %1895 = vrot.lane.b32.xlu0 %v705, 16
      %v1896 = vpop.permute.xlu0 %1895
      %1911 = vrot.lane.b32.xlu0 %v694, 20
      %v1912 = vpop.permute.xlu0 %1911
      %1913 = vrot.lane.b32.xlu0 %v695, 20
      %v1914 = vpop.permute.xlu0 %1913
      %1915 = vrot.lane.b32.xlu0 %v696, 20
      %v1916 = vpop.permute.xlu0 %1915
      %1917 = vrot.lane.b32.xlu0 %v697, 20
      %v1918 = vpop.permute.xlu0 %1917
      %1919 = vrot.lane.b32.xlu0 %v698, 20
      %v1920 = vpop.permute.xlu0 %1919
      %1921 = vrot.lane.b32.xlu0 %v699, 20
      %v1922 = vpop.permute.xlu0 %1921
      %1923 = vrot.lane.b32.xlu0 %v700, 20
      %v1924 = vpop.permute.xlu0 %1923
      %1925 = vrot.lane.b32.xlu0 %v701, 20
      %v1926 = vpop.permute.xlu0 %1925
      %1927 = vrot.lane.b32.xlu0 %v702, 20
      %v1928 = vpop.permute.xlu0 %1927
      %1929 = vrot.lane.b32.xlu0 %v703, 20
      %v1930 = vpop.permute.xlu0 %1929
      %1931 = vrot.lane.b32.xlu0 %v704, 20
      %v1932 = vpop.permute.xlu0 %1931
      %1933 = vrot.lane.b32.xlu0 %v705, 20
      %v1934 = vpop.permute.xlu0 %1933
      %1935 = vrot.lane.b32.xlu0 %v706, 20
      %v1936 = vpop.permute.xlu0 %1935
      %1963 = vrot.lane.b32.xlu0 %v707, 24
      %v1964 = vpop.permute.xlu0 %1963
      %1965 = vrot.lane.b32.xlu0 %v708, 24
      %v1966 = vpop.permute.xlu0 %1965
      %1967 = vrot.lane.b32.xlu0 %v709, 24
      %v1968 = vpop.permute.xlu0 %1967
      %1969 = vrot.lane.b32.xlu0 %v710, 24
      %v1970 = vpop.permute.xlu0 %1969
      %1971 = vrot.lane.b32.xlu0 %v711, 24
      %v1972 = vpop.permute.xlu0 %1971
      %1973 = vrot.lane.b32.xlu0 %v712, 24
      %v1974 = vpop.permute.xlu0 %1973
      %1975 = vrot.lane.b32.xlu0 %v713, 24
      %v1976 = vpop.permute.xlu0 %1975
      %1977 = vrot.lane.b32.xlu0 %v714, 24
      %v1978 = vpop.permute.xlu0 %1977
      %1979 = vrot.lane.b32.xlu0 %v715, 24
      %v1980 = vpop.permute.xlu0 %1979
      %1981 = vrot.lane.b32.xlu0 %v716, 24
      %v1982 = vpop.permute.xlu0 %1981
      %1983 = vrot.lane.b32.xlu0 %v717, 24
      %v1984 = vpop.permute.xlu0 %1983
      %1985 = vrot.lane.b32.xlu0 %v718, 24
      %v1986 = vpop.permute.xlu0 %1985
      %1987 = vrot.lane.b32.xlu0 %v719, 24
      %v1988 = vpop.permute.xlu0 %1987
      %2015 = vrot.lane.b32.xlu0 %v720, 28
      %v2016 = vpop.permute.xlu0 %2015
      %2017 = vrot.lane.b32.xlu0 %v721, 28
      %v2018 = vpop.permute.xlu0 %2017
      %2019 = vrot.lane.b32.xlu0 %v722, 28
      %v2020 = vpop.permute.xlu0 %2019
      %2021 = vrot.lane.b32.xlu0 %v723, 28
      %v2022 = vpop.permute.xlu0 %2021
      %2023 = vrot.lane.b32.xlu0 %v724, 28
      %v2024 = vpop.permute.xlu0 %2023
      %2025 = vrot.lane.b32.xlu0 %v725, 28
      %v2026 = vpop.permute.xlu0 %2025
      %2027 = vrot.lane.b32.xlu0 %v726, 28
      %v2028 = vpop.permute.xlu0 %2027
      %2029 = vrot.lane.b32.xlu0 %v727, 28
      %v2030 = vpop.permute.xlu0 %2029
      %2031 = vrot.lane.b32.xlu0 %v728, 28
      %v2032 = vpop.permute.xlu0 %2031
      %2033 = vrot.lane.b32.xlu0 %v729, 28
      %v2034 = vpop.permute.xlu0 %2033
      %2035 = vrot.lane.b32.xlu0 %v730, 28
      %v2036 = vpop.permute.xlu0 %2035
      %2037 = vrot.lane.b32.xlu0 %v731, 28
      %v2038 = vpop.permute.xlu0 %2037
      %2039 = vrot.lane.b32.xlu0 %v732, 28
      %v2040 = vpop.permute.xlu0 %2039
      %2055 = vrot.lane.b32.xlu0 %v721, 32
      %v2056 = vpop.permute.xlu0 %2055
      %2057 = vrot.lane.b32.xlu0 %v722, 32
      %v2058 = vpop.permute.xlu0 %2057
      %2059 = vrot.lane.b32.xlu0 %v723, 32
      %v2060 = vpop.permute.xlu0 %2059
      %2061 = vrot.lane.b32.xlu0 %v724, 32
      %v2062 = vpop.permute.xlu0 %2061
      %2063 = vrot.lane.b32.xlu0 %v725, 32
      %v2064 = vpop.permute.xlu0 %2063
      %2065 = vrot.lane.b32.xlu0 %v726, 32
      %v2066 = vpop.permute.xlu0 %2065
      %2067 = vrot.lane.b32.xlu0 %v727, 32
      %v2068 = vpop.permute.xlu0 %2067
      %2069 = vrot.lane.b32.xlu0 %v728, 32
      %v2070 = vpop.permute.xlu0 %2069
      %2071 = vrot.lane.b32.xlu0 %v729, 32
      %v2072 = vpop.permute.xlu0 %2071
      %2073 = vrot.lane.b32.xlu0 %v730, 32
      %v2074 = vpop.permute.xlu0 %2073
      %2075 = vrot.lane.b32.xlu0 %v731, 32
      %v2076 = vpop.permute.xlu0 %2075
      %2077 = vrot.lane.b32.xlu0 %v732, 32
      %v2078 = vpop.permute.xlu0 %2077
      %2079 = vrot.lane.b32.xlu0 %v733, 32
      %v2080 = vpop.permute.xlu0 %2079
      %2107 = vrot.lane.b32.xlu0 %v734, 36
      %v2108 = vpop.permute.xlu0 %2107
      %2109 = vrot.lane.b32.xlu0 %v735, 36
      %v2110 = vpop.permute.xlu0 %2109
      %2111 = vrot.lane.b32.xlu0 %v736, 36
      %v2112 = vpop.permute.xlu0 %2111
      %2113 = vrot.lane.b32.xlu0 %v737, 36
      %v2114 = vpop.permute.xlu0 %2113
      %2115 = vrot.lane.b32.xlu0 %v738, 36
      %v2116 = vpop.permute.xlu0 %2115
      %2117 = vrot.lane.b32.xlu0 %v739, 36
      %v2118 = vpop.permute.xlu0 %2117
      %2119 = vrot.lane.b32.xlu0 %v740, 36
      %v2120 = vpop.permute.xlu0 %2119
      %2121 = vrot.lane.b32.xlu0 %v741, 36
      %v2122 = vpop.permute.xlu0 %2121
      %2123 = vrot.lane.b32.xlu0 %v742, 36
      %v2124 = vpop.permute.xlu0 %2123
      %2125 = vrot.lane.b32.xlu0 %v743, 36
      %v2126 = vpop.permute.xlu0 %2125
      %2127 = vrot.lane.b32.xlu0 %v744, 36
      %v2128 = vpop.permute.xlu0 %2127
      %2129 = vrot.lane.b32.xlu0 %v745, 36
      %v2130 = vpop.permute.xlu0 %2129
      %2131 = vrot.lane.b32.xlu0 %v746, 36
      %v2132 = vpop.permute.xlu0 %2131
      %2159 = vrot.lane.b32.xlu0 %v747, 40
      %v2160 = vpop.permute.xlu0 %2159
      %2161 = vrot.lane.b32.xlu0 %v748, 40
      %v2162 = vpop.permute.xlu0 %2161
      %2163 = vrot.lane.b32.xlu0 %v749, 40
      %v2164 = vpop.permute.xlu0 %2163
      %2165 = vrot.lane.b32.xlu0 %v750, 40
      %v2166 = vpop.permute.xlu0 %2165
      %2167 = vrot.lane.b32.xlu0 %v751, 40
      %v2168 = vpop.permute.xlu0 %2167
      %2169 = vrot.lane.b32.xlu0 %v752, 40
      %v2170 = vpop.permute.xlu0 %2169
      %2171 = vrot.lane.b32.xlu0 %v753, 40
      %v2172 = vpop.permute.xlu0 %2171
      %2173 = vrot.lane.b32.xlu0 %v754, 40
      %v2174 = vpop.permute.xlu0 %2173
      %2175 = vrot.lane.b32.xlu0 %v755, 40
      %v2176 = vpop.permute.xlu0 %2175
      %2177 = vrot.lane.b32.xlu0 %v756, 40
      %v2178 = vpop.permute.xlu0 %2177
      %2179 = vrot.lane.b32.xlu0 %v757, 40
      %v2180 = vpop.permute.xlu0 %2179
      %2181 = vrot.lane.b32.xlu0 %v758, 40
      %v2182 = vpop.permute.xlu0 %2181
      %2183 = vrot.lane.b32.xlu0 %v759, 40
      %v2184 = vpop.permute.xlu0 %2183
      %v2198 = vsel %vm1492, %v641, %v1716
      %v2199 = vsel %vm1492, %v642, %v1718
      %v2200 = vsel %vm1492, %v643, %v1720
      %v2201 = vsel %vm1492, %v644, %v1722
      %v2202 = vsel %vm1492, %v645, %v1724
      %v2203 = vsel %vm1492, %v646, %v1726
      %v2204 = vsel %vm1492, %v647, %v1728
      %v2205 = vsel %vm1492, %v648, %v1730
      %v2206 = vsel %vm1492, %v649, %v1732
      %v2207 = vsel %vm1492, %v650, %v1734
      %v2208 = vsel %vm1492, %v651, %v1736
      %v2209 = vsel %vm1492, %v652, %v1738
      %v2210 = vsel %vm1492, %v653, %v1740
      %v2211 = vsel %vm1506, %v2198, %v1768
      %v2212 = vsel %vm1506, %v2199, %v1770
      %v2213 = vsel %vm1506, %v2200, %v1772
      %v2214 = vsel %vm1506, %v2201, %v1774
      %v2215 = vsel %vm1506, %v2202, %v1776
      %v2216 = vsel %vm1506, %v2203, %v1778
      %v2217 = vsel %vm1506, %v2204, %v1780
      %v2218 = vsel %vm1506, %v2205, %v1782
      %v2219 = vsel %vm1506, %v2206, %v1784
      %v2220 = vsel %vm1506, %v2207, %v1786
      %v2221 = vsel %vm1506, %v2208, %v1788
      %v2222 = vsel %vm1506, %v2209, %v1790
      %v2223 = vsel %vm1506, %v2210, %v1792
      %v2224 = vsel %vm1520, %v2211, %v1820
      %v2225 = vsel %vm1520, %v2212, %v1822
      %v2226 = vsel %vm1520, %v2213, %v1824
      %v2227 = vsel %vm1520, %v2214, %v1826
      %v2228 = vsel %vm1520, %v2215, %v1828
      %v2229 = vsel %vm1520, %v2216, %v1830
      %v2230 = vsel %vm1520, %v2217, %v1832
      %v2231 = vsel %vm1520, %v2218, %v1834
      %v2232 = vsel %vm1520, %v2219, %v1836
      %v2233 = vsel %vm1520, %v2220, %v1838
      %v2234 = vsel %vm1520, %v2221, %v1840
      %v2235 = vsel %vm1520, %v2222, %v1842
      %v2236 = vsel %vm1520, %v2223, %v1844
      %v2237 = vsel %vm1534, %v2224, %v1872
      %v2238 = vsel %vm1534, %v2225, %v1874
      %v2239 = vsel %vm1534, %v2226, %v1876
      %v2240 = vsel %vm1534, %v2227, %v1878
      %v2241 = vsel %vm1534, %v2228, %v1880
      %v2242 = vsel %vm1534, %v2229, %v1882
      %v2243 = vsel %vm1534, %v2230, %v1884
      %v2244 = vsel %vm1534, %v2231, %v1886
      %v2245 = vsel %vm1534, %v2232, %v1888
      %v2246 = vsel %vm1534, %v2233, %v1890
      %v2247 = vsel %vm1534, %v2234, %v1892
      %v2248 = vsel %vm1534, %v2235, %v1894
      %v2249 = vsel %vm1534, %v2236, %v1896
      %v2250 = vsel %vm1548, %v2237, %v1912
      %v2251 = vsel %vm1548, %v2238, %v1914
      %v2252 = vsel %vm1548, %v2239, %v1916
      %v2253 = vsel %vm1548, %v2240, %v1918
      %v2254 = vsel %vm1548, %v2241, %v1920
      %v2255 = vsel %vm1548, %v2242, %v1922
      %v2256 = vsel %vm1548, %v2243, %v1924
      %v2257 = vsel %vm1548, %v2244, %v1926
      %v2258 = vsel %vm1548, %v2245, %v1928
      %v2259 = vsel %vm1548, %v2246, %v1930
      %v2260 = vsel %vm1548, %v2247, %v1932
      %v2261 = vsel %vm1548, %v2248, %v1934
      %v2262 = vsel %vm1548, %v2249, %v1936
      %v2263 = vsel %vm1562, %v2250, %v1964
      %v2264 = vsel %vm1562, %v2251, %v1966
      %v2265 = vsel %vm1562, %v2252, %v1968
      %v2266 = vsel %vm1562, %v2253, %v1970
      %v2267 = vsel %vm1562, %v2254, %v1972
      %v2268 = vsel %vm1562, %v2255, %v1974
      %v2269 = vsel %vm1562, %v2256, %v1976
      %v2270 = vsel %vm1562, %v2257, %v1978
      %v2271 = vsel %vm1562, %v2258, %v1980
      %v2272 = vsel %vm1562, %v2259, %v1982
      %v2273 = vsel %vm1562, %v2260, %v1984
      %v2274 = vsel %vm1562, %v2261, %v1986
      %v2275 = vsel %vm1562, %v2262, %v1988
      %v2276 = vsel %vm1576, %v2263, %v2016
      %v2277 = vsel %vm1576, %v2264, %v2018
      %v2278 = vsel %vm1576, %v2265, %v2020
      %v2279 = vsel %vm1576, %v2266, %v2022
      %v2280 = vsel %vm1576, %v2267, %v2024
      %v2281 = vsel %vm1576, %v2268, %v2026
      %v2282 = vsel %vm1576, %v2269, %v2028
      %v2283 = vsel %vm1576, %v2270, %v2030
      %v2284 = vsel %vm1576, %v2271, %v2032
      %v2285 = vsel %vm1576, %v2272, %v2034
      %v2286 = vsel %vm1576, %v2273, %v2036
      %v2287 = vsel %vm1576, %v2274, %v2038
      %v2288 = vsel %vm1576, %v2275, %v2040
      %v2289 = vsel %vm1590, %v2276, %v2056
      %v2290 = vsel %vm1590, %v2277, %v2058
      %v2291 = vsel %vm1590, %v2278, %v2060
      %v2292 = vsel %vm1590, %v2279, %v2062
      %v2293 = vsel %vm1590, %v2280, %v2064
      %v2294 = vsel %vm1590, %v2281, %v2066
      %v2295 = vsel %vm1590, %v2282, %v2068
      %v2296 = vsel %vm1590, %v2283, %v2070
      %v2297 = vsel %vm1590, %v2284, %v2072
      %v2298 = vsel %vm1590, %v2285, %v2074
      %v2299 = vsel %vm1590, %v2286, %v2076
      %v2300 = vsel %vm1590, %v2287, %v2078
      %v2301 = vsel %vm1590, %v2288, %v2080
      %v2302 = vsel %vm1604, %v2289, %v2108
      %v2303 = vsel %vm1604, %v2290, %v2110
      %v2304 = vsel %vm1604, %v2291, %v2112
      %v2305 = vsel %vm1604, %v2292, %v2114
      %v2306 = vsel %vm1604, %v2293, %v2116
      %v2307 = vsel %vm1604, %v2294, %v2118
      %v2308 = vsel %vm1604, %v2295, %v2120
      %v2309 = vsel %vm1604, %v2296, %v2122
      %v2310 = vsel %vm1604, %v2297, %v2124
      %v2311 = vsel %vm1604, %v2298, %v2126
      %v2312 = vsel %vm1604, %v2299, %v2128
      %v2313 = vsel %vm1604, %v2300, %v2130
      %v2314 = vsel %vm1604, %v2301, %v2132
      %v2315 = vsel %vm1618, %v2302, %v2160
      %v2316 = vsel %vm1618, %v2303, %v2162
      %v2317 = vsel %vm1618, %v2304, %v2164
      %v2318 = vsel %vm1618, %v2305, %v2166
      %v2319 = vsel %vm1618, %v2306, %v2168
      %v2320 = vsel %vm1618, %v2307, %v2170
      %v2321 = vsel %vm1618, %v2308, %v2172
      %v2322 = vsel %vm1618, %v2309, %v2174
      %v2323 = vsel %vm1618, %v2310, %v2176
      %v2324 = vsel %vm1618, %v2311, %v2178
      %v2325 = vsel %vm1618, %v2312, %v2180
      %v2326 = vsel %vm1618, %v2313, %v2182
      %v2327 = vsel %vm1618, %v2314, %v2184
      %2341 = vrot.lane.b32.xlu0 %v2315, 64
      %v2342 = vpop.permute.xlu0 %2341
      %2343 = vrot.lane.b32.xlu0 %v2316, 64
      %v2344 = vpop.permute.xlu0 %2343
      %2345 = vrot.lane.b32.xlu0 %v2317, 64
      %v2346 = vpop.permute.xlu0 %2345
      %2347 = vrot.lane.b32.xlu0 %v2318, 64
      %v2348 = vpop.permute.xlu0 %2347
      %2349 = vrot.lane.b32.xlu0 %v2319, 64
      %v2350 = vpop.permute.xlu0 %2349
      %2351 = vrot.lane.b32.xlu0 %v2320, 64
      %v2352 = vpop.permute.xlu0 %2351
      %2353 = vrot.lane.b32.xlu0 %v2321, 64
      %v2354 = vpop.permute.xlu0 %2353
      %2355 = vrot.lane.b32.xlu0 %v2322, 64
      %v2356 = vpop.permute.xlu0 %2355
      %2357 = vrot.lane.b32.xlu0 %v2323, 64
      %v2358 = vpop.permute.xlu0 %2357
      %2359 = vrot.lane.b32.xlu0 %v2324, 64
      %v2360 = vpop.permute.xlu0 %2359
      %2361 = vrot.lane.b32.xlu0 %v2325, 64
      %v2362 = vpop.permute.xlu0 %2361
      %2363 = vrot.lane.b32.xlu0 %v2326, 64
      %v2364 = vpop.permute.xlu0 %2363
      %2365 = vrot.lane.b32.xlu0 %v2327, 64
      %v2366 = vpop.permute.xlu0 %2365
      %vm2380 = vcmask 523264
      %v2381 = vsel %vm2380, %v1689, %v2342
      %v2382 = vsel %vm2380, %v1690, %v2344
      %v2383 = vsel %vm2380, %v1691, %v2346
      %v2384 = vsel %vm2380, %v1692, %v2348
      %v2385 = vsel %vm2380, %v1693, %v2350
      %v2386 = vsel %vm2380, %v1694, %v2352
      %v2387 = vsel %vm2380, %v1695, %v2354
      %v2388 = vsel %vm2380, %v1696, %v2356
      %v2389 = vsel %vm2380, %v1697, %v2358
      %v2390 = vsel %vm2380, %v1698, %v2360
      %v2391 = vsel %vm2380, %v1699, %v2362
      %v2392 = vsel %vm2380, %v1700, %v2364
      %v2393 = vsel %vm2380, %v1701, %v2366
      %v2394 = vld [vmem:[%s3] sm:$0xff]
      %v2395 = vld [vmem:[%s3 + $0x8] sm:$0xff]
      %v2396 = vld [vmem:[%s3 + $0x10] sm:$0xff]
      %v2397 = vld [vmem:[%s3 + $0x18] sm:$0xff]
      %v2398 = vld [vmem:[%s3 + $0x20] sm:$0xff]
      %v2399 = vld [vmem:[%s3 + $0x28] sm:$0xff]
      %v2400 = vld [vmem:[%s3 + $0x30] sm:$0xff]
      %v2401 = vld [vmem:[%s3 + $0x38] sm:$0xff]
      %v2402 = vld [vmem:[%s3 + $0x40] sm:$0xff]
      %v2403 = vld [vmem:[%s3 + $0x48] sm:$0xff]
      %v2404 = vld [vmem:[%s3 + $0x50] sm:$0xff]
      %v2405 = vld [vmem:[%s3 + $0x58] sm:$0xff]
      %v2406 = vld [vmem:[%s3 + $0x60] sm:$0xff]
      %v2407 = vld [vmem:[%s3 + $0x68] sm:$0xf]
      %vm2408 = vcmask 883712
      %v2410 = vsel %vm2408, %v2381, 0
      %v2413 = vsel %vm2408, %v2382, 0
      %v2416 = vsel %vm2408, %v2383, 0
      %v2419 = vsel %vm2408, %v2384, 0
      %v2422 = vsel %vm2408, %v2385, 0
      %v2425 = vsel %vm2408, %v2386, 0
      %v2428 = vsel %vm2408, %v2387, 0
      %v2431 = vsel %vm2408, %v2388, 0
      %v2434 = vsel %vm2408, %v2389, 0
      %v2437 = vsel %vm2408, %v2390, 0
      %v2440 = vsel %vm2408, %v2391, 0
      %v2443 = vsel %vm2408, %v2392, 0
      %v2446 = vsel %vm2408, %v2393, 0
      %vm2448 = vcmask 1043456
      %v2450 = vsel %vm2448, %v2407, 0
      %2452 = vmatprep.subr.mxu0 0.0
      %2453 = vmatpush1.msra.mxu0 0.0
      %2454 = vmatprep.subr.mxu0 0.0
      %2455 = vmatpush1.msra.mxu0 0.0
      %2456 = vmatprep.subr.mxu0 0.0
      %2457 = vmatpush1.msra.mxu0 %v2450
      %2458 = vmatprep.subr.mxu0 0.0
      %2459 = vmatpush1.msra.mxu0 %v2406
      %2460 = vmatprep.subr.mxu0 0.0
      %2461 = vmatpush1.msra.mxu0 %v2405
      %2462 = vmatprep.subr.mxu0 0.0
      %2463 = vmatpush1.msra.mxu0 %v2404
      %2464 = vmatprep.subr.mxu0 0.0
      %2465 = vmatpush1.msra.mxu0 %v2403
      %2466 = vmatprep.subr.mxu0 0.0
      %2467 = vmatpush1.msra.mxu0 %v2402
      %2468 = vmatprep.subr.mxu0 0.0
      %2469 = vmatpush1.msra.mxu0 %v2401
      %2470 = vmatprep.subr.mxu0 0.0
      %2471 = vmatpush1.msra.mxu0 %v2400
      %2472 = vmatprep.subr.mxu0 0.0
      %2473 = vmatpush1.msra.mxu0 %v2399
      %2474 = vmatprep.subr.mxu0 0.0
      %2475 = vmatpush1.msra.mxu0 %v2398
      %2476 = vmatprep.subr.mxu0 0.0
      %2477 = vmatpush1.msra.mxu0 %v2397
      %2478 = vmatprep.subr.mxu0 0.0
      %2479 = vmatpush1.msra.mxu0 %v2396
      %2480 = vmatprep.subr.mxu0 0.0
      %2481 = vmatpush1.msra.mxu0 %v2395
      %2482 = vmatprep.subr.mxu0 0.0
      %2483 = vmatpush1.msra.mxu0 %v2394
      %2484 = vmatprep.subr.mxu0 0.0
      %2485 = vmatpush2.msra.mxu0 0.0
      %2486 = vmatprep.subr.mxu0 0.0
      %2487 = vmatpush2.msra.mxu0 0.0
      %2488 = vmatprep.subr.mxu0 0.0
      %2489 = vmatpush2.msra.mxu0 0.0
      %2490 = vmatprep.subr.mxu0 0.0
      %2491 = vmatpush2.msra.mxu0 0.0
      %2492 = vmatprep.subr.mxu0 0.0
      %2493 = vmatpush2.msra.mxu0 0.0
      %2494 = vmatprep.subr.mxu0 0.0
      %2495 = vmatpush2.msra.mxu0 0.0
      %2496 = vmatprep.subr.mxu0 0.0
      %2497 = vmatpush2.msra.mxu0 0.0
      %2498 = vmatprep.subr.mxu0 0.0
      %2499 = vmatpush2.msra.mxu0 0.0
      %2500 = vmatprep.subr.mxu0 0.0
      %2501 = vmatpush2.msra.mxu0 0.0
      %2502 = vmatprep.subr.mxu0 0.0
      %2503 = vmatpush2.msra.mxu0 0.0
      %2504 = vmatprep.subr.mxu0 0.0
      %2505 = vmatpush2.msra.mxu0 0.0
      %2506 = vmatprep.subr.mxu0 0.0
      %2507 = vmatpush2.msra.mxu0 0.0
      %2508 = vmatprep.subr.mxu0 0.0
      %2509 = vmatpush2.msra.mxu0 0.0
      %2510 = vmatprep.subr.mxu0 0.0
      %2511 = vmatpush2.msra.mxu0 0.0
      %2512 = vmatprep.subr.mxu0 0.0
      %2513 = vmatpush2.msra.mxu0 0.0
      %2514 = vmatprep.subr.mxu0 0.0
      %2515 = vmatpush2.msra.mxu0 0.0
      %2516 = vmatprep.mubr.f32.mxu0 0.0
      %2517 = vmatmul.mubr.f32.gmra.mxu0 %v2410
      %v2518 = vpop.f32.mrf.mxu0
      %v2519 = vadd.f32 0.0, %v2518
      %v2520 = vpop.f32.mrf.mxu0
      %2521 = vmatprep.mubr.f32.mxu0 0.0
      %2522 = vmatmul.mubr.f32.gmra.mxu0 %v2413
      %v2523 = vpop.f32.mrf.mxu0
      %v2524 = vadd.f32 0.0, %v2523
      %v2525 = vpop.f32.mrf.mxu0
      %2526 = vmatprep.mubr.f32.mxu0 0.0
      %2527 = vmatmul.mubr.f32.gmra.mxu0 %v2416
      %v2528 = vpop.f32.mrf.mxu0
      %v2529 = vadd.f32 0.0, %v2528
      %v2530 = vpop.f32.mrf.mxu0
      %2531 = vmatprep.mubr.f32.mxu0 0.0
      %2532 = vmatmul.mubr.f32.gmra.mxu0 %v2419
      %v2533 = vpop.f32.mrf.mxu0
      %v2534 = vadd.f32 0.0, %v2533
      %v2535 = vpop.f32.mrf.mxu0
      %2536 = vmatprep.mubr.f32.mxu0 0.0
      %2537 = vmatmul.mubr.f32.gmra.mxu0 %v2422
      %v2538 = vpop.f32.mrf.mxu0
      %v2539 = vadd.f32 0.0, %v2538
      %v2540 = vpop.f32.mrf.mxu0
      %2541 = vmatprep.mubr.f32.mxu0 0.0
      %2542 = vmatmul.mubr.f32.gmra.mxu0 %v2425
      %v2543 = vpop.f32.mrf.mxu0
      %v2544 = vadd.f32 0.0, %v2543
      %v2545 = vpop.f32.mrf.mxu0
      %2546 = vmatprep.mubr.f32.mxu0 0.0
      %2547 = vmatmul.mubr.f32.gmra.mxu0 %v2428
      %v2548 = vpop.f32.mrf.mxu0
      %v2549 = vadd.f32 0.0, %v2548
      %v2550 = vpop.f32.mrf.mxu0
      %2551 = vmatprep.mubr.f32.mxu0 0.0
      %2552 = vmatmul.mubr.f32.gmra.mxu0 %v2431
      %v2553 = vpop.f32.mrf.mxu0
      %v2554 = vadd.f32 0.0, %v2553
      %v2555 = vpop.f32.mrf.mxu0
      %2556 = vmatprep.mubr.f32.mxu0 0.0
      %2557 = vmatmul.mubr.f32.gmra.mxu0 %v2434
      %v2558 = vpop.f32.mrf.mxu0
      %v2559 = vadd.f32 0.0, %v2558
      %v2560 = vpop.f32.mrf.mxu0
      %2561 = vmatprep.mubr.f32.mxu0 0.0
      %2562 = vmatmul.mubr.f32.gmra.mxu0 %v2437
      %v2563 = vpop.f32.mrf.mxu0
      %v2564 = vadd.f32 0.0, %v2563
      %v2565 = vpop.f32.mrf.mxu0
      %2566 = vmatprep.mubr.f32.mxu0 0.0
      %2567 = vmatmul.mubr.f32.gmra.mxu0 %v2440
      %v2568 = vpop.f32.mrf.mxu0
      %v2569 = vadd.f32 0.0, %v2568
      %v2570 = vpop.f32.mrf.mxu0
      %2571 = vmatprep.mubr.f32.mxu0 0.0
      %2572 = vmatmul.mubr.f32.gmra.mxu0 %v2443
      %v2573 = vpop.f32.mrf.mxu0
      %v2574 = vadd.f32 0.0, %v2573
      %v2575 = vpop.f32.mrf.mxu0
      %2576 = vmatprep.mubr.f32.mxu0 0.0
      %2577 = vmatmul.mubr.f32.gmra.mxu0 %v2446
      %v2578 = vpop.f32.mrf.mxu0
      %v2579 = vadd.f32 0.0, %v2578
      %v2580 = vpop.f32.mrf.mxu0
      %2581 = vdwg.mxu0
      %2582 = vst [vmem:[%s468] sm:$0xff] %v2519
      %2583 = vst [vmem:[%s468 + $0x8] sm:$0xff] %v2524
      %2584 = vst [vmem:[%s468 + $0x10] sm:$0xff] %v2529
      %2585 = vst [vmem:[%s468 + $0x18] sm:$0xff] %v2534
      %2586 = vst [vmem:[%s468 + $0x20] sm:$0xff] %v2539
      %2587 = vst [vmem:[%s468 + $0x28] sm:$0xff] %v2544
      %2588 = vst [vmem:[%s468 + $0x30] sm:$0xff] %v2549
      %2589 = vst [vmem:[%s468 + $0x38] sm:$0xff] %v2554
      %2590 = vst [vmem:[%s468 + $0x40] sm:$0xff] %v2559
      %2591 = vst [vmem:[%s468 + $0x48] sm:$0xff] %v2564
      %2592 = vst [vmem:[%s468 + $0x50] sm:$0xff] %v2569
      %2593 = vst [vmem:[%s468 + $0x58] sm:$0xff] %v2574
      %2594 = vst [vmem:[%s468 + $0x60] sm:$0xff] %v2579
      %v2595 = vld [vmem:[%s454] sm:$0xff]
      %v2596 = vld [vmem:[%s454 + $0x8] sm:$0xff]
      %v2597 = vld [vmem:[%s454 + $0x10] sm:$0xff]
      %v2598 = vld [vmem:[%s454 + $0x18] sm:$0xff]
      %v2599 = vld [vmem:[%s454 + $0x20] sm:$0xff]
      %v2600 = vld [vmem:[%s454 + $0x28] sm:$0xff]
      %v2601 = vld [vmem:[%s454 + $0x30] sm:$0xff]
      %v2602 = vld [vmem:[%s454 + $0x38] sm:$0xff]
      %v2603 = vld [vmem:[%s454 + $0x40] sm:$0xff]
      %v2604 = vld [vmem:[%s454 + $0x48] sm:$0xff]
      %v2605 = vld [vmem:[%s454 + $0x50] sm:$0xff]
      %v2606 = vld [vmem:[%s454 + $0x58] sm:$0xff]
      %v2607 = vld [vmem:[%s454 + $0x60] sm:$0xff]
      %2609 = vset.pattern.permute.xlu0 0
      %2610 = vperm.xlu0 %2609, %v2595
      %v2611 = vpop.permute.xlu0 %2610
      %2614 = vset.pattern.permute.xlu0 0
      %2615 = vperm.xlu0 %2614, %v2596
      %v2616 = vpop.permute.xlu0 %2615
      %2619 = vset.pattern.permute.xlu0 0
      %2620 = vperm.xlu0 %2619, %v2597
      %v2621 = vpop.permute.xlu0 %2620
      %2624 = vset.pattern.permute.xlu0 0
      %2625 = vperm.xlu0 %2624, %v2598
      %v2626 = vpop.permute.xlu0 %2625
      %2629 = vset.pattern.permute.xlu0 0
      %2630 = vperm.xlu0 %2629, %v2599
      %v2631 = vpop.permute.xlu0 %2630
      %2634 = vset.pattern.permute.xlu0 0
      %2635 = vperm.xlu0 %2634, %v2600
      %v2636 = vpop.permute.xlu0 %2635
      %2639 = vset.pattern.permute.xlu0 0
      %2640 = vperm.xlu0 %2639, %v2601
      %v2641 = vpop.permute.xlu0 %2640
      %2644 = vset.pattern.permute.xlu0 0
      %2645 = vperm.xlu0 %2644, %v2602
      %v2646 = vpop.permute.xlu0 %2645
      %2649 = vset.pattern.permute.xlu0 0
      %2650 = vperm.xlu0 %2649, %v2603
      %v2651 = vpop.permute.xlu0 %2650
      %2654 = vset.pattern.permute.xlu0 0
      %2655 = vperm.xlu0 %2654, %v2604
      %v2656 = vpop.permute.xlu0 %2655
      %2659 = vset.pattern.permute.xlu0 0
      %2660 = vperm.xlu0 %2659, %v2605
      %v2661 = vpop.permute.xlu0 %2660
      %2664 = vset.pattern.permute.xlu0 0
      %2665 = vperm.xlu0 %2664, %v2606
      %v2666 = vpop.permute.xlu0 %2665
      %2669 = vset.pattern.permute.xlu0 0
      %2670 = vperm.xlu0 %2669, %v2607
      %v2671 = vpop.permute.xlu0 %2670
      %v2673 = vmul.f32 %v2519, %v2611
      %v2674 = vmul.f32 %v2524, %v2616
      %v2675 = vmul.f32 %v2529, %v2621
      %v2676 = vmul.f32 %v2534, %v2626
      %v2677 = vmul.f32 %v2539, %v2631
      %v2678 = vmul.f32 %v2544, %v2636
      %v2679 = vmul.f32 %v2549, %v2641
      %v2680 = vmul.f32 %v2554, %v2646
      %v2681 = vmul.f32 %v2559, %v2651
      %v2682 = vmul.f32 %v2564, %v2656
      %v2683 = vmul.f32 %v2569, %v2661
      %v2684 = vmul.f32 %v2574, %v2666
      %v2685 = vmul.f32 %v2579, %v2671
      %v2686 = vadd.f32 %v2673, %v2674
      %v2687 = vadd.f32 %v2686, %v2675
      %v2688 = vadd.f32 %v2687, %v2676
      %v2689 = vadd.f32 %v2688, %v2677
      %v2690 = vadd.f32 %v2689, %v2678
      %v2691 = vadd.f32 %v2690, %v2679
      %v2692 = vadd.f32 %v2691, %v2680
      %v2693 = vadd.f32 %v2692, %v2681
      %v2694 = vadd.f32 %v2693, %v2682
      %v2695 = vadd.f32 %v2694, %v2683
      %v2696 = vadd.f32 %v2695, %v2684
      %v2697 = vadd.f32 %v2696, %v2685
      %v2698 = vrot.slane %v2697, 4
      %v2699 = vadd.f32 %v2697, %v2698
      %v2700 = vrot.slane %v2699, 2
      %v2701 = vadd.f32 %v2699, %v2700
      %v2702 = vrot.slane %v2701, 1
      %v2703 = vadd.f32 %v2701, %v2702
      %2704 = vst [vmem:[%s480] sm:$0x1] %v2703
      %v2705 = vmul.f32 %v2673, %v2519
      %v2706 = vmul.f32 %v2674, %v2524
      %v2707 = vmul.f32 %v2675, %v2529
      %v2708 = vmul.f32 %v2676, %v2534
      %v2709 = vmul.f32 %v2677, %v2539
      %v2710 = vmul.f32 %v2678, %v2544
      %v2711 = vmul.f32 %v2679, %v2549
      %v2712 = vmul.f32 %v2680, %v2554
      %v2713 = vmul.f32 %v2681, %v2559
      %v2714 = vmul.f32 %v2682, %v2564
      %v2715 = vmul.f32 %v2683, %v2569
      %v2716 = vmul.f32 %v2684, %v2574
      %v2717 = vmul.f32 %v2685, %v2579
      %v2718 = vadd.f32 %v2705, %v2706
      %v2719 = vadd.f32 %v2718, %v2707
      %v2720 = vadd.f32 %v2719, %v2708
      %v2721 = vadd.f32 %v2720, %v2709
      %v2722 = vadd.f32 %v2721, %v2710
      %v2723 = vadd.f32 %v2722, %v2711
      %v2724 = vadd.f32 %v2723, %v2712
      %v2725 = vadd.f32 %v2724, %v2713
      %v2726 = vadd.f32 %v2725, %v2714
      %v2727 = vadd.f32 %v2726, %v2715
      %v2728 = vadd.f32 %v2727, %v2716
      %v2729 = vadd.f32 %v2728, %v2717
      %v2730 = vrot.slane %v2729, 4
      %v2731 = vadd.f32 %v2729, %v2730
      %v2732 = vrot.slane %v2731, 2
      %v2733 = vadd.f32 %v2731, %v2732
      %v2734 = vrot.slane %v2733, 1
      %v2735 = vadd.f32 %v2733, %v2734
      %2736 = vst [vmem:[%s480 + $0x1] sm:$0x1] %v2735
      %s2737 = smul.u32 13, %s25
      %p2738 = scmp.lt.s32.totalorder %s23, 1
      %s2739 = scalar_select %p2738, %s23, 1
      %p2740 = scmp.lt.s32.totalorder %s24, 7
      %s2741 = scalar_select %p2740, %s24, 7
      %p2742 = scmp.lt.s32.totalorder %s2737, 12
      %s2743 = scalar_select %p2742, %s2737, 12
      %s2744 = smul.addr %s2741, 13
      %s2745 = sadd.s32 %s2743, %s2744
      %s2746 = smul.addr %s2739, 104
      %s2747 = sadd.s32 %s2745, %s2746
      %s2748 = smul.addr %s2747, 8
      %s2749 = scalar_lea.vmem %s5, %s2748
      %p2750 = scmp.lt.s32.totalorder %s23, 1
      %s2751 = scalar_select %p2750, %s23, 1
      %p2752 = scmp.lt.s32.totalorder %s24, 7
      %s2753 = scalar_select %p2752, %s24, 7
      %p2754 = scmp.lt.s32.totalorder %s25, 0
      %s2755 = scalar_select %p2754, %s25, 0
      %s2756 = sadd.s32 %s2755, %s2753
      %s2757 = smul.addr %s2751, 8
      %s2758 = sadd.s32 %s2756, %s2757
      %s2759 = smul.addr %s2758, 2
      %s2760 = scalar_lea.vmem %s6, %s2759
      // Predicated region
      $region41: #{basic_convolution_block.2} parent=39 // pred_check
        %p2761 = pneg %p200
      $region42: #{basic_convolution_block.2} parent=39 // pred_check_branch
        %2763 = sbr.rel (%p2761) target = $region44
      $region43: #{basic_convolution_block.2} parent=39 // pred_region
        %s2764 = smul.u32 13, %s25
      $region44: #{basic_convolution_block.2} parent=39 // pred_fallthru
        _
      // Predicated region
      $region45: #{basic_convolution_block.2} parent=39 // pred_check
        %p2765 = pneg %p230
      $region46: #{basic_convolution_block.2} parent=39 // pred_check_branch
        %2767 = sbr.rel (%p2765) target = $region48
      $region47: #{basic_convolution_block.2} parent=39 // pred_region
        _
      $region48: #{basic_convolution_block.2} parent=39 // pred_fallthru
        _
    $region40: #{basic_convolution_block.2} parent=5 // pred_fallthru
      _
    %p2768 = scmp.le.s32.totalorder 2, %s13
    // Predicated region
    $region49: #{basic_convolution_block.2} parent=5 // pred_check
      %p2769 = pneg %p2768
    $region50: #{basic_convolution_block.2} parent=5 // pred_check_branch
      %2771 = sbr.rel (%p2769) target = $region52
    $region51: #{basic_convolution_block.2} parent=5 // pred_region
      %s2772 = ssub.s32 %s13, 2
      // Predicated region
      $region53: #{basic_convolution_block.2} parent=51 // pred_check
        %p2773 = pneg %p206
      $region54: #{basic_convolution_block.2} parent=51 // pred_check_branch
        %2775 = sbr.rel (%p2773) target = $region56
      $region55: #{basic_convolution_block.2} parent=51 // pred_region
        %s2776 = smul.u32 13, %s28
        %p2777 = scmp.lt.s32.totalorder %s26, 1
        %s2778 = scalar_select %p2777, %s26, 1
        %p2779 = scmp.lt.s32.totalorder %s27, 7
        %s2780 = scalar_select %p2779, %s27, 7
        %p2781 = scmp.lt.s32.totalorder %s2776, 12
        %s2782 = scalar_select %p2781, %s2776, 12
        %s2783 = smul.addr %s2780, 13
        %s2784 = sadd.s32 %s2782, %s2783
        %s2785 = smul.addr %s2778, 104
        %s2786 = sadd.s32 %s2784, %s2785
        %s2787 = smul.addr %s2786, 8
        %s2788 = scalar_lea.vmem %s5, %s2787
      $region56: #{basic_convolution_block.2} parent=51 // pred_fallthru
        _
      // Predicated region
      $region57: #{basic_convolution_block.2} parent=51 // pred_check
        %p2789 = pneg %p236
      $region58: #{basic_convolution_block.2} parent=51 // pred_check_branch
        %2791 = sbr.rel (%p2789) target = $region60
      $region59: #{basic_convolution_block.2} parent=51 // pred_region
        %p2792 = scmp.lt.s32.totalorder %s26, 1
        %s2793 = scalar_select %p2792, %s26, 1
        %p2794 = scmp.lt.s32.totalorder %s27, 7
        %s2795 = scalar_select %p2794, %s27, 7
        %p2796 = scmp.lt.s32.totalorder %s28, 0
        %s2797 = scalar_select %p2796, %s28, 0
        %s2798 = sadd.s32 %s2797, %s2795
        %s2799 = smul.addr %s2793, 8
        %s2800 = sadd.s32 %s2798, %s2799
        %s2801 = smul.addr %s2800, 2
        %s2802 = scalar_lea.vmem %s6, %s2801
      $region60: #{basic_convolution_block.2} parent=51 // pred_fallthru
        _
    $region52: #{basic_convolution_block.2} parent=5 // pred_fallthru
      _
  $region6: #{basic_convolution_block.2} parent=0 // loop_footer
    %s17 = sadd.s32 1, %s13
  $region7: #{basic_convolution_block.2} parent=0 // loop_footer_branch
    %12 = sbr.rel target = $region3
  $region8: #{basic_convolution_block.2} parent=0 // loop_exit
    _

</llo_original>
